<compile_context>
chip_gen: v6e
topology: v6e:2x2x1
jax: 0.10.0
libtpu: 0.0.40
codegen_flags: <defaults>
</compile_context>

<pallas_src>
import math

import jax
import jax.numpy as jnp
from jax.experimental import pallas as pl
from jax.experimental.pallas import tpu as pltpu


def _layernorm(x, w, b, eps=1e-5):
    mu = jnp.mean(x, axis=-1, keepdims=True)
    var = jnp.mean((x - mu) ** 2, axis=-1, keepdims=True)
    return (x - mu) * jax.lax.rsqrt(var + eps) * w + b


def _gelu_exact(x):
    # matches torch.nn.functional.gelu default (erf-based, not tanh approx)
    return 0.5 * x * (1.0 + jax.lax.erf(x * jnp.float32(1.0 / math.sqrt(2.0))))


def decoder_block_kernel(
    x_ref,
    ln1_w_ref, ln1_b_ref,
    wq_ref, bq_ref, wk_ref, bk_ref, wv_ref, bv_ref,
    wproj_ref, bproj_ref,
    ln2_w_ref, ln2_b_ref,
    wfc_ref, bfc_ref, wfp_ref, bfp_ref,
    o_ref,
    k_cache, v_cache, m_ref, l_ref, acc_ref,
):
    qi = pl.program_id(1)
    x = x_ref[0].astype(jnp.float32)                       # (tq, C)
    tq, C = x.shape
    n_head, _, hd = wq_ref.shape
    mxu = wq_ref.dtype                                     # bf16 MXU operands
    scale = jnp.float32(1.0 / math.sqrt(hd))
    neg_big = jnp.float32(-1e30)                           # finite; avoids inf-inf NaN

    # ---- online-softmax state (re-initialised every (b, qi) grid step) ----
    m_ref[...] = jnp.full(m_ref.shape, neg_big, m_ref.dtype)
    l_ref[...] = jnp.zeros(l_ref.shape, l_ref.dtype)
    acc_ref[...] = jnp.zeros(acc_ref.shape, acc_ref.dtype)

    # ---- sublayer 1: pre-LN + per-head Q/K/V for this query tile ----
    h1 = _layernorm(x, ln1_w_ref[...], ln1_b_ref[...]).astype(mxu)
    q_start = pl.multiple_of(qi * tq, tq)

    q_heads = []
    for h in range(n_head):                                # static, small
        qh = jnp.dot(h1, wq_ref[h], preferred_element_type=jnp.float32) + bq_ref[h]
        kh = jnp.dot(h1, wk_ref[h], preferred_element_type=jnp.float32) + bk_ref[h]
        vh = jnp.dot(h1, wv_ref[h], preferred_element_type=jnp.float32) + bv_ref[h]
        q_heads.append((qh * scale).astype(mxu))
        # append this tile's K/V to the persistent cache (rebuilt per batch)
        k_cache[h, pl.ds(q_start, tq), :] = kh.astype(k_cache.dtype)
        v_cache[h, pl.ds(q_start, tq), :] = vh.astype(v_cache.dtype)

    def attend_tile(k_start, bias):
        for h in range(n_head):
            k_t = k_cache[h, pl.ds(k_start, tq), :]        # (tq, hd)
            v_t = v_cache[h, pl.ds(k_start, tq), :]
            s = jax.lax.dot_general(                       # (tq, tq) f32, NT matmul
                q_heads[h], k_t, (((1,), (1,)), ((), ())),
                preferred_element_type=jnp.float32)
            if bias is not None:
                s = s + bias
            m_prev = m_ref[h]
            m_new = jnp.maximum(m_prev, jnp.max(s, axis=-1, keepdims=True))
            alpha = jnp.exp(m_prev - m_new)
            p = jnp.exp(s - m_new)
            l_ref[h] = alpha * l_ref[h] + jnp.sum(p, axis=-1, keepdims=True)
            acc_ref[h] = alpha * acc_ref[h] + jnp.dot(
                p.astype(mxu), v_t, preferred_element_type=jnp.float32)
            m_ref[h] = m_new

    # ---- strictly-below-diagonal key tiles: fully unmasked, no bias work ----
    def kv_step(ki, carry):
        attend_tile(pl.multiple_of(ki * tq, tq), None)
        return carry

    jax.lax.fori_loop(0, qi, kv_step, 0)

    # ---- diagonal key tile: the only place the causal mask is needed ----
    rows = jax.lax.broadcasted_iota(jnp.int32, (tq, tq), 0)
    cols = jax.lax.broadcasted_iota(jnp.int32, (tq, tq), 1)
    diag_bias = jnp.where(rows >= cols, jnp.float32(0.0), neg_big)
    attend_tile(q_start, diag_bias)

    # ---- output projection, accumulated per head (no concatenate) ----
    attn = jnp.zeros((tq, C), jnp.float32)
    for h in range(n_head):
        o_h = acc_ref[h] * pl.reciprocal(l_ref[h], approx=True)
        attn = attn + jnp.dot(o_h.astype(mxu), wproj_ref[h],
                              preferred_element_type=jnp.float32)
    attn = attn + bproj_ref[...]
    x2 = x + attn                                          # residual 1

    # ---- sublayer 2: pre-LN MLP ----
    h2 = _layernorm(x2, ln2_w_ref[...], ln2_b_ref[...]).astype(mxu)
    f = jnp.dot(h2, wfc_ref[...], preferred_element_type=jnp.float32) + bfc_ref[...]
    f = _gelu_exact(f)
    f = jnp.dot(f.astype(mxu), wfp_ref[...],
                preferred_element_type=jnp.float32) + bfp_ref[...]
    o_ref[0] = (x2 + f).astype(o_ref.dtype)                # residual 2


def decoder_block(x, params, n_head, *, tq=None, mxu_dtype=jnp.bfloat16):
    """x: (B, T, C) float32. params: dict of (in, out)-layout f32 weights."""
    B, T, C = x.shape
    assert C % n_head == 0
    hd = C // n_head
    if tq is None:
        tq = min(T, 256)
    assert T % tq == 0 and (tq == T or tq % 8 == 0)
    nq = T // tq
    f32 = jnp.float32

    # ---- wrapper-side re-layout: head dim leading; bf16 MXU weights ----
    w_qkv, b_qkv = params["w_qkv"], params["b_qkv"]        # (C, 3C), (1, 3C)

    def w_heads(off):                                      # -> (n_head, C, hd)
        return (w_qkv[:, off:off + C].reshape(C, n_head, hd)
                .transpose(1, 0, 2).astype(mxu_dtype))

    def b_heads(off):                                      # -> (n_head, 1, hd)
        return (b_qkv[:, off:off + C].reshape(1, n_head, hd)
                .transpose(1, 0, 2).astype(f32))

    wq, wk, wv = w_heads(0), w_heads(C), w_heads(2 * C)
    bq, bk, bv = b_heads(0), b_heads(C), b_heads(2 * C)
    wproj = params["w_proj"].reshape(n_head, hd, C).astype(mxu_dtype)
    bproj = params["b_proj"].astype(f32)
    wfc, bfc = params["w_fc"].astype(mxu_dtype), params["b_fc"].astype(f32)
    wfp, bfp = params["w_fp"].astype(mxu_dtype), params["b_fp"].astype(f32)
    ln1w, ln1b = params["ln1_w"].astype(f32), params["ln1_b"].astype(f32)
    ln2w, ln2b = params["ln2_w"].astype(f32), params["ln2_b"].astype(f32)

    weights = (ln1w, ln1b, wq, bq, wk, bk, wv, bv, wproj, bproj,
               ln2w, ln2b, wfc, bfc, wfp, bfp)

    # ---- VMEM budget (explicit) & cost estimate ----
    weight_bytes = sum(int(w.size) * w.dtype.itemsize for w in weights)
    mxu_bytes = jnp.dtype(mxu_dtype).itemsize
    scratch_bytes = (2 * n_head * T * hd * mxu_bytes        # K/V cache
                     + n_head * tq * (hd + 2) * 4)          # m, l, acc
    act_bytes = 4 * (2 * tq * C + tq * 4 * C) * 4           # rough f32 live set
    vmem_limit = int(min(64 * 2**20,
                         max(32 * 2**20,
                             2 * weight_bytes + scratch_bytes + act_bytes + (8 << 20))))
    cost = pl.CostEstimate(
        flops=int(2 * B * T * C * (12 * C + T)),
        transcendentals=int(B * T * (T // 2 + 4 * C)),
        bytes_accessed=int(2 * B * T * C * 4 + weight_bytes))

    out_shape = jax.ShapeDtypeStruct((B, T, C), x.dtype)
    scratch_shapes = [
        pltpu.VMEM((n_head, T, hd), mxu_dtype),             # K cache (persists over qi)
        pltpu.VMEM((n_head, T, hd), mxu_dtype),             # V cache
        pltpu.VMEM((n_head, tq, 1), f32),                   # online-softmax m
        pltpu.VMEM((n_head, tq, 1), f32),                   # online-softmax l
        pltpu.VMEM((n_head, tq, hd), f32),                  # online-softmax acc
    ]

    def wspec(shape):
        nd = len(shape)
        return pl.BlockSpec(shape, lambda b, q, _nd=nd: (0,) * _nd)

    in_specs = [pl.BlockSpec((1, tq, C), lambda b, q: (b, q, 0))]
    in_specs += [wspec(w.shape) for w in weights]
    out_spec = pl.BlockSpec((1, tq, C), lambda b, q: (b, q, 0))

    call = pl.pallas_call(
        decoder_block_kernel,
        out_shape=out_shape,
        grid_spec=pltpu.PrefetchScalarGridSpec(
            num_scalar_prefetch=0,
            grid=(B, nq),
            in_specs=in_specs,
            out_specs=out_spec,
            scratch_shapes=scratch_shapes),
        compiler_params=pltpu.CompilerParams(
            dimension_semantics=("parallel", "arbitrary"),
            vmem_limit_bytes=vmem_limit),
        cost_estimate=cost,
    )
    return call(x, *weights)


# ---------------- pure-JAX reference (for correctness check) ----------------
def decoder_block_ref(x, params, n_head):
    B, T, C = x.shape
    hd = C // n_head

    def ln(v, w, b):
        mu = jnp.mean(v, axis=-1, keepdims=True)
        var = jnp.mean((v - mu) ** 2, axis=-1, keepdims=True)
        return (v - mu) * jax.lax.rsqrt(var + 1e-5) * w[0] + b[0]

    h = ln(x, params["ln1_w"], params["ln1_b"])
    qkv = h @ params["w_qkv"] + params["b_qkv"][0]
    q, k, v = jnp.split(qkv, 3, axis=-1)
    q = q.reshape(B, T, n_head, hd).transpose(0, 2, 1, 3)
    k = k.reshape(B, T, n_head, hd).transpose(0, 2, 1, 3)
    v = v.reshape(B, T, n_head, hd).transpose(0, 2, 1, 3)
    s = jnp.einsum("bhqd,bhkd->bhqk", q, k) / math.sqrt(hd)
    mask = jnp.tril(jnp.ones((T, T), dtype=bool))
    s = jnp.where(mask, s, -jnp.inf)
    p = jax.nn.softmax(s, axis=-1)
    o = jnp.einsum("bhqk,bhkd->bhqd", p, v).transpose(0, 2, 1, 3).reshape(B, T, C)
    o = o @ params["w_proj"] + params["b_proj"][0]
    x = x + o
    h2 = ln(x, params["ln2_w"], params["ln2_b"])
    f = h2 @ params["w_fc"] + params["b_fc"][0]
    f = 0.5 * f * (1.0 + jax.lax.erf(f / jnp.sqrt(2.0)))
    f = f @ params["w_fp"] + params["b_fp"][0]
    return x + f


def init_params(key, n_embed):
    ks = jax.random.split(key, 8)
    C = n_embed
    s = 0.02
    return {
        "ln1_w": jnp.ones((1, C), jnp.float32),
        "ln1_b": jnp.zeros((1, C), jnp.float32),
        # pre-transposed: (in, out)
        "w_qkv": s * jax.random.normal(ks[0], (C, 3 * C), jnp.float32),
        "b_qkv": s * jax.random.normal(ks[1], (1, 3 * C), jnp.float32),
        "w_proj": s * jax.random.normal(ks[2], (C, C), jnp.float32),
        "b_proj": s * jax.random.normal(ks[3], (1, C), jnp.float32),
        "ln2_w": jnp.ones((1, C), jnp.float32),
        "ln2_b": jnp.zeros((1, C), jnp.float32),
        "w_fc": s * jax.random.normal(ks[4], (C, 4 * C), jnp.float32),
        "b_fc": s * jax.random.normal(ks[5], (1, 4 * C), jnp.float32),
        "w_fp": s * jax.random.normal(ks[6], (4 * C, C), jnp.float32),
        "b_fp": s * jax.random.normal(ks[7], (1, C), jnp.float32),
    }


if __name__ == "__main__":
    B, T, C, H = 2, 16, 32, 4
    TQ = 8   # 2 query tiles per sequence -> exercises K/V cache + online softmax path
    key = jax.random.PRNGKey(0)
    kx, kp = jax.random.split(key)
    x = jax.random.normal(kx, (B, T, C), jnp.float32)
    params = init_params(kp, C)

    out = decoder_block(x, params, n_head=H, tq=TQ)
    out = jax.block_until_ready(out)

    ref = decoder_block_ref(x, params, n_head=H)
    assert out.shape == (B, T, C)
    # bf16 MXU operands + approx reciprocal vs f32 reference -> relaxed tolerance
    err = float(jnp.max(jnp.abs(out - ref)))
    assert jnp.allclose(out, ref, rtol=2e-2, atol=2e-2), err

    print("KERNEL_OK")
</pallas_src>

<mosaic_0001>
module attributes {stable_mosaic.version = 11 : i64} {
  func.func @decoder_block_kernel(%arg0: i32, %arg1: i32, %arg2: memref<1x8x32xf32, #tpu.memory_space<vmem>>, %arg3: memref<1x32xf32, #tpu.memory_space<vmem>>, %arg4: memref<1x32xf32, #tpu.memory_space<vmem>>, %arg5: memref<4x32x8xbf16, #tpu.memory_space<vmem>>, %arg6: memref<4x1x8xf32, #tpu.memory_space<vmem>>, %arg7: memref<4x32x8xbf16, #tpu.memory_space<vmem>>, %arg8: memref<4x1x8xf32, #tpu.memory_space<vmem>>, %arg9: memref<4x32x8xbf16, #tpu.memory_space<vmem>>, %arg10: memref<4x1x8xf32, #tpu.memory_space<vmem>>, %arg11: memref<4x8x32xbf16, #tpu.memory_space<vmem>>, %arg12: memref<1x32xf32, #tpu.memory_space<vmem>>, %arg13: memref<1x32xf32, #tpu.memory_space<vmem>>, %arg14: memref<1x32xf32, #tpu.memory_space<vmem>>, %arg15: memref<32x128xbf16, #tpu.memory_space<vmem>>, %arg16: memref<1x128xf32, #tpu.memory_space<vmem>>, %arg17: memref<128x32xbf16, #tpu.memory_space<vmem>>, %arg18: memref<1x32xf32, #tpu.memory_space<vmem>>, %arg19: memref<1x8x32xf32, #tpu.memory_space<vmem>>, %arg20: memref<4x16x8xbf16, #tpu.memory_space<vmem>>, %arg21: memref<4x16x8xbf16, #tpu.memory_space<vmem>>, %arg22: memref<4x8x1xf32, #tpu.memory_space<vmem>>, %arg23: memref<4x8x1xf32, #tpu.memory_space<vmem>>, %arg24: memref<4x8x8xf32, #tpu.memory_space<vmem>>) attributes {dimension_semantics = [#tpu.dimension_semantics<parallel>, #tpu.dimension_semantics<arbitrary>], iteration_bounds = array<i64: 2, 2>, scalar_prefetch = 0 : i64, scratch_operands = 5 : i64, tpu.core_type = #tpu.core_type<tc>, window_params = [{transform_indices = @transform_0, window_bounds = array<i64: 1, 8, 32>}, {pipeline_mode = #tpu.pipeline_mode<synchronous>, transform_indices = @transform_1, window_bounds = array<i64: 1, 32>}, {pipeline_mode = #tpu.pipeline_mode<synchronous>, transform_indices = @transform_2, window_bounds = array<i64: 1, 32>}, {pipeline_mode = #tpu.pipeline_mode<synchronous>, transform_indices = @transform_3, window_bounds = array<i64: 4, 32, 8>}, {pipeline_mode = #tpu.pipeline_mode<synchronous>, transform_indices = @transform_4, window_bounds = array<i64: 4, 1, 8>}, {pipeline_mode = #tpu.pipeline_mode<synchronous>, transform_indices = @transform_5, window_bounds = array<i64: 4, 32, 8>}, {pipeline_mode = #tpu.pipeline_mode<synchronous>, transform_indices = @transform_6, window_bounds = array<i64: 4, 1, 8>}, {pipeline_mode = #tpu.pipeline_mode<synchronous>, transform_indices = @transform_7, window_bounds = array<i64: 4, 32, 8>}, {pipeline_mode = #tpu.pipeline_mode<synchronous>, transform_indices = @transform_8, window_bounds = array<i64: 4, 1, 8>}, {pipeline_mode = #tpu.pipeline_mode<synchronous>, transform_indices = @transform_9, window_bounds = array<i64: 4, 8, 32>}, {pipeline_mode = #tpu.pipeline_mode<synchronous>, transform_indices = @transform_10, window_bounds = array<i64: 1, 32>}, {pipeline_mode = #tpu.pipeline_mode<synchronous>, transform_indices = @transform_11, window_bounds = array<i64: 1, 32>}, {pipeline_mode = #tpu.pipeline_mode<synchronous>, transform_indices = @transform_12, window_bounds = array<i64: 1, 32>}, {pipeline_mode = #tpu.pipeline_mode<synchronous>, transform_indices = @transform_13, window_bounds = array<i64: 32, 128>}, {pipeline_mode = #tpu.pipeline_mode<synchronous>, transform_indices = @transform_14, window_bounds = array<i64: 1, 128>}, {pipeline_mode = #tpu.pipeline_mode<synchronous>, transform_indices = @transform_15, window_bounds = array<i64: 128, 32>}, {pipeline_mode = #tpu.pipeline_mode<synchronous>, transform_indices = @transform_16, window_bounds = array<i64: 1, 32>}, {transform_indices = @transform_17, window_bounds = array<i64: 1, 8, 32>}]} {
    %c0 = arith.constant 0 : index
    %c0_0 = arith.constant 0 : index
    %c0_1 = arith.constant 0 : index
    %0 = vector.load %arg2[%c0, %c0_0, %c0_1] : memref<1x8x32xf32, #tpu.memory_space<vmem>>, vector<1x8x32xf32>
    %1 = vector.shape_cast %0 : vector<1x8x32xf32> to vector<8x32xf32>
    %cst = arith.constant -1.000000e+30 : f32
    %2 = vector.broadcast %cst : f32 to vector<4x8x1xf32>
    %c0_2 = arith.constant 0 : index
    %c0_3 = arith.constant 0 : index
    %c0_4 = arith.constant 0 : index
    %3 = vector.load %arg22[%c0_2, %c0_3, %c0_4] : memref<4x8x1xf32, #tpu.memory_space<vmem>>, vector<4x8x1xf32>
    tpu.vector_store %arg22[%c0_2, %c0_3, %c0_4], %2 {strides = array<i32>} : memref<4x8x1xf32, #tpu.memory_space<vmem>>, vector<4x8x1xf32>,
    %cst_5 = arith.constant 0.000000e+00 : f32
    %4 = vector.broadcast %cst_5 : f32 to vector<4x8x1xf32>
    %c0_6 = arith.constant 0 : index
    %c0_7 = arith.constant 0 : index
    %c0_8 = arith.constant 0 : index
    %5 = vector.load %arg23[%c0_6, %c0_7, %c0_8] : memref<4x8x1xf32, #tpu.memory_space<vmem>>, vector<4x8x1xf32>
    tpu.vector_store %arg23[%c0_6, %c0_7, %c0_8], %4 {strides = array<i32>} : memref<4x8x1xf32, #tpu.memory_space<vmem>>, vector<4x8x1xf32>,
    %cst_9 = arith.constant 0.000000e+00 : f32
    %6 = vector.broadcast %cst_9 : f32 to vector<4x8x8xf32>
    %c0_10 = arith.constant 0 : index
    %c0_11 = arith.constant 0 : index
    %c0_12 = arith.constant 0 : index
    %7 = vector.load %arg24[%c0_10, %c0_11, %c0_12] : memref<4x8x8xf32, #tpu.memory_space<vmem>>, vector<4x8x8xf32>
    tpu.vector_store %arg24[%c0_10, %c0_11, %c0_12], %6 {strides = array<i32>} : memref<4x8x8xf32, #tpu.memory_space<vmem>>, vector<4x8x8xf32>,
    %c0_13 = arith.constant 0 : index
    %c0_14 = arith.constant 0 : index
    %8 = vector.load %arg3[%c0_13, %c0_14] : memref<1x32xf32, #tpu.memory_space<vmem>>, vector<1x32xf32>
    %c0_15 = arith.constant 0 : index
    %c0_16 = arith.constant 0 : index
    %9 = vector.load %arg4[%c0_15, %c0_16] : memref<1x32xf32, #tpu.memory_space<vmem>>, vector<1x32xf32>
    %cst_17 = arith.constant dense<0.000000e+00> : vector<8xf32>
    %10 = vector.multi_reduction <add>, %1, %cst_17 [1] : vector<8x32xf32> to vector<8xf32>
    %11 = vector.shape_cast %10 : vector<8xf32> to vector<8x1xf32>
    %cst_18 = arith.constant 3.200000e+01 : f32
    %12 = vector.broadcast %cst_18 : f32 to vector<8x1xf32>
    %13 = arith.divf %11, %12 : vector<8x1xf32>
    %14 = vector.broadcast %13 : vector<8x1xf32> to vector<8x32xf32>
    %15 = arith.subf %1, %14 : vector<8x32xf32>
    %16 = arith.mulf %15, %15 : vector<8x32xf32>
    %cst_19 = arith.constant dense<0.000000e+00> : vector<8xf32>
    %17 = vector.multi_reduction <add>, %16, %cst_19 [1] : vector<8x32xf32> to vector<8xf32>
    %18 = vector.shape_cast %17 : vector<8xf32> to vector<8x1xf32>
    %cst_20 = arith.constant 3.200000e+01 : f32
    %19 = vector.broadcast %cst_20 : f32 to vector<8x1xf32>
    %20 = arith.divf %18, %19 : vector<8x1xf32>
    %21 = vector.broadcast %13 : vector<8x1xf32> to vector<8x32xf32>
    %22 = arith.subf %1, %21 : vector<8x32xf32>
    %cst_21 = arith.constant 9.99999974E-6 : f32
    %23 = vector.broadcast %cst_21 : f32 to vector<8x1xf32>
    %24 = arith.addf %20, %23 : vector<8x1xf32>
    %25 = math.rsqrt %24 : vector<8x1xf32>
    %26 = vector.broadcast %25 : vector<8x1xf32> to vector<8x32xf32>
    %27 = arith.mulf %22, %26 : vector<8x32xf32>
    %28 = vector.broadcast %8 : vector<1x32xf32> to vector<8x32xf32>
    %29 = arith.mulf %27, %28 : vector<8x32xf32>
    %30 = vector.broadcast %9 : vector<1x32xf32> to vector<8x32xf32>
    %31 = arith.addf %29, %30 : vector<8x32xf32>
    %32 = arith.truncf %31 : vector<8x32xf32> to vector<8x32xbf16>
    %c8_i32 = arith.constant 8 : i32
    %33 = arith.muli %arg1, %c8_i32 : i32
    %34 = tpu.assume_multiple %33, 8 : i32
    %c0_22 = arith.constant 0 : index
    %c0_23 = arith.constant 0 : index
    %c0_24 = arith.constant 0 : index
    %35 = vector.load %arg5[%c0_22, %c0_23, %c0_24] : memref<4x32x8xbf16, #tpu.memory_space<vmem>>, vector<1x32x8xbf16>
    %36 = vector.shape_cast %35 : vector<1x32x8xbf16> to vector<32x8xbf16>
    %cst_25 = arith.constant dense<0.000000e+00> : vector<8x8xf32>
    %37 = tpu.matmul %32, %36, %cst_25 {dimension_numbers = #tpu.dot_dimension_numbers<[1], [0], [0], [1], [0, 0, 1, 1], [], []>} : vector<8x32xbf16>, vector<32x8xbf16>, vector<8x8xf32> -> vector<8x8xf32>
    %c0_26 = arith.constant 0 : index
    %c0_27 = arith.constant 0 : index
    %c0_28 = arith.constant 0 : index
    %38 = vector.load %arg6[%c0_26, %c0_27, %c0_28] : memref<4x1x8xf32, #tpu.memory_space<vmem>>, vector<1x1x8xf32>
    %39 = vector.shape_cast %38 : vector<1x1x8xf32> to vector<1x8xf32>
    %40 = vector.broadcast %39 : vector<1x8xf32> to vector<8x8xf32>
    %41 = arith.addf %37, %40 : vector<8x8xf32>
    %c0_29 = arith.constant 0 : index
    %c0_30 = arith.constant 0 : index
    %c0_31 = arith.constant 0 : index
    %42 = vector.load %arg7[%c0_29, %c0_30, %c0_31] : memref<4x32x8xbf16, #tpu.memory_space<vmem>>, vector<1x32x8xbf16>
    %43 = vector.shape_cast %42 : vector<1x32x8xbf16> to vector<32x8xbf16>
    %cst_32 = arith.constant dense<0.000000e+00> : vector<8x8xf32>
    %44 = tpu.matmul %32, %43, %cst_32 {dimension_numbers = #tpu.dot_dimension_numbers<[1], [0], [0], [1], [0, 0, 1, 1], [], []>} : vector<8x32xbf16>, vector<32x8xbf16>, vector<8x8xf32> -> vector<8x8xf32>
    %c0_33 = arith.constant 0 : index
    %c0_34 = arith.constant 0 : index
    %c0_35 = arith.constant 0 : index
    %45 = vector.load %arg8[%c0_33, %c0_34, %c0_35] : memref<4x1x8xf32, #tpu.memory_space<vmem>>, vector<1x1x8xf32>
    %46 = vector.shape_cast %45 : vector<1x1x8xf32> to vector<1x8xf32>
    %47 = vector.broadcast %46 : vector<1x8xf32> to vector<8x8xf32>
    %48 = arith.addf %44, %47 : vector<8x8xf32>
    %c0_36 = arith.constant 0 : index
    %c0_37 = arith.constant 0 : index
    %c0_38 = arith.constant 0 : index
    %49 = vector.load %arg9[%c0_36, %c0_37, %c0_38] : memref<4x32x8xbf16, #tpu.memory_space<vmem>>, vector<1x32x8xbf16>
    %50 = vector.shape_cast %49 : vector<1x32x8xbf16> to vector<32x8xbf16>
    %cst_39 = arith.constant dense<0.000000e+00> : vector<8x8xf32>
    %51 = tpu.matmul %32, %50, %cst_39 {dimension_numbers = #tpu.dot_dimension_numbers<[1], [0], [0], [1], [0, 0, 1, 1], [], []>} : vector<8x32xbf16>, vector<32x8xbf16>, vector<8x8xf32> -> vector<8x8xf32>
    %c0_40 = arith.constant 0 : index
    %c0_41 = arith.constant 0 : index
    %c0_42 = arith.constant 0 : index
    %52 = vector.load %arg10[%c0_40, %c0_41, %c0_42] : memref<4x1x8xf32, #tpu.memory_space<vmem>>, vector<1x1x8xf32>
    %53 = vector.shape_cast %52 : vector<1x1x8xf32> to vector<1x8xf32>
    %54 = vector.broadcast %53 : vector<1x8xf32> to vector<8x8xf32>
    %55 = arith.addf %51, %54 : vector<8x8xf32>
    %cst_43 = arith.constant 0.353553385 : f32
    %56 = vector.broadcast %cst_43 : f32 to vector<8x8xf32>
    %57 = arith.mulf %41, %56 : vector<8x8xf32>
    %58 = arith.truncf %57 : vector<8x8xf32> to vector<8x8xbf16>
    %59 = arith.truncf %48 : vector<8x8xf32> to vector<8x8xbf16>
    %c0_44 = arith.constant 0 : index
    %60 = arith.index_cast %34 : i32 to index
    %c0_45 = arith.constant 0 : index
    %61 = vector.load %arg20[%c0_44, %60, %c0_45] : memref<4x16x8xbf16, #tpu.memory_space<vmem>>, vector<1x8x8xbf16>
    %62 = vector.shape_cast %61 : vector<1x8x8xbf16> to vector<8x8xbf16>
    %63 = vector.shape_cast %59 : vector<8x8xbf16> to vector<1x8x8xbf16>
    tpu.vector_store %arg20[%c0_44, %60, %c0_45], %63 {strides = array<i32>} : memref<4x16x8xbf16, #tpu.memory_space<vmem>>, vector<1x8x8xbf16>,
    %64 = arith.truncf %55 : vector<8x8xf32> to vector<8x8xbf16>
    %c0_46 = arith.constant 0 : index
    %65 = arith.index_cast %34 : i32 to index
    %c0_47 = arith.constant 0 : index
    %66 = vector.load %arg21[%c0_46, %65, %c0_47] : memref<4x16x8xbf16, #tpu.memory_space<vmem>>, vector<1x8x8xbf16>
    %67 = vector.shape_cast %66 : vector<1x8x8xbf16> to vector<8x8xbf16>
    %68 = vector.shape_cast %64 : vector<8x8xbf16> to vector<1x8x8xbf16>
    tpu.vector_store %arg21[%c0_46, %65, %c0_47], %68 {strides = array<i32>} : memref<4x16x8xbf16, #tpu.memory_space<vmem>>, vector<1x8x8xbf16>,
    %c1 = arith.constant 1 : index
    %c0_48 = arith.constant 0 : index
    %c0_49 = arith.constant 0 : index
    %69 = vector.load %arg5[%c1, %c0_48, %c0_49] : memref<4x32x8xbf16, #tpu.memory_space<vmem>>, vector<1x32x8xbf16>
    %70 = vector.shape_cast %69 : vector<1x32x8xbf16> to vector<32x8xbf16>
    %cst_50 = arith.constant dense<0.000000e+00> : vector<8x8xf32>
    %71 = tpu.matmul %32, %70, %cst_50 {dimension_numbers = #tpu.dot_dimension_numbers<[1], [0], [0], [1], [0, 0, 1, 1], [], []>} : vector<8x32xbf16>, vector<32x8xbf16>, vector<8x8xf32> -> vector<8x8xf32>
    %c1_51 = arith.constant 1 : index
    %c0_52 = arith.constant 0 : index
    %c0_53 = arith.constant 0 : index
    %72 = vector.load %arg6[%c1_51, %c0_52, %c0_53] : memref<4x1x8xf32, #tpu.memory_space<vmem>>, vector<1x1x8xf32>
    %73 = vector.shape_cast %72 : vector<1x1x8xf32> to vector<1x8xf32>
    %74 = vector.broadcast %73 : vector<1x8xf32> to vector<8x8xf32>
    %75 = arith.addf %71, %74 : vector<8x8xf32>
    %c1_54 = arith.constant 1 : index
    %c0_55 = arith.constant 0 : index
    %c0_56 = arith.constant 0 : index
    %76 = vector.load %arg7[%c1_54, %c0_55, %c0_56] : memref<4x32x8xbf16, #tpu.memory_space<vmem>>, vector<1x32x8xbf16>
    %77 = vector.shape_cast %76 : vector<1x32x8xbf16> to vector<32x8xbf16>
    %cst_57 = arith.constant dense<0.000000e+00> : vector<8x8xf32>
    %78 = tpu.matmul %32, %77, %cst_57 {dimension_numbers = #tpu.dot_dimension_numbers<[1], [0], [0], [1], [0, 0, 1, 1], [], []>} : vector<8x32xbf16>, vector<32x8xbf16>, vector<8x8xf32> -> vector<8x8xf32>
    %c1_58 = arith.constant 1 : index
    %c0_59 = arith.constant 0 : index
    %c0_60 = arith.constant 0 : index
    %79 = vector.load %arg8[%c1_58, %c0_59, %c0_60] : memref<4x1x8xf32, #tpu.memory_space<vmem>>, vector<1x1x8xf32>
    %80 = vector.shape_cast %79 : vector<1x1x8xf32> to vector<1x8xf32>
    %81 = vector.broadcast %80 : vector<1x8xf32> to vector<8x8xf32>
    %82 = arith.addf %78, %81 : vector<8x8xf32>
    %c1_61 = arith.constant 1 : index
    %c0_62 = arith.constant 0 : index
    %c0_63 = arith.constant 0 : index
    %83 = vector.load %arg9[%c1_61, %c0_62, %c0_63] : memref<4x32x8xbf16, #tpu.memory_space<vmem>>, vector<1x32x8xbf16>
    %84 = vector.shape_cast %83 : vector<1x32x8xbf16> to vector<32x8xbf16>
    %cst_64 = arith.constant dense<0.000000e+00> : vector<8x8xf32>
    %85 = tpu.matmul %32, %84, %cst_64 {dimension_numbers = #tpu.dot_dimension_numbers<[1], [0], [0], [1], [0, 0, 1, 1], [], []>} : vector<8x32xbf16>, vector<32x8xbf16>, vector<8x8xf32> -> vector<8x8xf32>
    %c1_65 = arith.constant 1 : index
    %c0_66 = arith.constant 0 : index
    %c0_67 = arith.constant 0 : index
    %86 = vector.load %arg10[%c1_65, %c0_66, %c0_67] : memref<4x1x8xf32, #tpu.memory_space<vmem>>, vector<1x1x8xf32>
    %87 = vector.shape_cast %86 : vector<1x1x8xf32> to vector<1x8xf32>
    %88 = vector.broadcast %87 : vector<1x8xf32> to vector<8x8xf32>
    %89 = arith.addf %85, %88 : vector<8x8xf32>
    %cst_68 = arith.constant 0.353553385 : f32
    %90 = vector.broadcast %cst_68 : f32 to vector<8x8xf32>
    %91 = arith.mulf %75, %90 : vector<8x8xf32>
    %92 = arith.truncf %91 : vector<8x8xf32> to vector<8x8xbf16>
    %93 = arith.truncf %82 : vector<8x8xf32> to vector<8x8xbf16>
    %c1_69 = arith.constant 1 : index
    %94 = arith.index_cast %34 : i32 to index
    %c0_70 = arith.constant 0 : index
    %95 = vector.load %arg20[%c1_69, %94, %c0_70] : memref<4x16x8xbf16, #tpu.memory_space<vmem>>, vector<1x8x8xbf16>
    %96 = vector.shape_cast %95 : vector<1x8x8xbf16> to vector<8x8xbf16>
    %97 = vector.shape_cast %93 : vector<8x8xbf16> to vector<1x8x8xbf16>
    tpu.vector_store %arg20[%c1_69, %94, %c0_70], %97 {strides = array<i32>} : memref<4x16x8xbf16, #tpu.memory_space<vmem>>, vector<1x8x8xbf16>,
    %98 = arith.truncf %89 : vector<8x8xf32> to vector<8x8xbf16>
    %c1_71 = arith.constant 1 : index
    %99 = arith.index_cast %34 : i32 to index
    %c0_72 = arith.constant 0 : index
    %100 = vector.load %arg21[%c1_71, %99, %c0_72] : memref<4x16x8xbf16, #tpu.memory_space<vmem>>, vector<1x8x8xbf16>
    %101 = vector.shape_cast %100 : vector<1x8x8xbf16> to vector<8x8xbf16>
    %102 = vector.shape_cast %98 : vector<8x8xbf16> to vector<1x8x8xbf16>
    tpu.vector_store %arg21[%c1_71, %99, %c0_72], %102 {strides = array<i32>} : memref<4x16x8xbf16, #tpu.memory_space<vmem>>, vector<1x8x8xbf16>,
    %c2 = arith.constant 2 : index
    %c0_73 = arith.constant 0 : index
    %c0_74 = arith.constant 0 : index
    %103 = vector.load %arg5[%c2, %c0_73, %c0_74] : memref<4x32x8xbf16, #tpu.memory_space<vmem>>, vector<1x32x8xbf16>
    %104 = vector.shape_cast %103 : vector<1x32x8xbf16> to vector<32x8xbf16>
    %cst_75 = arith.constant dense<0.000000e+00> : vector<8x8xf32>
    %105 = tpu.matmul %32, %104, %cst_75 {dimension_numbers = #tpu.dot_dimension_numbers<[1], [0], [0], [1], [0, 0, 1, 1], [], []>} : vector<8x32xbf16>, vector<32x8xbf16>, vector<8x8xf32> -> vector<8x8xf32>
    %c2_76 = arith.constant 2 : index
    %c0_77 = arith.constant 0 : index
    %c0_78 = arith.constant 0 : index
    %106 = vector.load %arg6[%c2_76, %c0_77, %c0_78] : memref<4x1x8xf32, #tpu.memory_space<vmem>>, vector<1x1x8xf32>
    %107 = vector.shape_cast %106 : vector<1x1x8xf32> to vector<1x8xf32>
    %108 = vector.broadcast %107 : vector<1x8xf32> to vector<8x8xf32>
    %109 = arith.addf %105, %108 : vector<8x8xf32>
    %c2_79 = arith.constant 2 : index
    %c0_80 = arith.constant 0 : index
    %c0_81 = arith.constant 0 : index
    %110 = vector.load %arg7[%c2_79, %c0_80, %c0_81] : memref<4x32x8xbf16, #tpu.memory_space<vmem>>, vector<1x32x8xbf16>
    %111 = vector.shape_cast %110 : vector<1x32x8xbf16> to vector<32x8xbf16>
    %cst_82 = arith.constant dense<0.000000e+00> : vector<8x8xf32>
    %112 = tpu.matmul %32, %111, %cst_82 {dimension_numbers = #tpu.dot_dimension_numbers<[1], [0], [0], [1], [0, 0, 1, 1], [], []>} : vector<8x32xbf16>, vector<32x8xbf16>, vector<8x8xf32> -> vector<8x8xf32>
    %c2_83 = arith.constant 2 : index
    %c0_84 = arith.constant 0 : index
    %c0_85 = arith.constant 0 : index
    %113 = vector.load %arg8[%c2_83, %c0_84, %c0_85] : memref<4x1x8xf32, #tpu.memory_space<vmem>>, vector<1x1x8xf32>
    %114 = vector.shape_cast %113 : vector<1x1x8xf32> to vector<1x8xf32>
    %115 = vector.broadcast %114 : vector<1x8xf32> to vector<8x8xf32>
    %116 = arith.addf %112, %115 : vector<8x8xf32>
    %c2_86 = arith.constant 2 : index
    %c0_87 = arith.constant 0 : index
    %c0_88 = arith.constant 0 : index
    %117 = vector.load %arg9[%c2_86, %c0_87, %c0_88] : memref<4x32x8xbf16, #tpu.memory_space<vmem>>, vector<1x32x8xbf16>
    %118 = vector.shape_cast %117 : vector<1x32x8xbf16> to vector<32x8xbf16>
    %cst_89 = arith.constant dense<0.000000e+00> : vector<8x8xf32>
    %119 = tpu.matmul %32, %118, %cst_89 {dimension_numbers = #tpu.dot_dimension_numbers<[1], [0], [0], [1], [0, 0, 1, 1], [], []>} : vector<8x32xbf16>, vector<32x8xbf16>, vector<8x8xf32> -> vector<8x8xf32>
    %c2_90 = arith.constant 2 : index
    %c0_91 = arith.constant 0 : index
    %c0_92 = arith.constant 0 : index
    %120 = vector.load %arg10[%c2_90, %c0_91, %c0_92] : memref<4x1x8xf32, #tpu.memory_space<vmem>>, vector<1x1x8xf32>
    %121 = vector.shape_cast %120 : vector<1x1x8xf32> to vector<1x8xf32>
    %122 = vector.broadcast %121 : vector<1x8xf32> to vector<8x8xf32>
    %123 = arith.addf %119, %122 : vector<8x8xf32>
    %cst_93 = arith.constant 0.353553385 : f32
    %124 = vector.broadcast %cst_93 : f32 to vector<8x8xf32>
    %125 = arith.mulf %109, %124 : vector<8x8xf32>
    %126 = arith.truncf %125 : vector<8x8xf32> to vector<8x8xbf16>
    %127 = arith.truncf %116 : vector<8x8xf32> to vector<8x8xbf16>
    %c2_94 = arith.constant 2 : index
    %128 = arith.index_cast %34 : i32 to index
    %c0_95 = arith.constant 0 : index
    %129 = vector.load %arg20[%c2_94, %128, %c0_95] : memref<4x16x8xbf16, #tpu.memory_space<vmem>>, vector<1x8x8xbf16>
    %130 = vector.shape_cast %129 : vector<1x8x8xbf16> to vector<8x8xbf16>
    %131 = vector.shape_cast %127 : vector<8x8xbf16> to vector<1x8x8xbf16>
    tpu.vector_store %arg20[%c2_94, %128, %c0_95], %131 {strides = array<i32>} : memref<4x16x8xbf16, #tpu.memory_space<vmem>>, vector<1x8x8xbf16>,
    %132 = arith.truncf %123 : vector<8x8xf32> to vector<8x8xbf16>
    %c2_96 = arith.constant 2 : index
    %133 = arith.index_cast %34 : i32 to index
    %c0_97 = arith.constant 0 : index
    %134 = vector.load %arg21[%c2_96, %133, %c0_97] : memref<4x16x8xbf16, #tpu.memory_space<vmem>>, vector<1x8x8xbf16>
    %135 = vector.shape_cast %134 : vector<1x8x8xbf16> to vector<8x8xbf16>
    %136 = vector.shape_cast %132 : vector<8x8xbf16> to vector<1x8x8xbf16>
    tpu.vector_store %arg21[%c2_96, %133, %c0_97], %136 {strides = array<i32>} : memref<4x16x8xbf16, #tpu.memory_space<vmem>>, vector<1x8x8xbf16>,
    %c3 = arith.constant 3 : index
    %c0_98 = arith.constant 0 : index
    %c0_99 = arith.constant 0 : index
    %137 = vector.load %arg5[%c3, %c0_98, %c0_99] : memref<4x32x8xbf16, #tpu.memory_space<vmem>>, vector<1x32x8xbf16>
    %138 = vector.shape_cast %137 : vector<1x32x8xbf16> to vector<32x8xbf16>
    %cst_100 = arith.constant dense<0.000000e+00> : vector<8x8xf32>
    %139 = tpu.matmul %32, %138, %cst_100 {dimension_numbers = #tpu.dot_dimension_numbers<[1], [0], [0], [1], [0, 0, 1, 1], [], []>} : vector<8x32xbf16>, vector<32x8xbf16>, vector<8x8xf32> -> vector<8x8xf32>
    %c3_101 = arith.constant 3 : index
    %c0_102 = arith.constant 0 : index
    %c0_103 = arith.constant 0 : index
    %140 = vector.load %arg6[%c3_101, %c0_102, %c0_103] : memref<4x1x8xf32, #tpu.memory_space<vmem>>, vector<1x1x8xf32>
    %141 = vector.shape_cast %140 : vector<1x1x8xf32> to vector<1x8xf32>
    %142 = vector.broadcast %141 : vector<1x8xf32> to vector<8x8xf32>
    %143 = arith.addf %139, %142 : vector<8x8xf32>
    %c3_104 = arith.constant 3 : index
    %c0_105 = arith.constant 0 : index
    %c0_106 = arith.constant 0 : index
    %144 = vector.load %arg7[%c3_104, %c0_105, %c0_106] : memref<4x32x8xbf16, #tpu.memory_space<vmem>>, vector<1x32x8xbf16>
    %145 = vector.shape_cast %144 : vector<1x32x8xbf16> to vector<32x8xbf16>
    %cst_107 = arith.constant dense<0.000000e+00> : vector<8x8xf32>
    %146 = tpu.matmul %32, %145, %cst_107 {dimension_numbers = #tpu.dot_dimension_numbers<[1], [0], [0], [1], [0, 0, 1, 1], [], []>} : vector<8x32xbf16>, vector<32x8xbf16>, vector<8x8xf32> -> vector<8x8xf32>
    %c3_108 = arith.constant 3 : index
    %c0_109 = arith.constant 0 : index
    %c0_110 = arith.constant 0 : index
    %147 = vector.load %arg8[%c3_108, %c0_109, %c0_110] : memref<4x1x8xf32, #tpu.memory_space<vmem>>, vector<1x1x8xf32>
    %148 = vector.shape_cast %147 : vector<1x1x8xf32> to vector<1x8xf32>
    %149 = vector.broadcast %148 : vector<1x8xf32> to vector<8x8xf32>
    %150 = arith.addf %146, %149 : vector<8x8xf32>
    %c3_111 = arith.constant 3 : index
    %c0_112 = arith.constant 0 : index
    %c0_113 = arith.constant 0 : index
    %151 = vector.load %arg9[%c3_111, %c0_112, %c0_113] : memref<4x32x8xbf16, #tpu.memory_space<vmem>>, vector<1x32x8xbf16>
    %152 = vector.shape_cast %151 : vector<1x32x8xbf16> to vector<32x8xbf16>
    %cst_114 = arith.constant dense<0.000000e+00> : vector<8x8xf32>
    %153 = tpu.matmul %32, %152, %cst_114 {dimension_numbers = #tpu.dot_dimension_numbers<[1], [0], [0], [1], [0, 0, 1, 1], [], []>} : vector<8x32xbf16>, vector<32x8xbf16>, vector<8x8xf32> -> vector<8x8xf32>
    %c3_115 = arith.constant 3 : index
    %c0_116 = arith.constant 0 : index
    %c0_117 = arith.constant 0 : index
    %154 = vector.load %arg10[%c3_115, %c0_116, %c0_117] : memref<4x1x8xf32, #tpu.memory_space<vmem>>, vector<1x1x8xf32>
    %155 = vector.shape_cast %154 : vector<1x1x8xf32> to vector<1x8xf32>
    %156 = vector.broadcast %155 : vector<1x8xf32> to vector<8x8xf32>
    %157 = arith.addf %153, %156 : vector<8x8xf32>
    %cst_118 = arith.constant 0.353553385 : f32
    %158 = vector.broadcast %cst_118 : f32 to vector<8x8xf32>
    %159 = arith.mulf %143, %158 : vector<8x8xf32>
    %160 = arith.truncf %159 : vector<8x8xf32> to vector<8x8xbf16>
    %161 = arith.truncf %150 : vector<8x8xf32> to vector<8x8xbf16>
    %c3_119 = arith.constant 3 : index
    %162 = arith.index_cast %34 : i32 to index
    %c0_120 = arith.constant 0 : index
    %163 = vector.load %arg20[%c3_119, %162, %c0_120] : memref<4x16x8xbf16, #tpu.memory_space<vmem>>, vector<1x8x8xbf16>
    %164 = vector.shape_cast %163 : vector<1x8x8xbf16> to vector<8x8xbf16>
    %165 = vector.shape_cast %161 : vector<8x8xbf16> to vector<1x8x8xbf16>
    tpu.vector_store %arg20[%c3_119, %162, %c0_120], %165 {strides = array<i32>} : memref<4x16x8xbf16, #tpu.memory_space<vmem>>, vector<1x8x8xbf16>,
    %166 = arith.truncf %157 : vector<8x8xf32> to vector<8x8xbf16>
    %c3_121 = arith.constant 3 : index
    %167 = arith.index_cast %34 : i32 to index
    %c0_122 = arith.constant 0 : index
    %168 = vector.load %arg21[%c3_121, %167, %c0_122] : memref<4x16x8xbf16, #tpu.memory_space<vmem>>, vector<1x8x8xbf16>
    %169 = vector.shape_cast %168 : vector<1x8x8xbf16> to vector<8x8xbf16>
    %170 = vector.shape_cast %166 : vector<8x8xbf16> to vector<1x8x8xbf16>
    tpu.vector_store %arg21[%c3_121, %167, %c0_122], %170 {strides = array<i32>} : memref<4x16x8xbf16, #tpu.memory_space<vmem>>, vector<1x8x8xbf16>,
    %c0_i32 = arith.constant 0 : i32
    %c0_i32_123 = arith.constant 0 : i32
    %171 = arith.subi %arg1, %c0_i32_123 : i32
    %172 = arith.addi %c0_i32_123, %171 : i32
    %c1_i32 = arith.constant 1 : i32
    scf.for %arg25 = %c0_i32_123 to %172 step %c1_i32  : i32 {
      %c8_i32_298 = arith.constant 8 : i32
      %440 = arith.muli %arg25, %c8_i32_298 : i32
      %441 = tpu.assume_multiple %440, 8 : i32
      %c0_299 = arith.constant 0 : index
      %442 = arith.index_cast %441 : i32 to index
      %c0_300 = arith.constant 0 : index
      %443 = vector.load %arg20[%c0_299, %442, %c0_300] : memref<4x16x8xbf16, #tpu.memory_space<vmem>>, vector<1x8x8xbf16>
      %444 = vector.shape_cast %443 : vector<1x8x8xbf16> to vector<8x8xbf16>
      %c0_301 = arith.constant 0 : index
      %445 = arith.index_cast %441 : i32 to index
      %c0_302 = arith.constant 0 : index
      %446 = vector.load %arg21[%c0_301, %445, %c0_302] : memref<4x16x8xbf16, #tpu.memory_space<vmem>>, vector<1x8x8xbf16>
      %447 = vector.shape_cast %446 : vector<1x8x8xbf16> to vector<8x8xbf16>
      %cst_303 = arith.constant dense<0.000000e+00> : vector<8x8xf32>
      %448 = tpu.matmul %58, %444, %cst_303 {dimension_numbers = #tpu.dot_dimension_numbers<[1], [1], [0], [0], [0, 0, 1, 0], [], []>} : vector<8x8xbf16>, vector<8x8xbf16>, vector<8x8xf32> -> vector<8x8xf32>
      %c0_304 = arith.constant 0 : index
      %c0_305 = arith.constant 0 : index
      %c0_306 = arith.constant 0 : index
      %449 = vector.load %arg22[%c0_304, %c0_305, %c0_306] : memref<4x8x1xf32, #tpu.memory_space<vmem>>, vector<1x8x1xf32>
      %450 = vector.shape_cast %449 : vector<1x8x1xf32> to vector<8x1xf32>
      %cst_307 = arith.constant dense<0xFF800000> : vector<8xf32>
      %451 = vector.multi_reduction <maximumf>, %448, %cst_307 [1] : vector<8x8xf32> to vector<8xf32>
      %452 = vector.shape_cast %451 : vector<8xf32> to vector<8x1xf32>
      %453 = arith.maximumf %450, %452 : vector<8x1xf32>
      %454 = arith.subf %450, %453 : vector<8x1xf32>
      %455 = math.exp %454 : vector<8x1xf32>
      %456 = vector.broadcast %453 : vector<8x1xf32> to vector<8x8xf32>
      %457 = arith.subf %448, %456 : vector<8x8xf32>
      %458 = math.exp %457 : vector<8x8xf32>
      %c0_308 = arith.constant 0 : index
      %c0_309 = arith.constant 0 : index
      %c0_310 = arith.constant 0 : index
      %459 = vector.load %arg23[%c0_308, %c0_309, %c0_310] : memref<4x8x1xf32, #tpu.memory_space<vmem>>, vector<1x8x1xf32>
      %460 = vector.shape_cast %459 : vector<1x8x1xf32> to vector<8x1xf32>
      %461 = arith.mulf %455, %460 : vector<8x1xf32>
      %cst_311 = arith.constant dense<0.000000e+00> : vector<8xf32>
      %462 = vector.multi_reduction <add>, %458, %cst_311 [1] : vector<8x8xf32> to vector<8xf32>
      %463 = vector.shape_cast %462 : vector<8xf32> to vector<8x1xf32>
      %464 = arith.addf %461, %463 : vector<8x1xf32>
      %c0_312 = arith.constant 0 : index
      %c0_313 = arith.constant 0 : index
      %c0_314 = arith.constant 0 : index
      %465 = vector.load %arg23[%c0_312, %c0_313, %c0_314] : memref<4x8x1xf32, #tpu.memory_space<vmem>>, vector<1x8x1xf32>
      %466 = vector.shape_cast %465 : vector<1x8x1xf32> to vector<8x1xf32>
      %467 = vector.shape_cast %464 : vector<8x1xf32> to vector<1x8x1xf32>
      tpu.vector_store %arg23[%c0_312, %c0_313, %c0_314], %467 {strides = array<i32>} : memref<4x8x1xf32, #tpu.memory_space<vmem>>, vector<1x8x1xf32>,
      %c0_315 = arith.constant 0 : index
      %c0_316 = arith.constant 0 : index
      %c0_317 = arith.constant 0 : index
      %468 = vector.load %arg24[%c0_315, %c0_316, %c0_317] : memref<4x8x8xf32, #tpu.memory_space<vmem>>, vector<1x8x8xf32>
      %469 = vector.shape_cast %468 : vector<1x8x8xf32> to vector<8x8xf32>
      %470 = vector.broadcast %455 : vector<8x1xf32> to vector<8x8xf32>
      %471 = arith.mulf %470, %469 : vector<8x8xf32>
      %472 = arith.truncf %458 : vector<8x8xf32> to vector<8x8xbf16>
      %cst_318 = arith.constant dense<0.000000e+00> : vector<8x8xf32>
      %473 = tpu.matmul %472, %447, %cst_318 {dimension_numbers = #tpu.dot_dimension_numbers<[1], [0], [0], [1], [0, 0, 1, 1], [], []>} : vector<8x8xbf16>, vector<8x8xbf16>, vector<8x8xf32> -> vector<8x8xf32>
      %474 = arith.addf %471, %473 : vector<8x8xf32>
      %c0_319 = arith.constant 0 : index
      %c0_320 = arith.constant 0 : index
      %c0_321 = arith.constant 0 : index
      %475 = vector.load %arg24[%c0_319, %c0_320, %c0_321] : memref<4x8x8xf32, #tpu.memory_space<vmem>>, vector<1x8x8xf32>
      %476 = vector.shape_cast %475 : vector<1x8x8xf32> to vector<8x8xf32>
      %477 = vector.shape_cast %474 : vector<8x8xf32> to vector<1x8x8xf32>
      tpu.vector_store %arg24[%c0_319, %c0_320, %c0_321], %477 {strides = array<i32>} : memref<4x8x8xf32, #tpu.memory_space<vmem>>, vector<1x8x8xf32>,
      %c0_322 = arith.constant 0 : index
      %c0_323 = arith.constant 0 : index
      %c0_324 = arith.constant 0 : index
      %478 = vector.load %arg22[%c0_322, %c0_323, %c0_324] : memref<4x8x1xf32, #tpu.memory_space<vmem>>, vector<1x8x1xf32>
      %479 = vector.shape_cast %478 : vector<1x8x1xf32> to vector<8x1xf32>
      %480 = vector.shape_cast %453 : vector<8x1xf32> to vector<1x8x1xf32>
      tpu.vector_store %arg22[%c0_322, %c0_323, %c0_324], %480 {strides = array<i32>} : memref<4x8x1xf32, #tpu.memory_space<vmem>>, vector<1x8x1xf32>,
      %c1_325 = arith.constant 1 : index
      %481 = arith.index_cast %441 : i32 to index
      %c0_326 = arith.constant 0 : index
      %482 = vector.load %arg20[%c1_325, %481, %c0_326] : memref<4x16x8xbf16, #tpu.memory_space<vmem>>, vector<1x8x8xbf16>
      %483 = vector.shape_cast %482 : vector<1x8x8xbf16> to vector<8x8xbf16>
      %c1_327 = arith.constant 1 : index
      %484 = arith.index_cast %441 : i32 to index
      %c0_328 = arith.constant 0 : index
      %485 = vector.load %arg21[%c1_327, %484, %c0_328] : memref<4x16x8xbf16, #tpu.memory_space<vmem>>, vector<1x8x8xbf16>
      %486 = vector.shape_cast %485 : vector<1x8x8xbf16> to vector<8x8xbf16>
      %cst_329 = arith.constant dense<0.000000e+00> : vector<8x8xf32>
      %487 = tpu.matmul %92, %483, %cst_329 {dimension_numbers = #tpu.dot_dimension_numbers<[1], [1], [0], [0], [0, 0, 1, 0], [], []>} : vector<8x8xbf16>, vector<8x8xbf16>, vector<8x8xf32> -> vector<8x8xf32>
      %c1_330 = arith.constant 1 : index
      %c0_331 = arith.constant 0 : index
      %c0_332 = arith.constant 0 : index
      %488 = vector.load %arg22[%c1_330, %c0_331, %c0_332] : memref<4x8x1xf32, #tpu.memory_space<vmem>>, vector<1x8x1xf32>
      %489 = vector.shape_cast %488 : vector<1x8x1xf32> to vector<8x1xf32>
      %cst_333 = arith.constant dense<0xFF800000> : vector<8xf32>
      %490 = vector.multi_reduction <maximumf>, %487, %cst_333 [1] : vector<8x8xf32> to vector<8xf32>
      %491 = vector.shape_cast %490 : vector<8xf32> to vector<8x1xf32>
      %492 = arith.maximumf %489, %491 : vector<8x1xf32>
      %493 = arith.subf %489, %492 : vector<8x1xf32>
      %494 = math.exp %493 : vector<8x1xf32>
      %495 = vector.broadcast %492 : vector<8x1xf32> to vector<8x8xf32>
      %496 = arith.subf %487, %495 : vector<8x8xf32>
      %497 = math.exp %496 : vector<8x8xf32>
      %c1_334 = arith.constant 1 : index
      %c0_335 = arith.constant 0 : index
      %c0_336 = arith.constant 0 : index
      %498 = vector.load %arg23[%c1_334, %c0_335, %c0_336] : memref<4x8x1xf32, #tpu.memory_space<vmem>>, vector<1x8x1xf32>
      %499 = vector.shape_cast %498 : vector<1x8x1xf32> to vector<8x1xf32>
      %500 = arith.mulf %494, %499 : vector<8x1xf32>
      %cst_337 = arith.constant dense<0.000000e+00> : vector<8xf32>
      %501 = vector.multi_reduction <add>, %497, %cst_337 [1] : vector<8x8xf32> to vector<8xf32>
      %502 = vector.shape_cast %501 : vector<8xf32> to vector<8x1xf32>
      %503 = arith.addf %500, %502 : vector<8x1xf32>
      %c1_338 = arith.constant 1 : index
      %c0_339 = arith.constant 0 : index
      %c0_340 = arith.constant 0 : index
      %504 = vector.load %arg23[%c1_338, %c0_339, %c0_340] : memref<4x8x1xf32, #tpu.memory_space<vmem>>, vector<1x8x1xf32>
      %505 = vector.shape_cast %504 : vector<1x8x1xf32> to vector<8x1xf32>
      %506 = vector.shape_cast %503 : vector<8x1xf32> to vector<1x8x1xf32>
      tpu.vector_store %arg23[%c1_338, %c0_339, %c0_340], %506 {strides = array<i32>} : memref<4x8x1xf32, #tpu.memory_space<vmem>>, vector<1x8x1xf32>,
      %c1_341 = arith.constant 1 : index
      %c0_342 = arith.constant 0 : index
      %c0_343 = arith.constant 0 : index
      %507 = vector.load %arg24[%c1_341, %c0_342, %c0_343] : memref<4x8x8xf32, #tpu.memory_space<vmem>>, vector<1x8x8xf32>
      %508 = vector.shape_cast %507 : vector<1x8x8xf32> to vector<8x8xf32>
      %509 = vector.broadcast %494 : vector<8x1xf32> to vector<8x8xf32>
      %510 = arith.mulf %509, %508 : vector<8x8xf32>
      %511 = arith.truncf %497 : vector<8x8xf32> to vector<8x8xbf16>
      %cst_344 = arith.constant dense<0.000000e+00> : vector<8x8xf32>
      %512 = tpu.matmul %511, %486, %cst_344 {dimension_numbers = #tpu.dot_dimension_numbers<[1], [0], [0], [1], [0, 0, 1, 1], [], []>} : vector<8x8xbf16>, vector<8x8xbf16>, vector<8x8xf32> -> vector<8x8xf32>
      %513 = arith.addf %510, %512 : vector<8x8xf32>
      %c1_345 = arith.constant 1 : index
      %c0_346 = arith.constant 0 : index
      %c0_347 = arith.constant 0 : index
      %514 = vector.load %arg24[%c1_345, %c0_346, %c0_347] : memref<4x8x8xf32, #tpu.memory_space<vmem>>, vector<1x8x8xf32>
      %515 = vector.shape_cast %514 : vector<1x8x8xf32> to vector<8x8xf32>
      %516 = vector.shape_cast %513 : vector<8x8xf32> to vector<1x8x8xf32>
      tpu.vector_store %arg24[%c1_345, %c0_346, %c0_347], %516 {strides = array<i32>} : memref<4x8x8xf32, #tpu.memory_space<vmem>>, vector<1x8x8xf32>,
      %c1_348 = arith.constant 1 : index
      %c0_349 = arith.constant 0 : index
      %c0_350 = arith.constant 0 : index
      %517 = vector.load %arg22[%c1_348, %c0_349, %c0_350] : memref<4x8x1xf32, #tpu.memory_space<vmem>>, vector<1x8x1xf32>
      %518 = vector.shape_cast %517 : vector<1x8x1xf32> to vector<8x1xf32>
      %519 = vector.shape_cast %492 : vector<8x1xf32> to vector<1x8x1xf32>
      tpu.vector_store %arg22[%c1_348, %c0_349, %c0_350], %519 {strides = array<i32>} : memref<4x8x1xf32, #tpu.memory_space<vmem>>, vector<1x8x1xf32>,
      %c2_351 = arith.constant 2 : index
      %520 = arith.index_cast %441 : i32 to index
      %c0_352 = arith.constant 0 : index
      %521 = vector.load %arg20[%c2_351, %520, %c0_352] : memref<4x16x8xbf16, #tpu.memory_space<vmem>>, vector<1x8x8xbf16>
      %522 = vector.shape_cast %521 : vector<1x8x8xbf16> to vector<8x8xbf16>
      %c2_353 = arith.constant 2 : index
      %523 = arith.index_cast %441 : i32 to index
      %c0_354 = arith.constant 0 : index
      %524 = vector.load %arg21[%c2_353, %523, %c0_354] : memref<4x16x8xbf16, #tpu.memory_space<vmem>>, vector<1x8x8xbf16>
      %525 = vector.shape_cast %524 : vector<1x8x8xbf16> to vector<8x8xbf16>
      %cst_355 = arith.constant dense<0.000000e+00> : vector<8x8xf32>
      %526 = tpu.matmul %126, %522, %cst_355 {dimension_numbers = #tpu.dot_dimension_numbers<[1], [1], [0], [0], [0, 0, 1, 0], [], []>} : vector<8x8xbf16>, vector<8x8xbf16>, vector<8x8xf32> -> vector<8x8xf32>
      %c2_356 = arith.constant 2 : index
      %c0_357 = arith.constant 0 : index
      %c0_358 = arith.constant 0 : index
      %527 = vector.load %arg22[%c2_356, %c0_357, %c0_358] : memref<4x8x1xf32, #tpu.memory_space<vmem>>, vector<1x8x1xf32>
      %528 = vector.shape_cast %527 : vector<1x8x1xf32> to vector<8x1xf32>
      %cst_359 = arith.constant dense<0xFF800000> : vector<8xf32>
      %529 = vector.multi_reduction <maximumf>, %526, %cst_359 [1] : vector<8x8xf32> to vector<8xf32>
      %530 = vector.shape_cast %529 : vector<8xf32> to vector<8x1xf32>
      %531 = arith.maximumf %528, %530 : vector<8x1xf32>
      %532 = arith.subf %528, %531 : vector<8x1xf32>
      %533 = math.exp %532 : vector<8x1xf32>
      %534 = vector.broadcast %531 : vector<8x1xf32> to vector<8x8xf32>
      %535 = arith.subf %526, %534 : vector<8x8xf32>
      %536 = math.exp %535 : vector<8x8xf32>
      %c2_360 = arith.constant 2 : index
      %c0_361 = arith.constant 0 : index
      %c0_362 = arith.constant 0 : index
      %537 = vector.load %arg23[%c2_360, %c0_361, %c0_362] : memref<4x8x1xf32, #tpu.memory_space<vmem>>, vector<1x8x1xf32>
      %538 = vector.shape_cast %537 : vector<1x8x1xf32> to vector<8x1xf32>
      %539 = arith.mulf %533, %538 : vector<8x1xf32>
      %cst_363 = arith.constant dense<0.000000e+00> : vector<8xf32>
      %540 = vector.multi_reduction <add>, %536, %cst_363 [1] : vector<8x8xf32> to vector<8xf32>
      %541 = vector.shape_cast %540 : vector<8xf32> to vector<8x1xf32>
      %542 = arith.addf %539, %541 : vector<8x1xf32>
      %c2_364 = arith.constant 2 : index
      %c0_365 = arith.constant 0 : index
      %c0_366 = arith.constant 0 : index
      %543 = vector.load %arg23[%c2_364, %c0_365, %c0_366] : memref<4x8x1xf32, #tpu.memory_space<vmem>>, vector<1x8x1xf32>
      %544 = vector.shape_cast %543 : vector<1x8x1xf32> to vector<8x1xf32>
      %545 = vector.shape_cast %542 : vector<8x1xf32> to vector<1x8x1xf32>
      tpu.vector_store %arg23[%c2_364, %c0_365, %c0_366], %545 {strides = array<i32>} : memref<4x8x1xf32, #tpu.memory_space<vmem>>, vector<1x8x1xf32>,
      %c2_367 = arith.constant 2 : index
      %c0_368 = arith.constant 0 : index
      %c0_369 = arith.constant 0 : index
      %546 = vector.load %arg24[%c2_367, %c0_368, %c0_369] : memref<4x8x8xf32, #tpu.memory_space<vmem>>, vector<1x8x8xf32>
      %547 = vector.shape_cast %546 : vector<1x8x8xf32> to vector<8x8xf32>
      %548 = vector.broadcast %533 : vector<8x1xf32> to vector<8x8xf32>
      %549 = arith.mulf %548, %547 : vector<8x8xf32>
      %550 = arith.truncf %536 : vector<8x8xf32> to vector<8x8xbf16>
      %cst_370 = arith.constant dense<0.000000e+00> : vector<8x8xf32>
      %551 = tpu.matmul %550, %525, %cst_370 {dimension_numbers = #tpu.dot_dimension_numbers<[1], [0], [0], [1], [0, 0, 1, 1], [], []>} : vector<8x8xbf16>, vector<8x8xbf16>, vector<8x8xf32> -> vector<8x8xf32>
      %552 = arith.addf %549, %551 : vector<8x8xf32>
      %c2_371 = arith.constant 2 : index
      %c0_372 = arith.constant 0 : index
      %c0_373 = arith.constant 0 : index
      %553 = vector.load %arg24[%c2_371, %c0_372, %c0_373] : memref<4x8x8xf32, #tpu.memory_space<vmem>>, vector<1x8x8xf32>
      %554 = vector.shape_cast %553 : vector<1x8x8xf32> to vector<8x8xf32>
      %555 = vector.shape_cast %552 : vector<8x8xf32> to vector<1x8x8xf32>
      tpu.vector_store %arg24[%c2_371, %c0_372, %c0_373], %555 {strides = array<i32>} : memref<4x8x8xf32, #tpu.memory_space<vmem>>, vector<1x8x8xf32>,
      %c2_374 = arith.constant 2 : index
      %c0_375 = arith.constant 0 : index
      %c0_376 = arith.constant 0 : index
      %556 = vector.load %arg22[%c2_374, %c0_375, %c0_376] : memref<4x8x1xf32, #tpu.memory_space<vmem>>, vector<1x8x1xf32>
      %557 = vector.shape_cast %556 : vector<1x8x1xf32> to vector<8x1xf32>
      %558 = vector.shape_cast %531 : vector<8x1xf32> to vector<1x8x1xf32>
      tpu.vector_store %arg22[%c2_374, %c0_375, %c0_376], %558 {strides = array<i32>} : memref<4x8x1xf32, #tpu.memory_space<vmem>>, vector<1x8x1xf32>,
      %c3_377 = arith.constant 3 : index
      %559 = arith.index_cast %441 : i32 to index
      %c0_378 = arith.constant 0 : index
      %560 = vector.load %arg20[%c3_377, %559, %c0_378] : memref<4x16x8xbf16, #tpu.memory_space<vmem>>, vector<1x8x8xbf16>
      %561 = vector.shape_cast %560 : vector<1x8x8xbf16> to vector<8x8xbf16>
      %c3_379 = arith.constant 3 : index
      %562 = arith.index_cast %441 : i32 to index
      %c0_380 = arith.constant 0 : index
      %563 = vector.load %arg21[%c3_379, %562, %c0_380] : memref<4x16x8xbf16, #tpu.memory_space<vmem>>, vector<1x8x8xbf16>
      %564 = vector.shape_cast %563 : vector<1x8x8xbf16> to vector<8x8xbf16>
      %cst_381 = arith.constant dense<0.000000e+00> : vector<8x8xf32>
      %565 = tpu.matmul %160, %561, %cst_381 {dimension_numbers = #tpu.dot_dimension_numbers<[1], [1], [0], [0], [0, 0, 1, 0], [], []>} : vector<8x8xbf16>, vector<8x8xbf16>, vector<8x8xf32> -> vector<8x8xf32>
      %c3_382 = arith.constant 3 : index
      %c0_383 = arith.constant 0 : index
      %c0_384 = arith.constant 0 : index
      %566 = vector.load %arg22[%c3_382, %c0_383, %c0_384] : memref<4x8x1xf32, #tpu.memory_space<vmem>>, vector<1x8x1xf32>
      %567 = vector.shape_cast %566 : vector<1x8x1xf32> to vector<8x1xf32>
      %cst_385 = arith.constant dense<0xFF800000> : vector<8xf32>
      %568 = vector.multi_reduction <maximumf>, %565, %cst_385 [1] : vector<8x8xf32> to vector<8xf32>
      %569 = vector.shape_cast %568 : vector<8xf32> to vector<8x1xf32>
      %570 = arith.maximumf %567, %569 : vector<8x1xf32>
      %571 = arith.subf %567, %570 : vector<8x1xf32>
      %572 = math.exp %571 : vector<8x1xf32>
      %573 = vector.broadcast %570 : vector<8x1xf32> to vector<8x8xf32>
      %574 = arith.subf %565, %573 : vector<8x8xf32>
      %575 = math.exp %574 : vector<8x8xf32>
      %c3_386 = arith.constant 3 : index
      %c0_387 = arith.constant 0 : index
      %c0_388 = arith.constant 0 : index
      %576 = vector.load %arg23[%c3_386, %c0_387, %c0_388] : memref<4x8x1xf32, #tpu.memory_space<vmem>>, vector<1x8x1xf32>
      %577 = vector.shape_cast %576 : vector<1x8x1xf32> to vector<8x1xf32>
      %578 = arith.mulf %572, %577 : vector<8x1xf32>
      %cst_389 = arith.constant dense<0.000000e+00> : vector<8xf32>
      %579 = vector.multi_reduction <add>, %575, %cst_389 [1] : vector<8x8xf32> to vector<8xf32>
      %580 = vector.shape_cast %579 : vector<8xf32> to vector<8x1xf32>
      %581 = arith.addf %578, %580 : vector<8x1xf32>
      %c3_390 = arith.constant 3 : index
      %c0_391 = arith.constant 0 : index
      %c0_392 = arith.constant 0 : index
      %582 = vector.load %arg23[%c3_390, %c0_391, %c0_392] : memref<4x8x1xf32, #tpu.memory_space<vmem>>, vector<1x8x1xf32>
      %583 = vector.shape_cast %582 : vector<1x8x1xf32> to vector<8x1xf32>
      %584 = vector.shape_cast %581 : vector<8x1xf32> to vector<1x8x1xf32>
      tpu.vector_store %arg23[%c3_390, %c0_391, %c0_392], %584 {strides = array<i32>} : memref<4x8x1xf32, #tpu.memory_space<vmem>>, vector<1x8x1xf32>,
      %c3_393 = arith.constant 3 : index
      %c0_394 = arith.constant 0 : index
      %c0_395 = arith.constant 0 : index
      %585 = vector.load %arg24[%c3_393, %c0_394, %c0_395] : memref<4x8x8xf32, #tpu.memory_space<vmem>>, vector<1x8x8xf32>
      %586 = vector.shape_cast %585 : vector<1x8x8xf32> to vector<8x8xf32>
      %587 = vector.broadcast %572 : vector<8x1xf32> to vector<8x8xf32>
      %588 = arith.mulf %587, %586 : vector<8x8xf32>
      %589 = arith.truncf %575 : vector<8x8xf32> to vector<8x8xbf16>
      %cst_396 = arith.constant dense<0.000000e+00> : vector<8x8xf32>
      %590 = tpu.matmul %589, %564, %cst_396 {dimension_numbers = #tpu.dot_dimension_numbers<[1], [0], [0], [1], [0, 0, 1, 1], [], []>} : vector<8x8xbf16>, vector<8x8xbf16>, vector<8x8xf32> -> vector<8x8xf32>
      %591 = arith.addf %588, %590 : vector<8x8xf32>
      %c3_397 = arith.constant 3 : index
      %c0_398 = arith.constant 0 : index
      %c0_399 = arith.constant 0 : index
      %592 = vector.load %arg24[%c3_397, %c0_398, %c0_399] : memref<4x8x8xf32, #tpu.memory_space<vmem>>, vector<1x8x8xf32>
      %593 = vector.shape_cast %592 : vector<1x8x8xf32> to vector<8x8xf32>
      %594 = vector.shape_cast %591 : vector<8x8xf32> to vector<1x8x8xf32>
      tpu.vector_store %arg24[%c3_397, %c0_398, %c0_399], %594 {strides = array<i32>} : memref<4x8x8xf32, #tpu.memory_space<vmem>>, vector<1x8x8xf32>,
      %c3_400 = arith.constant 3 : index
      %c0_401 = arith.constant 0 : index
      %c0_402 = arith.constant 0 : index
      %595 = vector.load %arg22[%c3_400, %c0_401, %c0_402] : memref<4x8x1xf32, #tpu.memory_space<vmem>>, vector<1x8x1xf32>
      %596 = vector.shape_cast %595 : vector<1x8x1xf32> to vector<8x1xf32>
      %597 = vector.shape_cast %570 : vector<8x1xf32> to vector<1x8x1xf32>
      tpu.vector_store %arg22[%c3_400, %c0_401, %c0_402], %597 {strides = array<i32>} : memref<4x8x1xf32, #tpu.memory_space<vmem>>, vector<1x8x1xf32>,
    }
    %173 = tpu.iota {dimensions = array<i32: 0>} : vector<8x8xi32>
    %174 = tpu.iota {dimensions = array<i32: 1>} : vector<8x8xi32>
    %175 = arith.cmpi sge, %173, %174 : vector<8x8xi32>
    %cst_124 = arith.constant 0.000000e+00 : f32
    %cst_125 = arith.constant -1.000000e+30 : f32
    %176 = vector.broadcast %cst_124 : f32 to vector<8x8xf32>
    %177 = vector.broadcast %cst_125 : f32 to vector<8x8xf32>
    %178 = arith.select %175, %176, %177 : vector<8x8xi1>, vector<8x8xf32>
    %c0_126 = arith.constant 0 : index
    %179 = arith.index_cast %34 : i32 to index
    %c0_127 = arith.constant 0 : index
    %180 = vector.load %arg20[%c0_126, %179, %c0_127] : memref<4x16x8xbf16, #tpu.memory_space<vmem>>, vector<1x8x8xbf16>
    %181 = vector.shape_cast %180 : vector<1x8x8xbf16> to vector<8x8xbf16>
    %c0_128 = arith.constant 0 : index
    %182 = arith.index_cast %34 : i32 to index
    %c0_129 = arith.constant 0 : index
    %183 = vector.load %arg21[%c0_128, %182, %c0_129] : memref<4x16x8xbf16, #tpu.memory_space<vmem>>, vector<1x8x8xbf16>
    %184 = vector.shape_cast %183 : vector<1x8x8xbf16> to vector<8x8xbf16>
    %cst_130 = arith.constant dense<0.000000e+00> : vector<8x8xf32>
    %185 = tpu.matmul %58, %181, %cst_130 {dimension_numbers = #tpu.dot_dimension_numbers<[1], [1], [0], [0], [0, 0, 1, 0], [], []>} : vector<8x8xbf16>, vector<8x8xbf16>, vector<8x8xf32> -> vector<8x8xf32>
    %186 = arith.addf %185, %178 : vector<8x8xf32>
    %c0_131 = arith.constant 0 : index
    %c0_132 = arith.constant 0 : index
    %c0_133 = arith.constant 0 : index
    %187 = vector.load %arg22[%c0_131, %c0_132, %c0_133] : memref<4x8x1xf32, #tpu.memory_space<vmem>>, vector<1x8x1xf32>
    %188 = vector.shape_cast %187 : vector<1x8x1xf32> to vector<8x1xf32>
    %cst_134 = arith.constant dense<0xFF800000> : vector<8xf32>
    %189 = vector.multi_reduction <maximumf>, %186, %cst_134 [1] : vector<8x8xf32> to vector<8xf32>
    %190 = vector.shape_cast %189 : vector<8xf32> to vector<8x1xf32>
    %191 = arith.maximumf %188, %190 : vector<8x1xf32>
    %192 = arith.subf %188, %191 : vector<8x1xf32>
    %193 = math.exp %192 : vector<8x1xf32>
    %194 = vector.broadcast %191 : vector<8x1xf32> to vector<8x8xf32>
    %195 = arith.subf %186, %194 : vector<8x8xf32>
    %196 = math.exp %195 : vector<8x8xf32>
    %c0_135 = arith.constant 0 : index
    %c0_136 = arith.constant 0 : index
    %c0_137 = arith.constant 0 : index
    %197 = vector.load %arg23[%c0_135, %c0_136, %c0_137] : memref<4x8x1xf32, #tpu.memory_space<vmem>>, vector<1x8x1xf32>
    %198 = vector.shape_cast %197 : vector<1x8x1xf32> to vector<8x1xf32>
    %199 = arith.mulf %193, %198 : vector<8x1xf32>
    %cst_138 = arith.constant dense<0.000000e+00> : vector<8xf32>
    %200 = vector.multi_reduction <add>, %196, %cst_138 [1] : vector<8x8xf32> to vector<8xf32>
    %201 = vector.shape_cast %200 : vector<8xf32> to vector<8x1xf32>
    %202 = arith.addf %199, %201 : vector<8x1xf32>
    %c0_139 = arith.constant 0 : index
    %c0_140 = arith.constant 0 : index
    %c0_141 = arith.constant 0 : index
    %203 = vector.load %arg23[%c0_139, %c0_140, %c0_141] : memref<4x8x1xf32, #tpu.memory_space<vmem>>, vector<1x8x1xf32>
    %204 = vector.shape_cast %203 : vector<1x8x1xf32> to vector<8x1xf32>
    %205 = vector.shape_cast %202 : vector<8x1xf32> to vector<1x8x1xf32>
    tpu.vector_store %arg23[%c0_139, %c0_140, %c0_141], %205 {strides = array<i32>} : memref<4x8x1xf32, #tpu.memory_space<vmem>>, vector<1x8x1xf32>,
    %c0_142 = arith.constant 0 : index
    %c0_143 = arith.constant 0 : index
    %c0_144 = arith.constant 0 : index
    %206 = vector.load %arg24[%c0_142, %c0_143, %c0_144] : memref<4x8x8xf32, #tpu.memory_space<vmem>>, vector<1x8x8xf32>
    %207 = vector.shape_cast %206 : vector<1x8x8xf32> to vector<8x8xf32>
    %208 = vector.broadcast %193 : vector<8x1xf32> to vector<8x8xf32>
    %209 = arith.mulf %208, %207 : vector<8x8xf32>
    %210 = arith.truncf %196 : vector<8x8xf32> to vector<8x8xbf16>
    %cst_145 = arith.constant dense<0.000000e+00> : vector<8x8xf32>
    %211 = tpu.matmul %210, %184, %cst_145 {dimension_numbers = #tpu.dot_dimension_numbers<[1], [0], [0], [1], [0, 0, 1, 1], [], []>} : vector<8x8xbf16>, vector<8x8xbf16>, vector<8x8xf32> -> vector<8x8xf32>
    %212 = arith.addf %209, %211 : vector<8x8xf32>
    %c0_146 = arith.constant 0 : index
    %c0_147 = arith.constant 0 : index
    %c0_148 = arith.constant 0 : index
    %213 = vector.load %arg24[%c0_146, %c0_147, %c0_148] : memref<4x8x8xf32, #tpu.memory_space<vmem>>, vector<1x8x8xf32>
    %214 = vector.shape_cast %213 : vector<1x8x8xf32> to vector<8x8xf32>
    %215 = vector.shape_cast %212 : vector<8x8xf32> to vector<1x8x8xf32>
    tpu.vector_store %arg24[%c0_146, %c0_147, %c0_148], %215 {strides = array<i32>} : memref<4x8x8xf32, #tpu.memory_space<vmem>>, vector<1x8x8xf32>,
    %c0_149 = arith.constant 0 : index
    %c0_150 = arith.constant 0 : index
    %c0_151 = arith.constant 0 : index
    %216 = vector.load %arg22[%c0_149, %c0_150, %c0_151] : memref<4x8x1xf32, #tpu.memory_space<vmem>>, vector<1x8x1xf32>
    %217 = vector.shape_cast %216 : vector<1x8x1xf32> to vector<8x1xf32>
    %218 = vector.shape_cast %191 : vector<8x1xf32> to vector<1x8x1xf32>
    tpu.vector_store %arg22[%c0_149, %c0_150, %c0_151], %218 {strides = array<i32>} : memref<4x8x1xf32, #tpu.memory_space<vmem>>, vector<1x8x1xf32>,
    %c1_152 = arith.constant 1 : index
    %219 = arith.index_cast %34 : i32 to index
    %c0_153 = arith.constant 0 : index
    %220 = vector.load %arg20[%c1_152, %219, %c0_153] : memref<4x16x8xbf16, #tpu.memory_space<vmem>>, vector<1x8x8xbf16>
    %221 = vector.shape_cast %220 : vector<1x8x8xbf16> to vector<8x8xbf16>
    %c1_154 = arith.constant 1 : index
    %222 = arith.index_cast %34 : i32 to index
    %c0_155 = arith.constant 0 : index
    %223 = vector.load %arg21[%c1_154, %222, %c0_155] : memref<4x16x8xbf16, #tpu.memory_space<vmem>>, vector<1x8x8xbf16>
    %224 = vector.shape_cast %223 : vector<1x8x8xbf16> to vector<8x8xbf16>
    %cst_156 = arith.constant dense<0.000000e+00> : vector<8x8xf32>
    %225 = tpu.matmul %92, %221, %cst_156 {dimension_numbers = #tpu.dot_dimension_numbers<[1], [1], [0], [0], [0, 0, 1, 0], [], []>} : vector<8x8xbf16>, vector<8x8xbf16>, vector<8x8xf32> -> vector<8x8xf32>
    %226 = arith.addf %225, %178 : vector<8x8xf32>
    %c1_157 = arith.constant 1 : index
    %c0_158 = arith.constant 0 : index
    %c0_159 = arith.constant 0 : index
    %227 = vector.load %arg22[%c1_157, %c0_158, %c0_159] : memref<4x8x1xf32, #tpu.memory_space<vmem>>, vector<1x8x1xf32>
    %228 = vector.shape_cast %227 : vector<1x8x1xf32> to vector<8x1xf32>
    %cst_160 = arith.constant dense<0xFF800000> : vector<8xf32>
    %229 = vector.multi_reduction <maximumf>, %226, %cst_160 [1] : vector<8x8xf32> to vector<8xf32>
    %230 = vector.shape_cast %229 : vector<8xf32> to vector<8x1xf32>
    %231 = arith.maximumf %228, %230 : vector<8x1xf32>
    %232 = arith.subf %228, %231 : vector<8x1xf32>
    %233 = math.exp %232 : vector<8x1xf32>
    %234 = vector.broadcast %231 : vector<8x1xf32> to vector<8x8xf32>
    %235 = arith.subf %226, %234 : vector<8x8xf32>
    %236 = math.exp %235 : vector<8x8xf32>
    %c1_161 = arith.constant 1 : index
    %c0_162 = arith.constant 0 : index
    %c0_163 = arith.constant 0 : index
    %237 = vector.load %arg23[%c1_161, %c0_162, %c0_163] : memref<4x8x1xf32, #tpu.memory_space<vmem>>, vector<1x8x1xf32>
    %238 = vector.shape_cast %237 : vector<1x8x1xf32> to vector<8x1xf32>
    %239 = arith.mulf %233, %238 : vector<8x1xf32>
    %cst_164 = arith.constant dense<0.000000e+00> : vector<8xf32>
    %240 = vector.multi_reduction <add>, %236, %cst_164 [1] : vector<8x8xf32> to vector<8xf32>
    %241 = vector.shape_cast %240 : vector<8xf32> to vector<8x1xf32>
    %242 = arith.addf %239, %241 : vector<8x1xf32>
    %c1_165 = arith.constant 1 : index
    %c0_166 = arith.constant 0 : index
    %c0_167 = arith.constant 0 : index
    %243 = vector.load %arg23[%c1_165, %c0_166, %c0_167] : memref<4x8x1xf32, #tpu.memory_space<vmem>>, vector<1x8x1xf32>
    %244 = vector.shape_cast %243 : vector<1x8x1xf32> to vector<8x1xf32>
    %245 = vector.shape_cast %242 : vector<8x1xf32> to vector<1x8x1xf32>
    tpu.vector_store %arg23[%c1_165, %c0_166, %c0_167], %245 {strides = array<i32>} : memref<4x8x1xf32, #tpu.memory_space<vmem>>, vector<1x8x1xf32>,
    %c1_168 = arith.constant 1 : index
    %c0_169 = arith.constant 0 : index
    %c0_170 = arith.constant 0 : index
    %246 = vector.load %arg24[%c1_168, %c0_169, %c0_170] : memref<4x8x8xf32, #tpu.memory_space<vmem>>, vector<1x8x8xf32>
    %247 = vector.shape_cast %246 : vector<1x8x8xf32> to vector<8x8xf32>
    %248 = vector.broadcast %233 : vector<8x1xf32> to vector<8x8xf32>
    %249 = arith.mulf %248, %247 : vector<8x8xf32>
    %250 = arith.truncf %236 : vector<8x8xf32> to vector<8x8xbf16>
    %cst_171 = arith.constant dense<0.000000e+00> : vector<8x8xf32>
    %251 = tpu.matmul %250, %224, %cst_171 {dimension_numbers = #tpu.dot_dimension_numbers<[1], [0], [0], [1], [0, 0, 1, 1], [], []>} : vector<8x8xbf16>, vector<8x8xbf16>, vector<8x8xf32> -> vector<8x8xf32>
    %252 = arith.addf %249, %251 : vector<8x8xf32>
    %c1_172 = arith.constant 1 : index
    %c0_173 = arith.constant 0 : index
    %c0_174 = arith.constant 0 : index
    %253 = vector.load %arg24[%c1_172, %c0_173, %c0_174] : memref<4x8x8xf32, #tpu.memory_space<vmem>>, vector<1x8x8xf32>
    %254 = vector.shape_cast %253 : vector<1x8x8xf32> to vector<8x8xf32>
    %255 = vector.shape_cast %252 : vector<8x8xf32> to vector<1x8x8xf32>
    tpu.vector_store %arg24[%c1_172, %c0_173, %c0_174], %255 {strides = array<i32>} : memref<4x8x8xf32, #tpu.memory_space<vmem>>, vector<1x8x8xf32>,
    %c1_175 = arith.constant 1 : index
    %c0_176 = arith.constant 0 : index
    %c0_177 = arith.constant 0 : index
    %256 = vector.load %arg22[%c1_175, %c0_176, %c0_177] : memref<4x8x1xf32, #tpu.memory_space<vmem>>, vector<1x8x1xf32>
    %257 = vector.shape_cast %256 : vector<1x8x1xf32> to vector<8x1xf32>
    %258 = vector.shape_cast %231 : vector<8x1xf32> to vector<1x8x1xf32>
    tpu.vector_store %arg22[%c1_175, %c0_176, %c0_177], %258 {strides = array<i32>} : memref<4x8x1xf32, #tpu.memory_space<vmem>>, vector<1x8x1xf32>,
    %c2_178 = arith.constant 2 : index
    %259 = arith.index_cast %34 : i32 to index
    %c0_179 = arith.constant 0 : index
    %260 = vector.load %arg20[%c2_178, %259, %c0_179] : memref<4x16x8xbf16, #tpu.memory_space<vmem>>, vector<1x8x8xbf16>
    %261 = vector.shape_cast %260 : vector<1x8x8xbf16> to vector<8x8xbf16>
    %c2_180 = arith.constant 2 : index
    %262 = arith.index_cast %34 : i32 to index
    %c0_181 = arith.constant 0 : index
    %263 = vector.load %arg21[%c2_180, %262, %c0_181] : memref<4x16x8xbf16, #tpu.memory_space<vmem>>, vector<1x8x8xbf16>
    %264 = vector.shape_cast %263 : vector<1x8x8xbf16> to vector<8x8xbf16>
    %cst_182 = arith.constant dense<0.000000e+00> : vector<8x8xf32>
    %265 = tpu.matmul %126, %261, %cst_182 {dimension_numbers = #tpu.dot_dimension_numbers<[1], [1], [0], [0], [0, 0, 1, 0], [], []>} : vector<8x8xbf16>, vector<8x8xbf16>, vector<8x8xf32> -> vector<8x8xf32>
    %266 = arith.addf %265, %178 : vector<8x8xf32>
    %c2_183 = arith.constant 2 : index
    %c0_184 = arith.constant 0 : index
    %c0_185 = arith.constant 0 : index
    %267 = vector.load %arg22[%c2_183, %c0_184, %c0_185] : memref<4x8x1xf32, #tpu.memory_space<vmem>>, vector<1x8x1xf32>
    %268 = vector.shape_cast %267 : vector<1x8x1xf32> to vector<8x1xf32>
    %cst_186 = arith.constant dense<0xFF800000> : vector<8xf32>
    %269 = vector.multi_reduction <maximumf>, %266, %cst_186 [1] : vector<8x8xf32> to vector<8xf32>
    %270 = vector.shape_cast %269 : vector<8xf32> to vector<8x1xf32>
    %271 = arith.maximumf %268, %270 : vector<8x1xf32>
    %272 = arith.subf %268, %271 : vector<8x1xf32>
    %273 = math.exp %272 : vector<8x1xf32>
    %274 = vector.broadcast %271 : vector<8x1xf32> to vector<8x8xf32>
    %275 = arith.subf %266, %274 : vector<8x8xf32>
    %276 = math.exp %275 : vector<8x8xf32>
    %c2_187 = arith.constant 2 : index
    %c0_188 = arith.constant 0 : index
    %c0_189 = arith.constant 0 : index
    %277 = vector.load %arg23[%c2_187, %c0_188, %c0_189] : memref<4x8x1xf32, #tpu.memory_space<vmem>>, vector<1x8x1xf32>
    %278 = vector.shape_cast %277 : vector<1x8x1xf32> to vector<8x1xf32>
    %279 = arith.mulf %273, %278 : vector<8x1xf32>
    %cst_190 = arith.constant dense<0.000000e+00> : vector<8xf32>
    %280 = vector.multi_reduction <add>, %276, %cst_190 [1] : vector<8x8xf32> to vector<8xf32>
    %281 = vector.shape_cast %280 : vector<8xf32> to vector<8x1xf32>
    %282 = arith.addf %279, %281 : vector<8x1xf32>
    %c2_191 = arith.constant 2 : index
    %c0_192 = arith.constant 0 : index
    %c0_193 = arith.constant 0 : index
    %283 = vector.load %arg23[%c2_191, %c0_192, %c0_193] : memref<4x8x1xf32, #tpu.memory_space<vmem>>, vector<1x8x1xf32>
    %284 = vector.shape_cast %283 : vector<1x8x1xf32> to vector<8x1xf32>
    %285 = vector.shape_cast %282 : vector<8x1xf32> to vector<1x8x1xf32>
    tpu.vector_store %arg23[%c2_191, %c0_192, %c0_193], %285 {strides = array<i32>} : memref<4x8x1xf32, #tpu.memory_space<vmem>>, vector<1x8x1xf32>,
    %c2_194 = arith.constant 2 : index
    %c0_195 = arith.constant 0 : index
    %c0_196 = arith.constant 0 : index
    %286 = vector.load %arg24[%c2_194, %c0_195, %c0_196] : memref<4x8x8xf32, #tpu.memory_space<vmem>>, vector<1x8x8xf32>
    %287 = vector.shape_cast %286 : vector<1x8x8xf32> to vector<8x8xf32>
    %288 = vector.broadcast %273 : vector<8x1xf32> to vector<8x8xf32>
    %289 = arith.mulf %288, %287 : vector<8x8xf32>
    %290 = arith.truncf %276 : vector<8x8xf32> to vector<8x8xbf16>
    %cst_197 = arith.constant dense<0.000000e+00> : vector<8x8xf32>
    %291 = tpu.matmul %290, %264, %cst_197 {dimension_numbers = #tpu.dot_dimension_numbers<[1], [0], [0], [1], [0, 0, 1, 1], [], []>} : vector<8x8xbf16>, vector<8x8xbf16>, vector<8x8xf32> -> vector<8x8xf32>
    %292 = arith.addf %289, %291 : vector<8x8xf32>
    %c2_198 = arith.constant 2 : index
    %c0_199 = arith.constant 0 : index
    %c0_200 = arith.constant 0 : index
    %293 = vector.load %arg24[%c2_198, %c0_199, %c0_200] : memref<4x8x8xf32, #tpu.memory_space<vmem>>, vector<1x8x8xf32>
    %294 = vector.shape_cast %293 : vector<1x8x8xf32> to vector<8x8xf32>
    %295 = vector.shape_cast %292 : vector<8x8xf32> to vector<1x8x8xf32>
    tpu.vector_store %arg24[%c2_198, %c0_199, %c0_200], %295 {strides = array<i32>} : memref<4x8x8xf32, #tpu.memory_space<vmem>>, vector<1x8x8xf32>,
    %c2_201 = arith.constant 2 : index
    %c0_202 = arith.constant 0 : index
    %c0_203 = arith.constant 0 : index
    %296 = vector.load %arg22[%c2_201, %c0_202, %c0_203] : memref<4x8x1xf32, #tpu.memory_space<vmem>>, vector<1x8x1xf32>
    %297 = vector.shape_cast %296 : vector<1x8x1xf32> to vector<8x1xf32>
    %298 = vector.shape_cast %271 : vector<8x1xf32> to vector<1x8x1xf32>
    tpu.vector_store %arg22[%c2_201, %c0_202, %c0_203], %298 {strides = array<i32>} : memref<4x8x1xf32, #tpu.memory_space<vmem>>, vector<1x8x1xf32>,
    %c3_204 = arith.constant 3 : index
    %299 = arith.index_cast %34 : i32 to index
    %c0_205 = arith.constant 0 : index
    %300 = vector.load %arg20[%c3_204, %299, %c0_205] : memref<4x16x8xbf16, #tpu.memory_space<vmem>>, vector<1x8x8xbf16>
    %301 = vector.shape_cast %300 : vector<1x8x8xbf16> to vector<8x8xbf16>
    %c3_206 = arith.constant 3 : index
    %302 = arith.index_cast %34 : i32 to index
    %c0_207 = arith.constant 0 : index
    %303 = vector.load %arg21[%c3_206, %302, %c0_207] : memref<4x16x8xbf16, #tpu.memory_space<vmem>>, vector<1x8x8xbf16>
    %304 = vector.shape_cast %303 : vector<1x8x8xbf16> to vector<8x8xbf16>
    %cst_208 = arith.constant dense<0.000000e+00> : vector<8x8xf32>
    %305 = tpu.matmul %160, %301, %cst_208 {dimension_numbers = #tpu.dot_dimension_numbers<[1], [1], [0], [0], [0, 0, 1, 0], [], []>} : vector<8x8xbf16>, vector<8x8xbf16>, vector<8x8xf32> -> vector<8x8xf32>
    %306 = arith.addf %305, %178 : vector<8x8xf32>
    %c3_209 = arith.constant 3 : index
    %c0_210 = arith.constant 0 : index
    %c0_211 = arith.constant 0 : index
    %307 = vector.load %arg22[%c3_209, %c0_210, %c0_211] : memref<4x8x1xf32, #tpu.memory_space<vmem>>, vector<1x8x1xf32>
    %308 = vector.shape_cast %307 : vector<1x8x1xf32> to vector<8x1xf32>
    %cst_212 = arith.constant dense<0xFF800000> : vector<8xf32>
    %309 = vector.multi_reduction <maximumf>, %306, %cst_212 [1] : vector<8x8xf32> to vector<8xf32>
    %310 = vector.shape_cast %309 : vector<8xf32> to vector<8x1xf32>
    %311 = arith.maximumf %308, %310 : vector<8x1xf32>
    %312 = arith.subf %308, %311 : vector<8x1xf32>
    %313 = math.exp %312 : vector<8x1xf32>
    %314 = vector.broadcast %311 : vector<8x1xf32> to vector<8x8xf32>
    %315 = arith.subf %306, %314 : vector<8x8xf32>
    %316 = math.exp %315 : vector<8x8xf32>
    %c3_213 = arith.constant 3 : index
    %c0_214 = arith.constant 0 : index
    %c0_215 = arith.constant 0 : index
    %317 = vector.load %arg23[%c3_213, %c0_214, %c0_215] : memref<4x8x1xf32, #tpu.memory_space<vmem>>, vector<1x8x1xf32>
    %318 = vector.shape_cast %317 : vector<1x8x1xf32> to vector<8x1xf32>
    %319 = arith.mulf %313, %318 : vector<8x1xf32>
    %cst_216 = arith.constant dense<0.000000e+00> : vector<8xf32>
    %320 = vector.multi_reduction <add>, %316, %cst_216 [1] : vector<8x8xf32> to vector<8xf32>
    %321 = vector.shape_cast %320 : vector<8xf32> to vector<8x1xf32>
    %322 = arith.addf %319, %321 : vector<8x1xf32>
    %c3_217 = arith.constant 3 : index
    %c0_218 = arith.constant 0 : index
    %c0_219 = arith.constant 0 : index
    %323 = vector.load %arg23[%c3_217, %c0_218, %c0_219] : memref<4x8x1xf32, #tpu.memory_space<vmem>>, vector<1x8x1xf32>
    %324 = vector.shape_cast %323 : vector<1x8x1xf32> to vector<8x1xf32>
    %325 = vector.shape_cast %322 : vector<8x1xf32> to vector<1x8x1xf32>
    tpu.vector_store %arg23[%c3_217, %c0_218, %c0_219], %325 {strides = array<i32>} : memref<4x8x1xf32, #tpu.memory_space<vmem>>, vector<1x8x1xf32>,
    %c3_220 = arith.constant 3 : index
    %c0_221 = arith.constant 0 : index
    %c0_222 = arith.constant 0 : index
    %326 = vector.load %arg24[%c3_220, %c0_221, %c0_222] : memref<4x8x8xf32, #tpu.memory_space<vmem>>, vector<1x8x8xf32>
    %327 = vector.shape_cast %326 : vector<1x8x8xf32> to vector<8x8xf32>
    %328 = vector.broadcast %313 : vector<8x1xf32> to vector<8x8xf32>
    %329 = arith.mulf %328, %327 : vector<8x8xf32>
    %330 = arith.truncf %316 : vector<8x8xf32> to vector<8x8xbf16>
    %cst_223 = arith.constant dense<0.000000e+00> : vector<8x8xf32>
    %331 = tpu.matmul %330, %304, %cst_223 {dimension_numbers = #tpu.dot_dimension_numbers<[1], [0], [0], [1], [0, 0, 1, 1], [], []>} : vector<8x8xbf16>, vector<8x8xbf16>, vector<8x8xf32> -> vector<8x8xf32>
    %332 = arith.addf %329, %331 : vector<8x8xf32>
    %c3_224 = arith.constant 3 : index
    %c0_225 = arith.constant 0 : index
    %c0_226 = arith.constant 0 : index
    %333 = vector.load %arg24[%c3_224, %c0_225, %c0_226] : memref<4x8x8xf32, #tpu.memory_space<vmem>>, vector<1x8x8xf32>
    %334 = vector.shape_cast %333 : vector<1x8x8xf32> to vector<8x8xf32>
    %335 = vector.shape_cast %332 : vector<8x8xf32> to vector<1x8x8xf32>
    tpu.vector_store %arg24[%c3_224, %c0_225, %c0_226], %335 {strides = array<i32>} : memref<4x8x8xf32, #tpu.memory_space<vmem>>, vector<1x8x8xf32>,
    %c3_227 = arith.constant 3 : index
    %c0_228 = arith.constant 0 : index
    %c0_229 = arith.constant 0 : index
    %336 = vector.load %arg22[%c3_227, %c0_228, %c0_229] : memref<4x8x1xf32, #tpu.memory_space<vmem>>, vector<1x8x1xf32>
    %337 = vector.shape_cast %336 : vector<1x8x1xf32> to vector<8x1xf32>
    %338 = vector.shape_cast %311 : vector<8x1xf32> to vector<1x8x1xf32>
    tpu.vector_store %arg22[%c3_227, %c0_228, %c0_229], %338 {strides = array<i32>} : memref<4x8x1xf32, #tpu.memory_space<vmem>>, vector<1x8x1xf32>,
    %cst_230 = arith.constant 0.000000e+00 : f32
    %339 = vector.broadcast %cst_230 : f32 to vector<8x32xf32>
    %c0_231 = arith.constant 0 : index
    %c0_232 = arith.constant 0 : index
    %c0_233 = arith.constant 0 : index
    %340 = vector.load %arg24[%c0_231, %c0_232, %c0_233] : memref<4x8x8xf32, #tpu.memory_space<vmem>>, vector<1x8x8xf32>
    %341 = vector.shape_cast %340 : vector<1x8x8xf32> to vector<8x8xf32>
    %c0_234 = arith.constant 0 : index
    %c0_235 = arith.constant 0 : index
    %c0_236 = arith.constant 0 : index
    %342 = vector.load %arg23[%c0_234, %c0_235, %c0_236] : memref<4x8x1xf32, #tpu.memory_space<vmem>>, vector<1x8x1xf32>
    %343 = vector.shape_cast %342 : vector<1x8x1xf32> to vector<8x1xf32>
    %344 = tpu.reciprocal %343 {approx = true} : vector<8x1xf32> -> vector<8x1xf32>
    %345 = vector.broadcast %344 : vector<8x1xf32> to vector<8x8xf32>
    %346 = arith.mulf %341, %345 : vector<8x8xf32>
    %347 = arith.truncf %346 : vector<8x8xf32> to vector<8x8xbf16>
    %c0_237 = arith.constant 0 : index
    %c0_238 = arith.constant 0 : index
    %c0_239 = arith.constant 0 : index
    %348 = vector.load %arg11[%c0_237, %c0_238, %c0_239] : memref<4x8x32xbf16, #tpu.memory_space<vmem>>, vector<1x8x32xbf16>
    %349 = vector.shape_cast %348 : vector<1x8x32xbf16> to vector<8x32xbf16>
    %cst_240 = arith.constant dense<0.000000e+00> : vector<8x32xf32>
    %350 = tpu.matmul %347, %349, %cst_240 {dimension_numbers = #tpu.dot_dimension_numbers<[1], [0], [0], [1], [0, 0, 1, 1], [], []>} : vector<8x8xbf16>, vector<8x32xbf16>, vector<8x32xf32> -> vector<8x32xf32>
    %351 = arith.addf %339, %350 : vector<8x32xf32>
    %c1_241 = arith.constant 1 : index
    %c0_242 = arith.constant 0 : index
    %c0_243 = arith.constant 0 : index
    %352 = vector.load %arg24[%c1_241, %c0_242, %c0_243] : memref<4x8x8xf32, #tpu.memory_space<vmem>>, vector<1x8x8xf32>
    %353 = vector.shape_cast %352 : vector<1x8x8xf32> to vector<8x8xf32>
    %c1_244 = arith.constant 1 : index
    %c0_245 = arith.constant 0 : index
    %c0_246 = arith.constant 0 : index
    %354 = vector.load %arg23[%c1_244, %c0_245, %c0_246] : memref<4x8x1xf32, #tpu.memory_space<vmem>>, vector<1x8x1xf32>
    %355 = vector.shape_cast %354 : vector<1x8x1xf32> to vector<8x1xf32>
    %356 = tpu.reciprocal %355 {approx = true} : vector<8x1xf32> -> vector<8x1xf32>
    %357 = vector.broadcast %356 : vector<8x1xf32> to vector<8x8xf32>
    %358 = arith.mulf %353, %357 : vector<8x8xf32>
    %359 = arith.truncf %358 : vector<8x8xf32> to vector<8x8xbf16>
    %c1_247 = arith.constant 1 : index
    %c0_248 = arith.constant 0 : index
    %c0_249 = arith.constant 0 : index
    %360 = vector.load %arg11[%c1_247, %c0_248, %c0_249] : memref<4x8x32xbf16, #tpu.memory_space<vmem>>, vector<1x8x32xbf16>
    %361 = vector.shape_cast %360 : vector<1x8x32xbf16> to vector<8x32xbf16>
    %cst_250 = arith.constant dense<0.000000e+00> : vector<8x32xf32>
    %362 = tpu.matmul %359, %361, %cst_250 {dimension_numbers = #tpu.dot_dimension_numbers<[1], [0], [0], [1], [0, 0, 1, 1], [], []>} : vector<8x8xbf16>, vector<8x32xbf16>, vector<8x32xf32> -> vector<8x32xf32>
    %363 = arith.addf %351, %362 : vector<8x32xf32>
    %c2_251 = arith.constant 2 : index
    %c0_252 = arith.constant 0 : index
    %c0_253 = arith.constant 0 : index
    %364 = vector.load %arg24[%c2_251, %c0_252, %c0_253] : memref<4x8x8xf32, #tpu.memory_space<vmem>>, vector<1x8x8xf32>
    %365 = vector.shape_cast %364 : vector<1x8x8xf32> to vector<8x8xf32>
    %c2_254 = arith.constant 2 : index
    %c0_255 = arith.constant 0 : index
    %c0_256 = arith.constant 0 : index
    %366 = vector.load %arg23[%c2_254, %c0_255, %c0_256] : memref<4x8x1xf32, #tpu.memory_space<vmem>>, vector<1x8x1xf32>
    %367 = vector.shape_cast %366 : vector<1x8x1xf32> to vector<8x1xf32>
    %368 = tpu.reciprocal %367 {approx = true} : vector<8x1xf32> -> vector<8x1xf32>
    %369 = vector.broadcast %368 : vector<8x1xf32> to vector<8x8xf32>
    %370 = arith.mulf %365, %369 : vector<8x8xf32>
    %371 = arith.truncf %370 : vector<8x8xf32> to vector<8x8xbf16>
    %c2_257 = arith.constant 2 : index
    %c0_258 = arith.constant 0 : index
    %c0_259 = arith.constant 0 : index
    %372 = vector.load %arg11[%c2_257, %c0_258, %c0_259] : memref<4x8x32xbf16, #tpu.memory_space<vmem>>, vector<1x8x32xbf16>
    %373 = vector.shape_cast %372 : vector<1x8x32xbf16> to vector<8x32xbf16>
    %cst_260 = arith.constant dense<0.000000e+00> : vector<8x32xf32>
    %374 = tpu.matmul %371, %373, %cst_260 {dimension_numbers = #tpu.dot_dimension_numbers<[1], [0], [0], [1], [0, 0, 1, 1], [], []>} : vector<8x8xbf16>, vector<8x32xbf16>, vector<8x32xf32> -> vector<8x32xf32>
    %375 = arith.addf %363, %374 : vector<8x32xf32>
    %c3_261 = arith.constant 3 : index
    %c0_262 = arith.constant 0 : index
    %c0_263 = arith.constant 0 : index
    %376 = vector.load %arg24[%c3_261, %c0_262, %c0_263] : memref<4x8x8xf32, #tpu.memory_space<vmem>>, vector<1x8x8xf32>
    %377 = vector.shape_cast %376 : vector<1x8x8xf32> to vector<8x8xf32>
    %c3_264 = arith.constant 3 : index
    %c0_265 = arith.constant 0 : index
    %c0_266 = arith.constant 0 : index
    %378 = vector.load %arg23[%c3_264, %c0_265, %c0_266] : memref<4x8x1xf32, #tpu.memory_space<vmem>>, vector<1x8x1xf32>
    %379 = vector.shape_cast %378 : vector<1x8x1xf32> to vector<8x1xf32>
    %380 = tpu.reciprocal %379 {approx = true} : vector<8x1xf32> -> vector<8x1xf32>
    %381 = vector.broadcast %380 : vector<8x1xf32> to vector<8x8xf32>
    %382 = arith.mulf %377, %381 : vector<8x8xf32>
    %383 = arith.truncf %382 : vector<8x8xf32> to vector<8x8xbf16>
    %c3_267 = arith.constant 3 : index
    %c0_268 = arith.constant 0 : index
    %c0_269 = arith.constant 0 : index
    %384 = vector.load %arg11[%c3_267, %c0_268, %c0_269] : memref<4x8x32xbf16, #tpu.memory_space<vmem>>, vector<1x8x32xbf16>
    %385 = vector.shape_cast %384 : vector<1x8x32xbf16> to vector<8x32xbf16>
    %cst_270 = arith.constant dense<0.000000e+00> : vector<8x32xf32>
    %386 = tpu.matmul %383, %385, %cst_270 {dimension_numbers = #tpu.dot_dimension_numbers<[1], [0], [0], [1], [0, 0, 1, 1], [], []>} : vector<8x8xbf16>, vector<8x32xbf16>, vector<8x32xf32> -> vector<8x32xf32>
    %387 = arith.addf %375, %386 : vector<8x32xf32>
    %c0_271 = arith.constant 0 : index
    %c0_272 = arith.constant 0 : index
    %388 = vector.load %arg12[%c0_271, %c0_272] : memref<1x32xf32, #tpu.memory_space<vmem>>, vector<1x32xf32>
    %389 = vector.broadcast %388 : vector<1x32xf32> to vector<8x32xf32>
    %390 = arith.addf %387, %389 : vector<8x32xf32>
    %391 = arith.addf %1, %390 : vector<8x32xf32>
    %c0_273 = arith.constant 0 : index
    %c0_274 = arith.constant 0 : index
    %392 = vector.load %arg13[%c0_273, %c0_274] : memref<1x32xf32, #tpu.memory_space<vmem>>, vector<1x32xf32>
    %c0_275 = arith.constant 0 : index
    %c0_276 = arith.constant 0 : index
    %393 = vector.load %arg14[%c0_275, %c0_276] : memref<1x32xf32, #tpu.memory_space<vmem>>, vector<1x32xf32>
    %cst_277 = arith.constant dense<0.000000e+00> : vector<8xf32>
    %394 = vector.multi_reduction <add>, %391, %cst_277 [1] : vector<8x32xf32> to vector<8xf32>
    %395 = vector.shape_cast %394 : vector<8xf32> to vector<8x1xf32>
    %cst_278 = arith.constant 3.200000e+01 : f32
    %396 = vector.broadcast %cst_278 : f32 to vector<8x1xf32>
    %397 = arith.divf %395, %396 : vector<8x1xf32>
    %398 = vector.broadcast %397 : vector<8x1xf32> to vector<8x32xf32>
    %399 = arith.subf %391, %398 : vector<8x32xf32>
    %400 = arith.mulf %399, %399 : vector<8x32xf32>
    %cst_279 = arith.constant dense<0.000000e+00> : vector<8xf32>
    %401 = vector.multi_reduction <add>, %400, %cst_279 [1] : vector<8x32xf32> to vector<8xf32>
    %402 = vector.shape_cast %401 : vector<8xf32> to vector<8x1xf32>
    %cst_280 = arith.constant 3.200000e+01 : f32
    %403 = vector.broadcast %cst_280 : f32 to vector<8x1xf32>
    %404 = arith.divf %402, %403 : vector<8x1xf32>
    %405 = vector.broadcast %397 : vector<8x1xf32> to vector<8x32xf32>
    %406 = arith.subf %391, %405 : vector<8x32xf32>
    %cst_281 = arith.constant 9.99999974E-6 : f32
    %407 = vector.broadcast %cst_281 : f32 to vector<8x1xf32>
    %408 = arith.addf %404, %407 : vector<8x1xf32>
    %409 = math.rsqrt %408 : vector<8x1xf32>
    %410 = vector.broadcast %409 : vector<8x1xf32> to vector<8x32xf32>
    %411 = arith.mulf %406, %410 : vector<8x32xf32>
    %412 = vector.broadcast %392 : vector<1x32xf32> to vector<8x32xf32>
    %413 = arith.mulf %411, %412 : vector<8x32xf32>
    %414 = vector.broadcast %393 : vector<1x32xf32> to vector<8x32xf32>
    %415 = arith.addf %413, %414 : vector<8x32xf32>
    %416 = arith.truncf %415 : vector<8x32xf32> to vector<8x32xbf16>
    %c0_282 = arith.constant 0 : index
    %c0_283 = arith.constant 0 : index
    %417 = vector.load %arg15[%c0_282, %c0_283] : memref<32x128xbf16, #tpu.memory_space<vmem>>, vector<32x128xbf16>
    %cst_284 = arith.constant dense<0.000000e+00> : vector<8x128xf32>
    %418 = tpu.matmul %416, %417, %cst_284 {dimension_numbers = #tpu.dot_dimension_numbers<[1], [0], [0], [1], [0, 0, 1, 1], [], []>} : vector<8x32xbf16>, vector<32x128xbf16>, vector<8x128xf32> -> vector<8x128xf32>
    %c0_285 = arith.constant 0 : index
    %c0_286 = arith.constant 0 : index
    %419 = vector.load %arg16[%c0_285, %c0_286] : memref<1x128xf32, #tpu.memory_space<vmem>>, vector<1x128xf32>
    %420 = vector.broadcast %419 : vector<1x128xf32> to vector<8x128xf32>
    %421 = arith.addf %418, %420 : vector<8x128xf32>
    %cst_287 = arith.constant 5.000000e-01 : f32
    %422 = vector.broadcast %cst_287 : f32 to vector<8x128xf32>
    %423 = arith.mulf %422, %421 : vector<8x128xf32>
    %cst_288 = arith.constant 0.707106769 : f32
    %424 = vector.broadcast %cst_288 : f32 to vector<8x128xf32>
    %425 = arith.mulf %421, %424 : vector<8x128xf32>
    %426 = math.erf %425 : vector<8x128xf32>
    %cst_289 = arith.constant 1.000000e+00 : f32
    %427 = vector.broadcast %cst_289 : f32 to vector<8x128xf32>
    %428 = arith.addf %427, %426 : vector<8x128xf32>
    %429 = arith.mulf %423, %428 : vector<8x128xf32>
    %430 = arith.truncf %429 : vector<8x128xf32> to vector<8x128xbf16>
    %c0_290 = arith.constant 0 : index
    %c0_291 = arith.constant 0 : index
    %431 = vector.load %arg17[%c0_290, %c0_291] : memref<128x32xbf16, #tpu.memory_space<vmem>>, vector<128x32xbf16>
    %cst_292 = arith.constant dense<0.000000e+00> : vector<8x32xf32>
    %432 = tpu.matmul %430, %431, %cst_292 {dimension_numbers = #tpu.dot_dimension_numbers<[1], [0], [0], [1], [0, 0, 1, 1], [], []>} : vector<8x128xbf16>, vector<128x32xbf16>, vector<8x32xf32> -> vector<8x32xf32>
    %c0_293 = arith.constant 0 : index
    %c0_294 = arith.constant 0 : index
    %433 = vector.load %arg18[%c0_293, %c0_294] : memref<1x32xf32, #tpu.memory_space<vmem>>, vector<1x32xf32>
    %434 = vector.broadcast %433 : vector<1x32xf32> to vector<8x32xf32>
    %435 = arith.addf %432, %434 : vector<8x32xf32>
    %436 = arith.addf %391, %435 : vector<8x32xf32>
    %c0_295 = arith.constant 0 : index
    %c0_296 = arith.constant 0 : index
    %c0_297 = arith.constant 0 : index
    %437 = vector.load %arg19[%c0_295, %c0_296, %c0_297] : memref<1x8x32xf32, #tpu.memory_space<vmem>>, vector<1x8x32xf32>
    %438 = vector.shape_cast %437 : vector<1x8x32xf32> to vector<8x32xf32>
    %439 = vector.shape_cast %436 : vector<8x32xf32> to vector<1x8x32xf32>
    tpu.vector_store %arg19[%c0_295, %c0_296, %c0_297], %439 {strides = array<i32>} : memref<1x8x32xf32, #tpu.memory_space<vmem>>, vector<1x8x32xf32>,
    return
  }
  func.func @transform_0(%arg0: i32, %arg1: i32) -> (i32, i32, i32) {
    %c0_i32 = arith.constant 0 : i32
    %c0_i32_0 = arith.constant 0 : i32
    return %arg0, %arg1, %c0_i32 : i32, i32, i32
  }
  func.func @transform_1(%arg0: i32, %arg1: i32) -> (i32, i32) {
    %c0_i32 = arith.constant 0 : i32
    %c0_i32_0 = arith.constant 0 : i32
    %c0_i32_1 = arith.constant 0 : i32
    return %c0_i32, %c0_i32_0 : i32, i32
  }
  func.func @transform_2(%arg0: i32, %arg1: i32) -> (i32, i32) {
    %c0_i32 = arith.constant 0 : i32
    %c0_i32_0 = arith.constant 0 : i32
    %c0_i32_1 = arith.constant 0 : i32
    return %c0_i32, %c0_i32_0 : i32, i32
  }
  func.func @transform_3(%arg0: i32, %arg1: i32) -> (i32, i32, i32) {
    %c0_i32 = arith.constant 0 : i32
    %c0_i32_0 = arith.constant 0 : i32
    %c0_i32_1 = arith.constant 0 : i32
    %c0_i32_2 = arith.constant 0 : i32
    return %c0_i32, %c0_i32_0, %c0_i32_1 : i32, i32, i32
  }
  func.func @transform_4(%arg0: i32, %arg1: i32) -> (i32, i32, i32) {
    %c0_i32 = arith.constant 0 : i32
    %c0_i32_0 = arith.constant 0 : i32
    %c0_i32_1 = arith.constant 0 : i32
    %c0_i32_2 = arith.constant 0 : i32
    return %c0_i32, %c0_i32_0, %c0_i32_1 : i32, i32, i32
  }
  func.func @transform_5(%arg0: i32, %arg1: i32) -> (i32, i32, i32) {
    %c0_i32 = arith.constant 0 : i32
    %c0_i32_0 = arith.constant 0 : i32
    %c0_i32_1 = arith.constant 0 : i32
    %c0_i32_2 = arith.constant 0 : i32
    return %c0_i32, %c0_i32_0, %c0_i32_1 : i32, i32, i32
  }
  func.func @transform_6(%arg0: i32, %arg1: i32) -> (i32, i32, i32) {
    %c0_i32 = arith.constant 0 : i32
    %c0_i32_0 = arith.constant 0 : i32
    %c0_i32_1 = arith.constant 0 : i32
    %c0_i32_2 = arith.constant 0 : i32
    return %c0_i32, %c0_i32_0, %c0_i32_1 : i32, i32, i32
  }
  func.func @transform_7(%arg0: i32, %arg1: i32) -> (i32, i32, i32) {
    %c0_i32 = arith.constant 0 : i32
    %c0_i32_0 = arith.constant 0 : i32
    %c0_i32_1 = arith.constant 0 : i32
    %c0_i32_2 = arith.constant 0 : i32
    return %c0_i32, %c0_i32_0, %c0_i32_1 : i32, i32, i32
  }
  func.func @transform_8(%arg0: i32, %arg1: i32) -> (i32, i32, i32) {
    %c0_i32 = arith.constant 0 : i32
    %c0_i32_0 = arith.constant 0 : i32
    %c0_i32_1 = arith.constant 0 : i32
    %c0_i32_2 = arith.constant 0 : i32
    return %c0_i32, %c0_i32_0, %c0_i32_1 : i32, i32, i32
  }
  func.func @transform_9(%arg0: i32, %arg1: i32) -> (i32, i32, i32) {
    %c0_i32 = arith.constant 0 : i32
    %c0_i32_0 = arith.constant 0 : i32
    %c0_i32_1 = arith.constant 0 : i32
    %c0_i32_2 = arith.constant 0 : i32
    return %c0_i32, %c0_i32_0, %c0_i32_1 : i32, i32, i32
  }
  func.func @transform_10(%arg0: i32, %arg1: i32) -> (i32, i32) {
    %c0_i32 = arith.constant 0 : i32
    %c0_i32_0 = arith.constant 0 : i32
    %c0_i32_1 = arith.constant 0 : i32
    return %c0_i32, %c0_i32_0 : i32, i32
  }
  func.func @transform_11(%arg0: i32, %arg1: i32) -> (i32, i32) {
    %c0_i32 = arith.constant 0 : i32
    %c0_i32_0 = arith.constant 0 : i32
    %c0_i32_1 = arith.constant 0 : i32
    return %c0_i32, %c0_i32_0 : i32, i32
  }
  func.func @transform_12(%arg0: i32, %arg1: i32) -> (i32, i32) {
    %c0_i32 = arith.constant 0 : i32
    %c0_i32_0 = arith.constant 0 : i32
    %c0_i32_1 = arith.constant 0 : i32
    return %c0_i32, %c0_i32_0 : i32, i32
  }
  func.func @transform_13(%arg0: i32, %arg1: i32) -> (i32, i32) {
    %c0_i32 = arith.constant 0 : i32
    %c0_i32_0 = arith.constant 0 : i32
    %c0_i32_1 = arith.constant 0 : i32
    return %c0_i32, %c0_i32_0 : i32, i32
  }
  func.func @transform_14(%arg0: i32, %arg1: i32) -> (i32, i32) {
    %c0_i32 = arith.constant 0 : i32
    %c0_i32_0 = arith.constant 0 : i32
    %c0_i32_1 = arith.constant 0 : i32
    return %c0_i32, %c0_i32_0 : i32, i32
  }
  func.func @transform_15(%arg0: i32, %arg1: i32) -> (i32, i32) {
    %c0_i32 = arith.constant 0 : i32
    %c0_i32_0 = arith.constant 0 : i32
    %c0_i32_1 = arith.constant 0 : i32
    return %c0_i32, %c0_i32_0 : i32, i32
  }
  func.func @transform_16(%arg0: i32, %arg1: i32) -> (i32, i32) {
    %c0_i32 = arith.constant 0 : i32
    %c0_i32_0 = arith.constant 0 : i32
    %c0_i32_1 = arith.constant 0 : i32
    return %c0_i32, %c0_i32_0 : i32, i32
  }
  func.func @transform_17(%arg0: i32, %arg1: i32) -> (i32, i32, i32) {
    %c0_i32 = arith.constant 0 : i32
    %c0_i32_0 = arith.constant 0 : i32
    return %arg0, %arg1, %c0_i32 : i32, i32, i32
  }
}

</mosaic_0001>

<llo_original>
// kernel: tpu_custom_call.1
$region0: #{tpu_custom_call.1}
  #allocation0 [shape = 'u32[]', space=smem, size = 0x4, offset = 0x4, fixed_abs, tag = 'smem constant byte address 0x4 - core index']
  #allocation1 [shape = 'u32[144,128]{1,0:T(1,128)}', space=vmem, size = 0x12000, scoped, tag = 'internal scratch']
  #allocation2 [shape = 'bf16[4,16,8]{2,1,0:T(8,128)(2,1)}', space=vmem, size = 0x4000, scoped, tag = 'scratch operand']
  #allocation3 [shape = 'bf16[4,16,8]{2,1,0:T(8,128)(2,1)}', space=vmem, size = 0x4000, scoped, tag = 'scratch operand']
  #allocation4 [shape = 'f32[4,8,1]{2,1,0:T(8,128)}', space=vmem, size = 0x4000, scoped, tag = 'scratch operand']
  #allocation5 [shape = 'f32[4,8,1]{2,1,0:T(8,128)}', space=vmem, size = 0x4000, scoped, tag = 'scratch operand']
  #allocation6 [shape = 'f32[4,8,8]{2,1,0:T(8,128)}', space=vmem, size = 0x4000, scoped, tag = 'scratch operand']
  %s0 = inlined_call_operand.vmem [shape: f32[2,16,32], index: 0, kind: input, shape index: {}]
  %s1 = inlined_call_operand.vmem [shape: f32[1,32], index: 1, kind: input, shape index: {}]
  %s2 = inlined_call_operand.vmem [shape: f32[1,32], index: 2, kind: input, shape index: {}]
  %s3 = inlined_call_operand.vmem [shape: bf16[4,32,8], index: 3, kind: input, shape index: {}]
  %s4 = inlined_call_operand.vmem [shape: f32[4,1,8], index: 4, kind: input, shape index: {}]
  %s5 = inlined_call_operand.vmem [shape: bf16[4,32,8], index: 5, kind: input, shape index: {}]
  %s6 = inlined_call_operand.vmem [shape: f32[4,1,8], index: 6, kind: input, shape index: {}]
  %s7 = inlined_call_operand.vmem [shape: bf16[4,32,8], index: 7, kind: input, shape index: {}]
  %s8 = inlined_call_operand.vmem [shape: f32[4,1,8], index: 8, kind: input, shape index: {}]
  %s9 = inlined_call_operand.vmem [shape: bf16[4,8,32], index: 9, kind: input, shape index: {}]
  %s10 = inlined_call_operand.vmem [shape: f32[1,32], index: 10, kind: input, shape index: {}]
  %s11 = inlined_call_operand.vmem [shape: f32[1,32], index: 11, kind: input, shape index: {}]
  %s12 = inlined_call_operand.vmem [shape: f32[1,32], index: 12, kind: input, shape index: {}]
  %s13 = inlined_call_operand.vmem [shape: bf16[32,128], index: 13, kind: input, shape index: {}]
  %s14 = inlined_call_operand.vmem [shape: f32[1,128], index: 14, kind: input, shape index: {}]
  %s15 = inlined_call_operand.vmem [shape: bf16[128,32], index: 15, kind: input, shape index: {}]
  %s16 = inlined_call_operand.vmem [shape: f32[1,32], index: 16, kind: input, shape index: {}]
  %s17 = inlined_call_operand.hbm [shape: f32[2,16,32], index: 17, kind: output, shape index: {}]
  %s18 = sld [smem:[#allocation0]]
  $region108: #{tpu_custom_call.1} parent=0
    _
  %s20 = ssub.s32 1, %s18
  %s21 = scalar_select 0, %s20, %s18
  $region1: #{tpu_custom_call.1} parent=0
    #allocation7 [shape = 'u8[8192]{0}', space=vmem, size = 0x2000, scoped, tag = 'output window, operand 0']
    #allocation8 [shape = 's32[2]{0}', space=sflag, size = 0x8, scoped, tag = 'scoped memory for tpu_custom_call.1']
    %22 = vsyncpa [#allocation8], 0
    %s23 = scalar_lea.sflag [#allocation8], 1
    %24 = vsyncpa %s23, 0
    loop: start=0, step=1, limit=6
    $region2: #{tpu_custom_call.1} parent=1 // loop_pre_header
      _
    $region3: #{tpu_custom_call.1} parent=1 // loop_header
      %s26 = sphi 0, %s30
      %p27 = scmp.ge.s32.totalorder %s26, 6
      %s33 = sphi 0, %s45
      %s34 = sphi 0, %s41
      %s35 = sphi 0, %s33
      %s36 = sphi 0, %s34
      %s37 = sphi 0, %s35
      %s38 = sphi 0, %s36
      %s50 = sphi 0, %s52
      %s53 = sphi 0, %s50
      %s54 = sphi 0, %s53
      %s70 = sphi 0, %s54
      %s74 = sphi 0, %s74
      %s76 = sphi 0, %s74
      %s77 = sphi 0, %s76
      %s91 = sphi 0, %s77
      %s95 = sphi 0, %s95
      %s97 = sphi 0, %s95
      %s98 = sphi 0, %s97
      %s112 = sphi 0, %s98
      %s116 = sphi 0, %s116
      %s118 = sphi 0, %s116
      %s119 = sphi 0, %s118
      %s133 = sphi 0, %s119
      %s137 = sphi 0, %s137
      %s139 = sphi 0, %s137
      %s140 = sphi 0, %s139
      %s154 = sphi 0, %s140
      %s158 = sphi 0, %s158
      %s160 = sphi 0, %s158
      %s161 = sphi 0, %s160
      %s175 = sphi 0, %s161
      %s179 = sphi 0, %s179
      %s181 = sphi 0, %s179
      %s182 = sphi 0, %s181
      %s196 = sphi 0, %s182
      %s200 = sphi 0, %s200
      %s202 = sphi 0, %s200
      %s203 = sphi 0, %s202
      %s217 = sphi 0, %s203
      %s221 = sphi 0, %s221
      %s223 = sphi 0, %s221
      %s224 = sphi 0, %s223
      %s238 = sphi 0, %s224
      %s242 = sphi 0, %s242
      %s244 = sphi 0, %s242
      %s245 = sphi 0, %s244
      %s259 = sphi 0, %s245
      %s263 = sphi 0, %s263
      %s265 = sphi 0, %s263
      %s266 = sphi 0, %s265
      %s280 = sphi 0, %s266
      %s284 = sphi 0, %s284
      %s286 = sphi 0, %s284
      %s287 = sphi 0, %s286
      %s301 = sphi 0, %s287
      %s305 = sphi 0, %s305
      %s307 = sphi 0, %s305
      %s308 = sphi 0, %s307
      %s322 = sphi 0, %s308
      %s326 = sphi 0, %s326
      %s328 = sphi 0, %s326
      %s329 = sphi 0, %s328
      %s343 = sphi 0, %s329
      %s347 = sphi 0, %s347
      %s349 = sphi 0, %s347
      %s350 = sphi 0, %s349
      %s364 = sphi 0, %s350
      %s368 = sphi 0, %s368
      %s370 = sphi 0, %s368
      %s371 = sphi 0, %s370
      %s385 = sphi 0, %s371
      %s389 = sphi 0, %s389
      %s391 = sphi 0, %s389
      %s392 = sphi 0, %s391
      %s406 = sphi 0, %s392
      %s414 = sphi 0, %s416
      %s417 = sphi 0, %s414
      %s418 = sphi 0, %s417
      %s434 = sphi 0, %s418
    $region4: #{tpu_custom_call.1} parent=1 // loop_header_branch
      %29 = sbr.rel (%p27) target = $region8
    $region5: #{tpu_custom_call.1} parent=1 // loop_body
      %s31 = ssub.s32 %s26, 1
      %s32 = ssub.s32 %s26, 2
      %s39 = sadd.s32 1, %s34
      %p40 = scmp.ge.s32.totalorder %s39, 2
      %s41 = scalar_select %p40, 0, %s39
      %s42 = sadd.s32 1, %s33
      %s43 = scalar_select %p40, %s42, %s33
      %p44 = scmp.ge.s32.totalorder %s43, 2
      %s45 = scalar_select %p44, 0, %s43
      %s46 = ssub.s32 %s33, %s45
      %s47 = ssub.s32 %s34, %s41
      %s48 = sor.u32 %s46, %s47
      %p49 = scmp.eq.s32.totalorder %s48, 0
      %s51 = sadd.s32 %s50, 1
      %s52 = scalar_select %p49, %s50, %s51
      %p55 = pneg %p49
      %p56 = scmp.eq.s32.totalorder %s26, 3
      %p57 = por %p55, %p56
      %p58 = scmp.ne.s32.totalorder %s50, %s53
      %p59 = scmp.eq.s32.totalorder %s26, 0
      %p60 = por %p58, %p59
      %p61 = scmp.ne.s32.totalorder %s50, %s53
      %p62 = scmp.eq.s32.totalorder %s31, 3
      %p63 = por %p61, %p62
      %p64 = scmp.ne.s32.totalorder %s53, %s54
      %p65 = scmp.eq.s32.totalorder %s31, 0
      %p66 = por %p64, %p65
      %p67 = scmp.ne.s32.totalorder %s53, %s54
      %p68 = scmp.eq.s32.totalorder %s32, 3
      %p69 = por %p67, %p68
      %p71 = scmp.ne.s32.totalorder %s54, %s70
      %p72 = scmp.eq.s32.totalorder %s32, 0
      %p73 = por %p71, %p72
      %s75 = sadd.s32 %s74, 1
      %p78 = scmp.eq.s32.totalorder %s26, 3
      %p79 = scmp.ne.s32.totalorder %s74, %s76
      %p80 = scmp.eq.s32.totalorder %s26, 0
      %p81 = por %p79, %p80
      %p82 = scmp.ne.s32.totalorder %s74, %s76
      %p83 = scmp.eq.s32.totalorder %s31, 3
      %p84 = por %p82, %p83
      %p85 = scmp.ne.s32.totalorder %s76, %s77
      %p86 = scmp.eq.s32.totalorder %s31, 0
      %p87 = por %p85, %p86
      %p88 = scmp.ne.s32.totalorder %s76, %s77
      %p89 = scmp.eq.s32.totalorder %s32, 3
      %p90 = por %p88, %p89
      %p92 = scmp.ne.s32.totalorder %s77, %s91
      %p93 = scmp.eq.s32.totalorder %s32, 0
      %p94 = por %p92, %p93
      %s96 = sadd.s32 %s95, 1
      %p99 = scmp.eq.s32.totalorder %s26, 3
      %p100 = scmp.ne.s32.totalorder %s95, %s97
      %p101 = scmp.eq.s32.totalorder %s26, 0
      %p102 = por %p100, %p101
      %p103 = scmp.ne.s32.totalorder %s95, %s97
      %p104 = scmp.eq.s32.totalorder %s31, 3
      %p105 = por %p103, %p104
      %p106 = scmp.ne.s32.totalorder %s97, %s98
      %p107 = scmp.eq.s32.totalorder %s31, 0
      %p108 = por %p106, %p107
      %p109 = scmp.ne.s32.totalorder %s97, %s98
      %p110 = scmp.eq.s32.totalorder %s32, 3
      %p111 = por %p109, %p110
      %p113 = scmp.ne.s32.totalorder %s98, %s112
      %p114 = scmp.eq.s32.totalorder %s32, 0
      %p115 = por %p113, %p114
      %s117 = sadd.s32 %s116, 1
      %p120 = scmp.eq.s32.totalorder %s26, 3
      %p121 = scmp.ne.s32.totalorder %s116, %s118
      %p122 = scmp.eq.s32.totalorder %s26, 0
      %p123 = por %p121, %p122
      %p124 = scmp.ne.s32.totalorder %s116, %s118
      %p125 = scmp.eq.s32.totalorder %s31, 3
      %p126 = por %p124, %p125
      %p127 = scmp.ne.s32.totalorder %s118, %s119
      %p128 = scmp.eq.s32.totalorder %s31, 0
      %p129 = por %p127, %p128
      %p130 = scmp.ne.s32.totalorder %s118, %s119
      %p131 = scmp.eq.s32.totalorder %s32, 3
      %p132 = por %p130, %p131
      %p134 = scmp.ne.s32.totalorder %s119, %s133
      %p135 = scmp.eq.s32.totalorder %s32, 0
      %p136 = por %p134, %p135
      %s138 = sadd.s32 %s137, 1
      %p141 = scmp.eq.s32.totalorder %s26, 3
      %p142 = scmp.ne.s32.totalorder %s137, %s139
      %p143 = scmp.eq.s32.totalorder %s26, 0
      %p144 = por %p142, %p143
      %p145 = scmp.ne.s32.totalorder %s137, %s139
      %p146 = scmp.eq.s32.totalorder %s31, 3
      %p147 = por %p145, %p146
      %p148 = scmp.ne.s32.totalorder %s139, %s140
      %p149 = scmp.eq.s32.totalorder %s31, 0
      %p150 = por %p148, %p149
      %p151 = scmp.ne.s32.totalorder %s139, %s140
      %p152 = scmp.eq.s32.totalorder %s32, 3
      %p153 = por %p151, %p152
      %p155 = scmp.ne.s32.totalorder %s140, %s154
      %p156 = scmp.eq.s32.totalorder %s32, 0
      %p157 = por %p155, %p156
      %s159 = sadd.s32 %s158, 1
      %p162 = scmp.eq.s32.totalorder %s26, 3
      %p163 = scmp.ne.s32.totalorder %s158, %s160
      %p164 = scmp.eq.s32.totalorder %s26, 0
      %p165 = por %p163, %p164
      %p166 = scmp.ne.s32.totalorder %s158, %s160
      %p167 = scmp.eq.s32.totalorder %s31, 3
      %p168 = por %p166, %p167
      %p169 = scmp.ne.s32.totalorder %s160, %s161
      %p170 = scmp.eq.s32.totalorder %s31, 0
      %p171 = por %p169, %p170
      %p172 = scmp.ne.s32.totalorder %s160, %s161
      %p173 = scmp.eq.s32.totalorder %s32, 3
      %p174 = por %p172, %p173
      %p176 = scmp.ne.s32.totalorder %s161, %s175
      %p177 = scmp.eq.s32.totalorder %s32, 0
      %p178 = por %p176, %p177
      %s180 = sadd.s32 %s179, 1
      %p183 = scmp.eq.s32.totalorder %s26, 3
      %p184 = scmp.ne.s32.totalorder %s179, %s181
      %p185 = scmp.eq.s32.totalorder %s26, 0
      %p186 = por %p184, %p185
      %p187 = scmp.ne.s32.totalorder %s179, %s181
      %p188 = scmp.eq.s32.totalorder %s31, 3
      %p189 = por %p187, %p188
      %p190 = scmp.ne.s32.totalorder %s181, %s182
      %p191 = scmp.eq.s32.totalorder %s31, 0
      %p192 = por %p190, %p191
      %p193 = scmp.ne.s32.totalorder %s181, %s182
      %p194 = scmp.eq.s32.totalorder %s32, 3
      %p195 = por %p193, %p194
      %p197 = scmp.ne.s32.totalorder %s182, %s196
      %p198 = scmp.eq.s32.totalorder %s32, 0
      %p199 = por %p197, %p198
      %s201 = sadd.s32 %s200, 1
      %p204 = scmp.eq.s32.totalorder %s26, 3
      %p205 = scmp.ne.s32.totalorder %s200, %s202
      %p206 = scmp.eq.s32.totalorder %s26, 0
      %p207 = por %p205, %p206
      %p208 = scmp.ne.s32.totalorder %s200, %s202
      %p209 = scmp.eq.s32.totalorder %s31, 3
      %p210 = por %p208, %p209
      %p211 = scmp.ne.s32.totalorder %s202, %s203
      %p212 = scmp.eq.s32.totalorder %s31, 0
      %p213 = por %p211, %p212
      %p214 = scmp.ne.s32.totalorder %s202, %s203
      %p215 = scmp.eq.s32.totalorder %s32, 3
      %p216 = por %p214, %p215
      %p218 = scmp.ne.s32.totalorder %s203, %s217
      %p219 = scmp.eq.s32.totalorder %s32, 0
      %p220 = por %p218, %p219
      %s222 = sadd.s32 %s221, 1
      %p225 = scmp.eq.s32.totalorder %s26, 3
      %p226 = scmp.ne.s32.totalorder %s221, %s223
      %p227 = scmp.eq.s32.totalorder %s26, 0
      %p228 = por %p226, %p227
      %p229 = scmp.ne.s32.totalorder %s221, %s223
      %p230 = scmp.eq.s32.totalorder %s31, 3
      %p231 = por %p229, %p230
      %p232 = scmp.ne.s32.totalorder %s223, %s224
      %p233 = scmp.eq.s32.totalorder %s31, 0
      %p234 = por %p232, %p233
      %p235 = scmp.ne.s32.totalorder %s223, %s224
      %p236 = scmp.eq.s32.totalorder %s32, 3
      %p237 = por %p235, %p236
      %p239 = scmp.ne.s32.totalorder %s224, %s238
      %p240 = scmp.eq.s32.totalorder %s32, 0
      %p241 = por %p239, %p240
      %s243 = sadd.s32 %s242, 1
      %p246 = scmp.eq.s32.totalorder %s26, 3
      %p247 = scmp.ne.s32.totalorder %s242, %s244
      %p248 = scmp.eq.s32.totalorder %s26, 0
      %p249 = por %p247, %p248
      %p250 = scmp.ne.s32.totalorder %s242, %s244
      %p251 = scmp.eq.s32.totalorder %s31, 3
      %p252 = por %p250, %p251
      %p253 = scmp.ne.s32.totalorder %s244, %s245
      %p254 = scmp.eq.s32.totalorder %s31, 0
      %p255 = por %p253, %p254
      %p256 = scmp.ne.s32.totalorder %s244, %s245
      %p257 = scmp.eq.s32.totalorder %s32, 3
      %p258 = por %p256, %p257
      %p260 = scmp.ne.s32.totalorder %s245, %s259
      %p261 = scmp.eq.s32.totalorder %s32, 0
      %p262 = por %p260, %p261
      %s264 = sadd.s32 %s263, 1
      %p267 = scmp.eq.s32.totalorder %s26, 3
      %p268 = scmp.ne.s32.totalorder %s263, %s265
      %p269 = scmp.eq.s32.totalorder %s26, 0
      %p270 = por %p268, %p269
      %p271 = scmp.ne.s32.totalorder %s263, %s265
      %p272 = scmp.eq.s32.totalorder %s31, 3
      %p273 = por %p271, %p272
      %p274 = scmp.ne.s32.totalorder %s265, %s266
      %p275 = scmp.eq.s32.totalorder %s31, 0
      %p276 = por %p274, %p275
      %p277 = scmp.ne.s32.totalorder %s265, %s266
      %p278 = scmp.eq.s32.totalorder %s32, 3
      %p279 = por %p277, %p278
      %p281 = scmp.ne.s32.totalorder %s266, %s280
      %p282 = scmp.eq.s32.totalorder %s32, 0
      %p283 = por %p281, %p282
      %s285 = sadd.s32 %s284, 1
      %p288 = scmp.eq.s32.totalorder %s26, 3
      %p289 = scmp.ne.s32.totalorder %s284, %s286
      %p290 = scmp.eq.s32.totalorder %s26, 0
      %p291 = por %p289, %p290
      %p292 = scmp.ne.s32.totalorder %s284, %s286
      %p293 = scmp.eq.s32.totalorder %s31, 3
      %p294 = por %p292, %p293
      %p295 = scmp.ne.s32.totalorder %s286, %s287
      %p296 = scmp.eq.s32.totalorder %s31, 0
      %p297 = por %p295, %p296
      %p298 = scmp.ne.s32.totalorder %s286, %s287
      %p299 = scmp.eq.s32.totalorder %s32, 3
      %p300 = por %p298, %p299
      %p302 = scmp.ne.s32.totalorder %s287, %s301
      %p303 = scmp.eq.s32.totalorder %s32, 0
      %p304 = por %p302, %p303
      %s306 = sadd.s32 %s305, 1
      %p309 = scmp.eq.s32.totalorder %s26, 3
      %p310 = scmp.ne.s32.totalorder %s305, %s307
      %p311 = scmp.eq.s32.totalorder %s26, 0
      %p312 = por %p310, %p311
      %p313 = scmp.ne.s32.totalorder %s305, %s307
      %p314 = scmp.eq.s32.totalorder %s31, 3
      %p315 = por %p313, %p314
      %p316 = scmp.ne.s32.totalorder %s307, %s308
      %p317 = scmp.eq.s32.totalorder %s31, 0
      %p318 = por %p316, %p317
      %p319 = scmp.ne.s32.totalorder %s307, %s308
      %p320 = scmp.eq.s32.totalorder %s32, 3
      %p321 = por %p319, %p320
      %p323 = scmp.ne.s32.totalorder %s308, %s322
      %p324 = scmp.eq.s32.totalorder %s32, 0
      %p325 = por %p323, %p324
      %s327 = sadd.s32 %s326, 1
      %p330 = scmp.eq.s32.totalorder %s26, 3
      %p331 = scmp.ne.s32.totalorder %s326, %s328
      %p332 = scmp.eq.s32.totalorder %s26, 0
      %p333 = por %p331, %p332
      %p334 = scmp.ne.s32.totalorder %s326, %s328
      %p335 = scmp.eq.s32.totalorder %s31, 3
      %p336 = por %p334, %p335
      %p337 = scmp.ne.s32.totalorder %s328, %s329
      %p338 = scmp.eq.s32.totalorder %s31, 0
      %p339 = por %p337, %p338
      %p340 = scmp.ne.s32.totalorder %s328, %s329
      %p341 = scmp.eq.s32.totalorder %s32, 3
      %p342 = por %p340, %p341
      %p344 = scmp.ne.s32.totalorder %s329, %s343
      %p345 = scmp.eq.s32.totalorder %s32, 0
      %p346 = por %p344, %p345
      %s348 = sadd.s32 %s347, 1
      %p351 = scmp.eq.s32.totalorder %s26, 3
      %p352 = scmp.ne.s32.totalorder %s347, %s349
      %p353 = scmp.eq.s32.totalorder %s26, 0
      %p354 = por %p352, %p353
      %p355 = scmp.ne.s32.totalorder %s347, %s349
      %p356 = scmp.eq.s32.totalorder %s31, 3
      %p357 = por %p355, %p356
      %p358 = scmp.ne.s32.totalorder %s349, %s350
      %p359 = scmp.eq.s32.totalorder %s31, 0
      %p360 = por %p358, %p359
      %p361 = scmp.ne.s32.totalorder %s349, %s350
      %p362 = scmp.eq.s32.totalorder %s32, 3
      %p363 = por %p361, %p362
      %p365 = scmp.ne.s32.totalorder %s350, %s364
      %p366 = scmp.eq.s32.totalorder %s32, 0
      %p367 = por %p365, %p366
      %s369 = sadd.s32 %s368, 1
      %p372 = scmp.eq.s32.totalorder %s26, 3
      %p373 = scmp.ne.s32.totalorder %s368, %s370
      %p374 = scmp.eq.s32.totalorder %s26, 0
      %p375 = por %p373, %p374
      %p376 = scmp.ne.s32.totalorder %s368, %s370
      %p377 = scmp.eq.s32.totalorder %s31, 3
      %p378 = por %p376, %p377
      %p379 = scmp.ne.s32.totalorder %s370, %s371
      %p380 = scmp.eq.s32.totalorder %s31, 0
      %p381 = por %p379, %p380
      %p382 = scmp.ne.s32.totalorder %s370, %s371
      %p383 = scmp.eq.s32.totalorder %s32, 3
      %p384 = por %p382, %p383
      %p386 = scmp.ne.s32.totalorder %s371, %s385
      %p387 = scmp.eq.s32.totalorder %s32, 0
      %p388 = por %p386, %p387
      %s390 = sadd.s32 %s389, 1
      %p393 = scmp.eq.s32.totalorder %s26, 3
      %p394 = scmp.ne.s32.totalorder %s389, %s391
      %p395 = scmp.eq.s32.totalorder %s26, 0
      %p396 = por %p394, %p395
      %p397 = scmp.ne.s32.totalorder %s389, %s391
      %p398 = scmp.eq.s32.totalorder %s31, 3
      %p399 = por %p397, %p398
      %p400 = scmp.ne.s32.totalorder %s391, %s392
      %p401 = scmp.eq.s32.totalorder %s31, 0
      %p402 = por %p400, %p401
      %p403 = scmp.ne.s32.totalorder %s391, %s392
      %p404 = scmp.eq.s32.totalorder %s32, 3
      %p405 = por %p403, %p404
      %p407 = scmp.ne.s32.totalorder %s392, %s406
      %p408 = scmp.eq.s32.totalorder %s32, 0
      %p409 = por %p407, %p408
      %s410 = ssub.s32 %s33, %s45
      %s411 = ssub.s32 %s34, %s41
      %s412 = sor.u32 %s410, %s411
      %p413 = scmp.eq.s32.totalorder %s412, 0
      %s415 = sadd.s32 %s414, 1
      %s416 = scalar_select %p413, %s414, %s415
      %p419 = pneg %p413
      %p420 = scmp.eq.s32.totalorder %s26, 3
      %p421 = por %p419, %p420
      %p422 = scmp.ne.s32.totalorder %s414, %s417
      %p423 = scmp.eq.s32.totalorder %s26, 0
      %p424 = por %p422, %p423
      %p425 = scmp.ne.s32.totalorder %s414, %s417
      %p426 = scmp.eq.s32.totalorder %s31, 3
      %p427 = por %p425, %p426
      %p428 = scmp.ne.s32.totalorder %s417, %s418
      %p429 = scmp.eq.s32.totalorder %s31, 0
      %p430 = por %p428, %p429
      %p431 = scmp.ne.s32.totalorder %s417, %s418
      %p432 = scmp.eq.s32.totalorder %s32, 3
      %p433 = por %p431, %p432
      %p435 = scmp.ne.s32.totalorder %s418, %s434
      %p436 = scmp.eq.s32.totalorder %s32, 0
      %p437 = por %p435, %p436
      %p438 = scmp.le.s32.totalorder 1, %s26
      %p439 = scmp.lt.s32.totalorder %s26, 5
      %p440 = pnand %p438, %p439
      %p441 = pneg %p440
      // Predicated region
      $region9: #{tpu_custom_call.1} parent=5 // pred_check
        _
      $region10: #{tpu_custom_call.1} parent=5 // pred_check_branch
        %443 = sbr.rel (%p440) target = $region12
      $region11: #{tpu_custom_call.1} parent=5 // pred_region
        %s444 = ssub.s32 %s26, 1
        // Predicated region
        $region13: #{tpu_custom_call.1} parent=11 // pred_check
          %p445 = pneg %p87
        $region14: #{tpu_custom_call.1} parent=11 // pred_check_branch
          %447 = sbr.rel (%p445) target = $region16
        $region15: #{tpu_custom_call.1} parent=11 // pred_region
          _
        $region16: #{tpu_custom_call.1} parent=11 // pred_fallthru
          _
        // Predicated region
        $region17: #{tpu_custom_call.1} parent=11 // pred_check
          %p448 = pneg %p108
        $region18: #{tpu_custom_call.1} parent=11 // pred_check_branch
          %450 = sbr.rel (%p448) target = $region20
        $region19: #{tpu_custom_call.1} parent=11 // pred_region
          _
        $region20: #{tpu_custom_call.1} parent=11 // pred_fallthru
          _
        // Predicated region
        $region21: #{tpu_custom_call.1} parent=11 // pred_check
          %p451 = pneg %p129
        $region22: #{tpu_custom_call.1} parent=11 // pred_check_branch
          %453 = sbr.rel (%p451) target = $region24
        $region23: #{tpu_custom_call.1} parent=11 // pred_region
          _
        $region24: #{tpu_custom_call.1} parent=11 // pred_fallthru
          _
        // Predicated region
        $region25: #{tpu_custom_call.1} parent=11 // pred_check
          %p454 = pneg %p150
        $region26: #{tpu_custom_call.1} parent=11 // pred_check_branch
          %456 = sbr.rel (%p454) target = $region28
        $region27: #{tpu_custom_call.1} parent=11 // pred_region
          _
        $region28: #{tpu_custom_call.1} parent=11 // pred_fallthru
          _
        // Predicated region
        $region29: #{tpu_custom_call.1} parent=11 // pred_check
          %p457 = pneg %p171
        $region30: #{tpu_custom_call.1} parent=11 // pred_check_branch
          %459 = sbr.rel (%p457) target = $region32
        $region31: #{tpu_custom_call.1} parent=11 // pred_region
          _
        $region32: #{tpu_custom_call.1} parent=11 // pred_fallthru
          _
        // Predicated region
        $region33: #{tpu_custom_call.1} parent=11 // pred_check
          %p460 = pneg %p192
        $region34: #{tpu_custom_call.1} parent=11 // pred_check_branch
          %462 = sbr.rel (%p460) target = $region36
        $region35: #{tpu_custom_call.1} parent=11 // pred_region
          _
        $region36: #{tpu_custom_call.1} parent=11 // pred_fallthru
          _
        // Predicated region
        $region37: #{tpu_custom_call.1} parent=11 // pred_check
          %p463 = pneg %p213
        $region38: #{tpu_custom_call.1} parent=11 // pred_check_branch
          %465 = sbr.rel (%p463) target = $region40
        $region39: #{tpu_custom_call.1} parent=11 // pred_region
          _
        $region40: #{tpu_custom_call.1} parent=11 // pred_fallthru
          _
        // Predicated region
        $region41: #{tpu_custom_call.1} parent=11 // pred_check
          %p466 = pneg %p234
        $region42: #{tpu_custom_call.1} parent=11 // pred_check_branch
          %468 = sbr.rel (%p466) target = $region44
        $region43: #{tpu_custom_call.1} parent=11 // pred_region
          _
        $region44: #{tpu_custom_call.1} parent=11 // pred_fallthru
          _
        // Predicated region
        $region45: #{tpu_custom_call.1} parent=11 // pred_check
          %p469 = pneg %p255
        $region46: #{tpu_custom_call.1} parent=11 // pred_check_branch
          %471 = sbr.rel (%p469) target = $region48
        $region47: #{tpu_custom_call.1} parent=11 // pred_region
          _
        $region48: #{tpu_custom_call.1} parent=11 // pred_fallthru
          _
        // Predicated region
        $region49: #{tpu_custom_call.1} parent=11 // pred_check
          %p472 = pneg %p276
        $region50: #{tpu_custom_call.1} parent=11 // pred_check_branch
          %474 = sbr.rel (%p472) target = $region52
        $region51: #{tpu_custom_call.1} parent=11 // pred_region
          _
        $region52: #{tpu_custom_call.1} parent=11 // pred_fallthru
          _
        // Predicated region
        $region53: #{tpu_custom_call.1} parent=11 // pred_check
          %p475 = pneg %p297
        $region54: #{tpu_custom_call.1} parent=11 // pred_check_branch
          %477 = sbr.rel (%p475) target = $region56
        $region55: #{tpu_custom_call.1} parent=11 // pred_region
          _
        $region56: #{tpu_custom_call.1} parent=11 // pred_fallthru
          _
        // Predicated region
        $region57: #{tpu_custom_call.1} parent=11 // pred_check
          %p478 = pneg %p318
        $region58: #{tpu_custom_call.1} parent=11 // pred_check_branch
          %480 = sbr.rel (%p478) target = $region60
        $region59: #{tpu_custom_call.1} parent=11 // pred_region
          _
        $region60: #{tpu_custom_call.1} parent=11 // pred_fallthru
          _
        // Predicated region
        $region61: #{tpu_custom_call.1} parent=11 // pred_check
          %p481 = pneg %p339
        $region62: #{tpu_custom_call.1} parent=11 // pred_check_branch
          %483 = sbr.rel (%p481) target = $region64
        $region63: #{tpu_custom_call.1} parent=11 // pred_region
          _
        $region64: #{tpu_custom_call.1} parent=11 // pred_fallthru
          _
        // Predicated region
        $region65: #{tpu_custom_call.1} parent=11 // pred_check
          %p484 = pneg %p360
        $region66: #{tpu_custom_call.1} parent=11 // pred_check_branch
          %486 = sbr.rel (%p484) target = $region68
        $region67: #{tpu_custom_call.1} parent=11 // pred_region
          _
        $region68: #{tpu_custom_call.1} parent=11 // pred_fallthru
          _
        // Predicated region
        $region69: #{tpu_custom_call.1} parent=11 // pred_check
          %p487 = pneg %p381
        $region70: #{tpu_custom_call.1} parent=11 // pred_check_branch
          %489 = sbr.rel (%p487) target = $region72
        $region71: #{tpu_custom_call.1} parent=11 // pred_region
          _
        $region72: #{tpu_custom_call.1} parent=11 // pred_fallthru
          _
        // Predicated region
        $region73: #{tpu_custom_call.1} parent=11 // pred_check
          %p490 = pneg %p402
        $region74: #{tpu_custom_call.1} parent=11 // pred_check_branch
          %492 = sbr.rel (%p490) target = $region76
        $region75: #{tpu_custom_call.1} parent=11 // pred_region
          _
        $region76: #{tpu_custom_call.1} parent=11 // pred_fallthru
          _
      $region12: #{tpu_custom_call.1} parent=5 // pred_fallthru
        _
      %p493 = scmp.lt.s32.totalorder %s26, 4
      // Predicated region
      $region77: #{tpu_custom_call.1} parent=5 // pred_check
        %p494 = pneg %p493
      $region78: #{tpu_custom_call.1} parent=5 // pred_check_branch
        %496 = sbr.rel (%p494) target = $region80
      $region79: #{tpu_custom_call.1} parent=5 // pred_region
        // Predicated region
        $region81: #{tpu_custom_call.1} parent=79 // pred_check
          %p497 = pneg %p60
        $region82: #{tpu_custom_call.1} parent=79 // pred_check_branch
          %499 = sbr.rel (%p497) target = $region84
        $region83: #{tpu_custom_call.1} parent=79 // pred_region
          %p500 = scmp.lt.s32.totalorder %s33, 1
          %s501 = scalar_select %p500, %s33, 1
          %p502 = scmp.lt.s32.totalorder %s34, 1
          %s503 = scalar_select %p502, %s34, 1
          %s504 = smul.addr %s501, 2
          %s505 = sadd.s32 %s503, %s504
          %s506 = smul.addr %s505, 8
          %s507 = scalar_lea.vmem %s0, %s506
        $region84: #{tpu_custom_call.1} parent=79 // pred_fallthru
          _
      $region80: #{tpu_custom_call.1} parent=5 // pred_fallthru
        _
      %p508 = scmp.le.s32.totalorder 1, %s26
      %p509 = scmp.lt.s32.totalorder %s26, 5
      %p510 = pnand %p508, %p509
      %p511 = pneg %p510
      // Predicated region
      $region85: #{tpu_custom_call.1} parent=5 // pred_check
        _
      $region86: #{tpu_custom_call.1} parent=5 // pred_check_branch
        %513 = sbr.rel (%p510) target = $region88
      $region87: #{tpu_custom_call.1} parent=5 // pred_region
        %s514 = ssub.s32 %s26, 1
        %p515 = scmp.lt.s32.totalorder %s35, 1
        %s516 = scalar_select %p515, %s35, 1
        %p517 = scmp.lt.s32.totalorder %s36, 1
        %s518 = scalar_select %p517, %s36, 1
        %s519 = smul.addr %s516, 2
        %s520 = sadd.s32 %s518, %s519
        %s521 = smul.addr %s520, 8
        %s522 = scalar_lea.vmem %s0, %s521
        %p523 = pneg %p66
        %p524 = pneg %p63
        %p525 = pneg %p87
        %p526 = pneg %p84
        %p527 = pneg %p108
        %p528 = pneg %p105
        %p529 = pneg %p129
        %p530 = pneg %p126
        %p531 = pneg %p150
        %p532 = pneg %p147
        %p533 = pneg %p171
        %p534 = pneg %p168
        %p535 = pneg %p192
        %p536 = pneg %p189
        %p537 = pneg %p213
        %p538 = pneg %p210
        %p539 = pneg %p234
        %p540 = pneg %p231
        %p541 = pneg %p255
        %p542 = pneg %p252
        %p543 = pneg %p276
        %p544 = pneg %p273
        %p545 = pneg %p297
        %p546 = pneg %p294
        %p547 = pneg %p318
        %p548 = pneg %p315
        %p549 = pneg %p339
        %p550 = pneg %p336
        %p551 = pneg %p360
        %p552 = pneg %p357
        %p553 = pneg %p381
        %p554 = pneg %p378
        %p555 = pneg %p402
        %p556 = pneg %p399
        %p557 = pneg %p430
        %p558 = pneg %p427
        %s559 = sand.u32 %s417, 1
        %s560 = scalar_lea.sflag [#allocation8], %s559
        %s561 = sand.u32 %s417, 1
        %s562 = smul.addr %s561, 8
        %s563 = scalar_lea.vmem [#allocation7], %s562
        %p564 = scmp.lt.s32.totalorder %s35, 1
        %s565 = scalar_select %p564, %s35, 1
        %p566 = scmp.lt.s32.totalorder %s36, 1
        %s567 = scalar_select %p566, %s36, 1
        %s568 = smul.addr %s565, 2
        %s569 = sadd.s32 %s567, %s568
        %s570 = smul.addr %s569, 8
        %s571 = scalar_lea.vmem %s0, %s570
        %v573 = vld [vmem:[%s571] sm:$0xff]
        %vm574 = vcmask 7168
        %575 = vst.msk [vmem:[#allocation4] sm:$0xff] %vm574, -1e+30
        %576 = vst.msk [vmem:[#allocation4 + $0x8] sm:$0xff] %vm574, -1e+30
        %577 = vst.msk [vmem:[#allocation4 + $0x10] sm:$0xff] %vm574, -1e+30
        %578 = vst.msk [vmem:[#allocation4 + $0x18] sm:$0xff] %vm574, -1e+30
        %579 = vst.msk [vmem:[#allocation5] sm:$0xff] %vm574, 0.0
        %580 = vst.msk [vmem:[#allocation5 + $0x8] sm:$0xff] %vm574, 0.0
        %581 = vst.msk [vmem:[#allocation5 + $0x10] sm:$0xff] %vm574, 0.0
        %582 = vst.msk [vmem:[#allocation5 + $0x18] sm:$0xff] %vm574, 0.0
        %vm583 = vcmask 64512
        %584 = vst.msk [vmem:[#allocation6] sm:$0xff] %vm583, 0.0
        %585 = vst.msk [vmem:[#allocation6 + $0x8] sm:$0xff] %vm583, 0.0
        %586 = vst.msk [vmem:[#allocation6 + $0x10] sm:$0xff] %vm583, 0.0
        %587 = vst.msk [vmem:[#allocation6 + $0x18] sm:$0xff] %vm583, 0.0
        %v588 = vld [vmem:[%s1] sm:$0x1]
        %v589 = vld [vmem:[%s2] sm:$0x1]
        %vm590 = vcmask 261120
        %v591 = vsel %vm590, %v573, 0.0
        %592 = vadd.xlane.f32.xlu0 %v591
        %v593 = vpop.xlane.xlu0 %592
        %v594 = vrcp.pop 32.0
        %v595 = vmul.f32 %v593, %v594
        %v596 = vsub.f32 %v573, %v595
        %v597 = vmul.f32 %v596, %v596
        %v598 = vsel %vm590, %v597, 0.0
        %599 = vadd.xlane.f32.xlu0 %v598
        %v600 = vpop.xlane.xlu0 %599
        %v601 = vmul.f32 %v600, %v594
        %v602 = vadd.f32 %v601, 1e-05
        %v603 = vrsqrt.pop %v602
        %v604 = vmul.f32 %v596, %v603
        %v606 = vlaneseq
        %v607 = vshrl.u32 %v606, 7
        %v608 = vsub.s32 0, %v607
        %v609 = vrot.slane %v588, %v608
        %v611 = vmul.f32 %v604, %v609
        %v613 = vlaneseq
        %v614 = vshrl.u32 %v613, 7
        %v615 = vsub.s32 0, %v614
        %v616 = vrot.slane %v589, %v615
        %v618 = vadd.f32 %v611, %v616
        %v619 = vpack.c.bf16 %v618, %v618
        %s620 = smul.u32 %s36, 8
        %v621 = vld [vmem:[%s3] sm:$0xf]
        %v622 = vld [vmem:[%s3 + $0x4] sm:$0xf]
        %v623 = vld [vmem:[%s3 + $0x8] sm:$0xf]
        %v624 = vld [vmem:[%s3 + $0xc] sm:$0xf]
        %v625 = vld [vmem:[%s4] sm:$0x1]
        %v627 = vlaneseq
        %v628 = vshrl.u32 %v627, 7
        %v629 = vsub.s32 0, %v628
        %v630 = vrot.slane %v625, %v629
        %v636 = vunpack.c.l.b16 %v621
        %v637 = vunpack.c.l.b16 %v622
        %v638 = vunpack.c.l.b16 %v623
        %v639 = vunpack.c.l.b16 %v624
        %v640 = vpack.c.b16 %v637, %v636
        %v641 = vpack.c.b16 %v639, %v638
        %v645 = vsel %vm590, %v619, 0
        %647 = vmatprep.subr.bf16.mxu0 0
        %648 = vmatpush1.bf16.msra.mxu0 0
        %649 = vmatprep.subr.bf16.mxu0 0
        %650 = vmatpush1.bf16.msra.mxu0 0
        %651 = vmatprep.subr.bf16.mxu0 0
        %652 = vmatpush1.bf16.msra.mxu0 0
        %653 = vmatprep.subr.bf16.mxu0 0
        %654 = vmatpush1.bf16.msra.mxu0 0
        %655 = vmatprep.subr.bf16.mxu0 0
        %656 = vmatpush1.bf16.msra.mxu0 0
        %657 = vmatprep.subr.bf16.mxu0 0
        %658 = vmatpush1.bf16.msra.mxu0 0
        %659 = vmatprep.subr.bf16.mxu0 0
        %660 = vmatpush1.bf16.msra.mxu0 %v641
        %661 = vmatprep.subr.bf16.mxu0 0
        %662 = vmatpush1.bf16.msra.mxu0 %v640
        %663 = vmatprep.subr.bf16.mxu0 0
        %664 = vmatpush2.bf16.msra.mxu0 0
        %665 = vmatprep.subr.bf16.mxu0 0
        %666 = vmatpush2.bf16.msra.mxu0 0
        %667 = vmatprep.subr.bf16.mxu0 0
        %668 = vmatpush2.bf16.msra.mxu0 0
        %669 = vmatprep.subr.bf16.mxu0 0
        %670 = vmatpush2.bf16.msra.mxu0 0
        %671 = vmatprep.subr.bf16.mxu0 0
        %672 = vmatpush2.bf16.msra.mxu0 0
        %673 = vmatprep.subr.bf16.mxu0 0
        %674 = vmatpush2.bf16.msra.mxu0 0
        %675 = vmatprep.subr.bf16.mxu0 0
        %676 = vmatpush2.bf16.msra.mxu0 0
        %677 = vmatprep.subr.bf16.mxu0 0
        %678 = vmatpush2.bf16.msra.mxu0 0
        %679 = vmatprep.mubr.bf16.mxu0 0
        %680 = vmatmul.mubr.bf16.gmra.mxu0 %v645
        %v681 = vpop.f32.mrf.mxu0
        %v682 = vadd.f32 %v630, %v681
        %v683 = vpop.f32.mrf.mxu0
        %v684 = vpop.f32.mrf.mxu0
        %v685 = vpop.f32.mrf.mxu0
        %686 = vdwg.mxu0
        %v687 = vld [vmem:[%s5] sm:$0xf]
        %v688 = vld [vmem:[%s5 + $0x4] sm:$0xf]
        %v689 = vld [vmem:[%s5 + $0x8] sm:$0xf]
        %v690 = vld [vmem:[%s5 + $0xc] sm:$0xf]
        %v691 = vld [vmem:[%s6] sm:$0x1]
        %v693 = vlaneseq
        %v694 = vshrl.u32 %v693, 7
        %v695 = vsub.s32 0, %v694
        %v696 = vrot.slane %v691, %v695
        %v702 = vunpack.c.l.b16 %v687
        %v703 = vunpack.c.l.b16 %v688
        %v704 = vunpack.c.l.b16 %v689
        %v705 = vunpack.c.l.b16 %v690
        %v706 = vpack.c.b16 %v703, %v702
        %v707 = vpack.c.b16 %v705, %v704
        %710 = vmatprep.subr.bf16.mxu0 0
        %711 = vmatpush1.bf16.msra.mxu0 0
        %712 = vmatprep.subr.bf16.mxu0 0
        %713 = vmatpush1.bf16.msra.mxu0 0
        %714 = vmatprep.subr.bf16.mxu0 0
        %715 = vmatpush1.bf16.msra.mxu0 0
        %716 = vmatprep.subr.bf16.mxu0 0
        %717 = vmatpush1.bf16.msra.mxu0 0
        %718 = vmatprep.subr.bf16.mxu0 0
        %719 = vmatpush1.bf16.msra.mxu0 0
        %720 = vmatprep.subr.bf16.mxu0 0
        %721 = vmatpush1.bf16.msra.mxu0 0
        %722 = vmatprep.subr.bf16.mxu0 0
        %723 = vmatpush1.bf16.msra.mxu0 %v707
        %724 = vmatprep.subr.bf16.mxu0 0
        %725 = vmatpush1.bf16.msra.mxu0 %v706
        %726 = vmatprep.subr.bf16.mxu0 0
        %727 = vmatpush2.bf16.msra.mxu0 0
        %728 = vmatprep.subr.bf16.mxu0 0
        %729 = vmatpush2.bf16.msra.mxu0 0
        %730 = vmatprep.subr.bf16.mxu0 0
        %731 = vmatpush2.bf16.msra.mxu0 0
        %732 = vmatprep.subr.bf16.mxu0 0
        %733 = vmatpush2.bf16.msra.mxu0 0
        %734 = vmatprep.subr.bf16.mxu0 0
        %735 = vmatpush2.bf16.msra.mxu0 0
        %736 = vmatprep.subr.bf16.mxu0 0
        %737 = vmatpush2.bf16.msra.mxu0 0
        %738 = vmatprep.subr.bf16.mxu0 0
        %739 = vmatpush2.bf16.msra.mxu0 0
        %740 = vmatprep.subr.bf16.mxu0 0
        %741 = vmatpush2.bf16.msra.mxu0 0
        %742 = vmatprep.mubr.bf16.mxu0 0
        %743 = vmatmul.mubr.bf16.gmra.mxu0 %v645
        %v744 = vpop.f32.mrf.mxu0
        %v745 = vadd.f32 %v696, %v744
        %v746 = vpop.f32.mrf.mxu0
        %v747 = vpop.f32.mrf.mxu0
        %v748 = vpop.f32.mrf.mxu0
        %749 = vdwg.mxu0
        %v750 = vld [vmem:[%s7] sm:$0xf]
        %v751 = vld [vmem:[%s7 + $0x4] sm:$0xf]
        %v752 = vld [vmem:[%s7 + $0x8] sm:$0xf]
        %v753 = vld [vmem:[%s7 + $0xc] sm:$0xf]
        %v754 = vld [vmem:[%s8] sm:$0x1]
        %v756 = vlaneseq
        %v757 = vshrl.u32 %v756, 7
        %v758 = vsub.s32 0, %v757
        %v759 = vrot.slane %v754, %v758
        %v765 = vunpack.c.l.b16 %v750
        %v766 = vunpack.c.l.b16 %v751
        %v767 = vunpack.c.l.b16 %v752
        %v768 = vunpack.c.l.b16 %v753
        %v769 = vpack.c.b16 %v766, %v765
        %v770 = vpack.c.b16 %v768, %v767
        %773 = vmatprep.subr.bf16.mxu0 0
        %774 = vmatpush1.bf16.msra.mxu0 0
        %775 = vmatprep.subr.bf16.mxu0 0
        %776 = vmatpush1.bf16.msra.mxu0 0
        %777 = vmatprep.subr.bf16.mxu0 0
        %778 = vmatpush1.bf16.msra.mxu0 0
        %779 = vmatprep.subr.bf16.mxu0 0
        %780 = vmatpush1.bf16.msra.mxu0 0
        %781 = vmatprep.subr.bf16.mxu0 0
        %782 = vmatpush1.bf16.msra.mxu0 0
        %783 = vmatprep.subr.bf16.mxu0 0
        %784 = vmatpush1.bf16.msra.mxu0 0
        %785 = vmatprep.subr.bf16.mxu0 0
        %786 = vmatpush1.bf16.msra.mxu0 %v770
        %787 = vmatprep.subr.bf16.mxu0 0
        %788 = vmatpush1.bf16.msra.mxu0 %v769
        %789 = vmatprep.subr.bf16.mxu0 0
        %790 = vmatpush2.bf16.msra.mxu0 0
        %791 = vmatprep.subr.bf16.mxu0 0
        %792 = vmatpush2.bf16.msra.mxu0 0
        %793 = vmatprep.subr.bf16.mxu0 0
        %794 = vmatpush2.bf16.msra.mxu0 0
        %795 = vmatprep.subr.bf16.mxu0 0
        %796 = vmatpush2.bf16.msra.mxu0 0
        %797 = vmatprep.subr.bf16.mxu0 0
        %798 = vmatpush2.bf16.msra.mxu0 0
        %799 = vmatprep.subr.bf16.mxu0 0
        %800 = vmatpush2.bf16.msra.mxu0 0
        %801 = vmatprep.subr.bf16.mxu0 0
        %802 = vmatpush2.bf16.msra.mxu0 0
        %803 = vmatprep.subr.bf16.mxu0 0
        %804 = vmatpush2.bf16.msra.mxu0 0
        %805 = vmatprep.mubr.bf16.mxu0 0
        %806 = vmatmul.mubr.bf16.gmra.mxu0 %v645
        %v807 = vpop.f32.mrf.mxu0
        %v808 = vadd.f32 %v759, %v807
        %v809 = vpop.f32.mrf.mxu0
        %v810 = vpop.f32.mrf.mxu0
        %v811 = vpop.f32.mrf.mxu0
        %812 = vdwg.mxu0
        %v813 = vmul.f32 %v682, 0.35355338
        %v814 = vpack.c.bf16 %v813, %v813
        %v815 = vpack.c.bf16 %v745, %v745
        %s816 = sshra.s32 %s620, 3
        %s817 = sand.u32 %s620, 7
        %s818 = smul.addr %s816, 4
        %s819 = scalar_lea.vmem [#allocation2], %s818
        %vm820 = vcmask 60416
        %821 = vst.msk [vmem:[%s819] sm:$0xf] %vm820, %v815
        %v822 = vpack.c.bf16 %v808, %v808
        %s823 = smul.addr %s816, 4
        %s824 = scalar_lea.vmem [#allocation3], %s823
        %825 = vst.msk [vmem:[%s824] sm:$0xf] %vm820, %v822
        %s826 = scalar_lea.vmem %s3, 16
        %v827 = vld [vmem:[%s826] sm:$0xf]
        %v828 = vld [vmem:[%s826 + $0x4] sm:$0xf]
        %v829 = vld [vmem:[%s826 + $0x8] sm:$0xf]
        %v830 = vld [vmem:[%s826 + $0xc] sm:$0xf]
        %s831 = scalar_lea.vmem %s4, 1
        %v832 = vld [vmem:[%s831] sm:$0x1]
        %v834 = vlaneseq
        %v835 = vshrl.u32 %v834, 7
        %v836 = vsub.s32 0, %v835
        %v837 = vrot.slane %v832, %v836
        %v843 = vunpack.c.l.b16 %v827
        %v844 = vunpack.c.l.b16 %v828
        %v845 = vunpack.c.l.b16 %v829
        %v846 = vunpack.c.l.b16 %v830
        %v847 = vpack.c.b16 %v844, %v843
        %v848 = vpack.c.b16 %v846, %v845
        %851 = vmatprep.subr.bf16.mxu0 0
        %852 = vmatpush1.bf16.msra.mxu0 0
        %853 = vmatprep.subr.bf16.mxu0 0
        %854 = vmatpush1.bf16.msra.mxu0 0
        %855 = vmatprep.subr.bf16.mxu0 0
        %856 = vmatpush1.bf16.msra.mxu0 0
        %857 = vmatprep.subr.bf16.mxu0 0
        %858 = vmatpush1.bf16.msra.mxu0 0
        %859 = vmatprep.subr.bf16.mxu0 0
        %860 = vmatpush1.bf16.msra.mxu0 0
        %861 = vmatprep.subr.bf16.mxu0 0
        %862 = vmatpush1.bf16.msra.mxu0 0
        %863 = vmatprep.subr.bf16.mxu0 0
        %864 = vmatpush1.bf16.msra.mxu0 %v848
        %865 = vmatprep.subr.bf16.mxu0 0
        %866 = vmatpush1.bf16.msra.mxu0 %v847
        %867 = vmatprep.subr.bf16.mxu0 0
        %868 = vmatpush2.bf16.msra.mxu0 0
        %869 = vmatprep.subr.bf16.mxu0 0
        %870 = vmatpush2.bf16.msra.mxu0 0
        %871 = vmatprep.subr.bf16.mxu0 0
        %872 = vmatpush2.bf16.msra.mxu0 0
        %873 = vmatprep.subr.bf16.mxu0 0
        %874 = vmatpush2.bf16.msra.mxu0 0
        %875 = vmatprep.subr.bf16.mxu0 0
        %876 = vmatpush2.bf16.msra.mxu0 0
        %877 = vmatprep.subr.bf16.mxu0 0
        %878 = vmatpush2.bf16.msra.mxu0 0
        %879 = vmatprep.subr.bf16.mxu0 0
        %880 = vmatpush2.bf16.msra.mxu0 0
        %881 = vmatprep.subr.bf16.mxu0 0
        %882 = vmatpush2.bf16.msra.mxu0 0
        %883 = vmatprep.mubr.bf16.mxu0 0
        %884 = vmatmul.mubr.bf16.gmra.mxu0 %v645
        %v885 = vpop.f32.mrf.mxu0
        %v886 = vadd.f32 %v837, %v885
        %v887 = vpop.f32.mrf.mxu0
        %v888 = vpop.f32.mrf.mxu0
        %v889 = vpop.f32.mrf.mxu0
        %890 = vdwg.mxu0
        %s891 = scalar_lea.vmem %s5, 16
        %v892 = vld [vmem:[%s891] sm:$0xf]
        %v893 = vld [vmem:[%s891 + $0x4] sm:$0xf]
        %v894 = vld [vmem:[%s891 + $0x8] sm:$0xf]
        %v895 = vld [vmem:[%s891 + $0xc] sm:$0xf]
        %s896 = scalar_lea.vmem %s6, 1
        %v897 = vld [vmem:[%s896] sm:$0x1]
        %v899 = vlaneseq
        %v900 = vshrl.u32 %v899, 7
        %v901 = vsub.s32 0, %v900
        %v902 = vrot.slane %v897, %v901
        %v908 = vunpack.c.l.b16 %v892
        %v909 = vunpack.c.l.b16 %v893
        %v910 = vunpack.c.l.b16 %v894
        %v911 = vunpack.c.l.b16 %v895
        %v912 = vpack.c.b16 %v909, %v908
        %v913 = vpack.c.b16 %v911, %v910
        %916 = vmatprep.subr.bf16.mxu0 0
        %917 = vmatpush1.bf16.msra.mxu0 0
        %918 = vmatprep.subr.bf16.mxu0 0
        %919 = vmatpush1.bf16.msra.mxu0 0
        %920 = vmatprep.subr.bf16.mxu0 0
        %921 = vmatpush1.bf16.msra.mxu0 0
        %922 = vmatprep.subr.bf16.mxu0 0
        %923 = vmatpush1.bf16.msra.mxu0 0
        %924 = vmatprep.subr.bf16.mxu0 0
        %925 = vmatpush1.bf16.msra.mxu0 0
        %926 = vmatprep.subr.bf16.mxu0 0
        %927 = vmatpush1.bf16.msra.mxu0 0
        %928 = vmatprep.subr.bf16.mxu0 0
        %929 = vmatpush1.bf16.msra.mxu0 %v913
        %930 = vmatprep.subr.bf16.mxu0 0
        %931 = vmatpush1.bf16.msra.mxu0 %v912
        %932 = vmatprep.subr.bf16.mxu0 0
        %933 = vmatpush2.bf16.msra.mxu0 0
        %934 = vmatprep.subr.bf16.mxu0 0
        %935 = vmatpush2.bf16.msra.mxu0 0
        %936 = vmatprep.subr.bf16.mxu0 0
        %937 = vmatpush2.bf16.msra.mxu0 0
        %938 = vmatprep.subr.bf16.mxu0 0
        %939 = vmatpush2.bf16.msra.mxu0 0
        %940 = vmatprep.subr.bf16.mxu0 0
        %941 = vmatpush2.bf16.msra.mxu0 0
        %942 = vmatprep.subr.bf16.mxu0 0
        %943 = vmatpush2.bf16.msra.mxu0 0
        %944 = vmatprep.subr.bf16.mxu0 0
        %945 = vmatpush2.bf16.msra.mxu0 0
        %946 = vmatprep.subr.bf16.mxu0 0
        %947 = vmatpush2.bf16.msra.mxu0 0
        %948 = vmatprep.mubr.bf16.mxu0 0
        %949 = vmatmul.mubr.bf16.gmra.mxu0 %v645
        %v950 = vpop.f32.mrf.mxu0
        %v951 = vadd.f32 %v902, %v950
        %v952 = vpop.f32.mrf.mxu0
        %v953 = vpop.f32.mrf.mxu0
        %v954 = vpop.f32.mrf.mxu0
        %955 = vdwg.mxu0
        %s956 = scalar_lea.vmem %s7, 16
        %v957 = vld [vmem:[%s956] sm:$0xf]
        %v958 = vld [vmem:[%s956 + $0x4] sm:$0xf]
        %v959 = vld [vmem:[%s956 + $0x8] sm:$0xf]
        %v960 = vld [vmem:[%s956 + $0xc] sm:$0xf]
        %s961 = scalar_lea.vmem %s8, 1
        %v962 = vld [vmem:[%s961] sm:$0x1]
        %v964 = vlaneseq
        %v965 = vshrl.u32 %v964, 7
        %v966 = vsub.s32 0, %v965
        %v967 = vrot.slane %v962, %v966
        %v973 = vunpack.c.l.b16 %v957
        %v974 = vunpack.c.l.b16 %v958
        %v975 = vunpack.c.l.b16 %v959
        %v976 = vunpack.c.l.b16 %v960
        %v977 = vpack.c.b16 %v974, %v973
        %v978 = vpack.c.b16 %v976, %v975
        %981 = vmatprep.subr.bf16.mxu0 0
        %982 = vmatpush1.bf16.msra.mxu0 0
        %983 = vmatprep.subr.bf16.mxu0 0
        %984 = vmatpush1.bf16.msra.mxu0 0
        %985 = vmatprep.subr.bf16.mxu0 0
        %986 = vmatpush1.bf16.msra.mxu0 0
        %987 = vmatprep.subr.bf16.mxu0 0
        %988 = vmatpush1.bf16.msra.mxu0 0
        %989 = vmatprep.subr.bf16.mxu0 0
        %990 = vmatpush1.bf16.msra.mxu0 0
        %991 = vmatprep.subr.bf16.mxu0 0
        %992 = vmatpush1.bf16.msra.mxu0 0
        %993 = vmatprep.subr.bf16.mxu0 0
        %994 = vmatpush1.bf16.msra.mxu0 %v978
        %995 = vmatprep.subr.bf16.mxu0 0
        %996 = vmatpush1.bf16.msra.mxu0 %v977
        %997 = vmatprep.subr.bf16.mxu0 0
        %998 = vmatpush2.bf16.msra.mxu0 0
        %999 = vmatprep.subr.bf16.mxu0 0
        %1000 = vmatpush2.bf16.msra.mxu0 0
        %1001 = vmatprep.subr.bf16.mxu0 0
        %1002 = vmatpush2.bf16.msra.mxu0 0
        %1003 = vmatprep.subr.bf16.mxu0 0
        %1004 = vmatpush2.bf16.msra.mxu0 0
        %1005 = vmatprep.subr.bf16.mxu0 0
        %1006 = vmatpush2.bf16.msra.mxu0 0
        %1007 = vmatprep.subr.bf16.mxu0 0
        %1008 = vmatpush2.bf16.msra.mxu0 0
        %1009 = vmatprep.subr.bf16.mxu0 0
        %1010 = vmatpush2.bf16.msra.mxu0 0
        %1011 = vmatprep.subr.bf16.mxu0 0
        %1012 = vmatpush2.bf16.msra.mxu0 0
        %1013 = vmatprep.mubr.bf16.mxu0 0
        %1014 = vmatmul.mubr.bf16.gmra.mxu0 %v645
        %v1015 = vpop.f32.mrf.mxu0
        %v1016 = vadd.f32 %v967, %v1015
        %v1017 = vpop.f32.mrf.mxu0
        %v1018 = vpop.f32.mrf.mxu0
        %v1019 = vpop.f32.mrf.mxu0
        %1020 = vdwg.mxu0
        %v1021 = vmul.f32 %v886, 0.35355338
        %v1022 = vpack.c.bf16 %v1021, %v1021
        %v1023 = vpack.c.bf16 %v951, %v951
        %s1024 = sadd.s32 %s816, 2
        %s1025 = smul.addr %s1024, 4
        %s1026 = scalar_lea.vmem [#allocation2], %s1025
        %1027 = vst.msk [vmem:[%s1026] sm:$0xf] %vm820, %v1023
        %v1028 = vpack.c.bf16 %v1016, %v1016
        %s1029 = smul.addr %s1024, 4
        %s1030 = scalar_lea.vmem [#allocation3], %s1029
        %1031 = vst.msk [vmem:[%s1030] sm:$0xf] %vm820, %v1028
        %s1032 = scalar_lea.vmem %s3, 32
        %v1033 = vld [vmem:[%s1032] sm:$0xf]
        %v1034 = vld [vmem:[%s1032 + $0x4] sm:$0xf]
        %v1035 = vld [vmem:[%s1032 + $0x8] sm:$0xf]
        %v1036 = vld [vmem:[%s1032 + $0xc] sm:$0xf]
        %s1037 = scalar_lea.vmem %s4, 2
        %v1038 = vld [vmem:[%s1037] sm:$0x1]
        %v1040 = vlaneseq
        %v1041 = vshrl.u32 %v1040, 7
        %v1042 = vsub.s32 0, %v1041
        %v1043 = vrot.slane %v1038, %v1042
        %v1049 = vunpack.c.l.b16 %v1033
        %v1050 = vunpack.c.l.b16 %v1034
        %v1051 = vunpack.c.l.b16 %v1035
        %v1052 = vunpack.c.l.b16 %v1036
        %v1053 = vpack.c.b16 %v1050, %v1049
        %v1054 = vpack.c.b16 %v1052, %v1051
        %1057 = vmatprep.subr.bf16.mxu0 0
        %1058 = vmatpush1.bf16.msra.mxu0 0
        %1059 = vmatprep.subr.bf16.mxu0 0
        %1060 = vmatpush1.bf16.msra.mxu0 0
        %1061 = vmatprep.subr.bf16.mxu0 0
        %1062 = vmatpush1.bf16.msra.mxu0 0
        %1063 = vmatprep.subr.bf16.mxu0 0
        %1064 = vmatpush1.bf16.msra.mxu0 0
        %1065 = vmatprep.subr.bf16.mxu0 0
        %1066 = vmatpush1.bf16.msra.mxu0 0
        %1067 = vmatprep.subr.bf16.mxu0 0
        %1068 = vmatpush1.bf16.msra.mxu0 0
        %1069 = vmatprep.subr.bf16.mxu0 0
        %1070 = vmatpush1.bf16.msra.mxu0 %v1054
        %1071 = vmatprep.subr.bf16.mxu0 0
        %1072 = vmatpush1.bf16.msra.mxu0 %v1053
        %1073 = vmatprep.subr.bf16.mxu0 0
        %1074 = vmatpush2.bf16.msra.mxu0 0
        %1075 = vmatprep.subr.bf16.mxu0 0
        %1076 = vmatpush2.bf16.msra.mxu0 0
        %1077 = vmatprep.subr.bf16.mxu0 0
        %1078 = vmatpush2.bf16.msra.mxu0 0
        %1079 = vmatprep.subr.bf16.mxu0 0
        %1080 = vmatpush2.bf16.msra.mxu0 0
        %1081 = vmatprep.subr.bf16.mxu0 0
        %1082 = vmatpush2.bf16.msra.mxu0 0
        %1083 = vmatprep.subr.bf16.mxu0 0
        %1084 = vmatpush2.bf16.msra.mxu0 0
        %1085 = vmatprep.subr.bf16.mxu0 0
        %1086 = vmatpush2.bf16.msra.mxu0 0
        %1087 = vmatprep.subr.bf16.mxu0 0
        %1088 = vmatpush2.bf16.msra.mxu0 0
        %1089 = vmatprep.mubr.bf16.mxu0 0
        %1090 = vmatmul.mubr.bf16.gmra.mxu0 %v645
        %v1091 = vpop.f32.mrf.mxu0
        %v1092 = vadd.f32 %v1043, %v1091
        %v1093 = vpop.f32.mrf.mxu0
        %v1094 = vpop.f32.mrf.mxu0
        %v1095 = vpop.f32.mrf.mxu0
        %1096 = vdwg.mxu0
        %s1097 = scalar_lea.vmem %s5, 32
        %v1098 = vld [vmem:[%s1097] sm:$0xf]
        %v1099 = vld [vmem:[%s1097 + $0x4] sm:$0xf]
        %v1100 = vld [vmem:[%s1097 + $0x8] sm:$0xf]
        %v1101 = vld [vmem:[%s1097 + $0xc] sm:$0xf]
        %s1102 = scalar_lea.vmem %s6, 2
        %v1103 = vld [vmem:[%s1102] sm:$0x1]
        %v1105 = vlaneseq
        %v1106 = vshrl.u32 %v1105, 7
        %v1107 = vsub.s32 0, %v1106
        %v1108 = vrot.slane %v1103, %v1107
        %v1114 = vunpack.c.l.b16 %v1098
        %v1115 = vunpack.c.l.b16 %v1099
        %v1116 = vunpack.c.l.b16 %v1100
        %v1117 = vunpack.c.l.b16 %v1101
        %v1118 = vpack.c.b16 %v1115, %v1114
        %v1119 = vpack.c.b16 %v1117, %v1116
        %1122 = vmatprep.subr.bf16.mxu0 0
        %1123 = vmatpush1.bf16.msra.mxu0 0
        %1124 = vmatprep.subr.bf16.mxu0 0
        %1125 = vmatpush1.bf16.msra.mxu0 0
        %1126 = vmatprep.subr.bf16.mxu0 0
        %1127 = vmatpush1.bf16.msra.mxu0 0
        %1128 = vmatprep.subr.bf16.mxu0 0
        %1129 = vmatpush1.bf16.msra.mxu0 0
        %1130 = vmatprep.subr.bf16.mxu0 0
        %1131 = vmatpush1.bf16.msra.mxu0 0
        %1132 = vmatprep.subr.bf16.mxu0 0
        %1133 = vmatpush1.bf16.msra.mxu0 0
        %1134 = vmatprep.subr.bf16.mxu0 0
        %1135 = vmatpush1.bf16.msra.mxu0 %v1119
        %1136 = vmatprep.subr.bf16.mxu0 0
        %1137 = vmatpush1.bf16.msra.mxu0 %v1118
        %1138 = vmatprep.subr.bf16.mxu0 0
        %1139 = vmatpush2.bf16.msra.mxu0 0
        %1140 = vmatprep.subr.bf16.mxu0 0
        %1141 = vmatpush2.bf16.msra.mxu0 0
        %1142 = vmatprep.subr.bf16.mxu0 0
        %1143 = vmatpush2.bf16.msra.mxu0 0
        %1144 = vmatprep.subr.bf16.mxu0 0
        %1145 = vmatpush2.bf16.msra.mxu0 0
        %1146 = vmatprep.subr.bf16.mxu0 0
        %1147 = vmatpush2.bf16.msra.mxu0 0
        %1148 = vmatprep.subr.bf16.mxu0 0
        %1149 = vmatpush2.bf16.msra.mxu0 0
        %1150 = vmatprep.subr.bf16.mxu0 0
        %1151 = vmatpush2.bf16.msra.mxu0 0
        %1152 = vmatprep.subr.bf16.mxu0 0
        %1153 = vmatpush2.bf16.msra.mxu0 0
        %1154 = vmatprep.mubr.bf16.mxu0 0
        %1155 = vmatmul.mubr.bf16.gmra.mxu0 %v645
        %v1156 = vpop.f32.mrf.mxu0
        %v1157 = vadd.f32 %v1108, %v1156
        %v1158 = vpop.f32.mrf.mxu0
        %v1159 = vpop.f32.mrf.mxu0
        %v1160 = vpop.f32.mrf.mxu0
        %1161 = vdwg.mxu0
        %s1162 = scalar_lea.vmem %s7, 32
        %v1163 = vld [vmem:[%s1162] sm:$0xf]
        %v1164 = vld [vmem:[%s1162 + $0x4] sm:$0xf]
        %v1165 = vld [vmem:[%s1162 + $0x8] sm:$0xf]
        %v1166 = vld [vmem:[%s1162 + $0xc] sm:$0xf]
        %s1167 = scalar_lea.vmem %s8, 2
        %v1168 = vld [vmem:[%s1167] sm:$0x1]
        %v1170 = vlaneseq
        %v1171 = vshrl.u32 %v1170, 7
        %v1172 = vsub.s32 0, %v1171
        %v1173 = vrot.slane %v1168, %v1172
        %v1179 = vunpack.c.l.b16 %v1163
        %v1180 = vunpack.c.l.b16 %v1164
        %v1181 = vunpack.c.l.b16 %v1165
        %v1182 = vunpack.c.l.b16 %v1166
        %v1183 = vpack.c.b16 %v1180, %v1179
        %v1184 = vpack.c.b16 %v1182, %v1181
        %1187 = vmatprep.subr.bf16.mxu0 0
        %1188 = vmatpush1.bf16.msra.mxu0 0
        %1189 = vmatprep.subr.bf16.mxu0 0
        %1190 = vmatpush1.bf16.msra.mxu0 0
        %1191 = vmatprep.subr.bf16.mxu0 0
        %1192 = vmatpush1.bf16.msra.mxu0 0
        %1193 = vmatprep.subr.bf16.mxu0 0
        %1194 = vmatpush1.bf16.msra.mxu0 0
        %1195 = vmatprep.subr.bf16.mxu0 0
        %1196 = vmatpush1.bf16.msra.mxu0 0
        %1197 = vmatprep.subr.bf16.mxu0 0
        %1198 = vmatpush1.bf16.msra.mxu0 0
        %1199 = vmatprep.subr.bf16.mxu0 0
        %1200 = vmatpush1.bf16.msra.mxu0 %v1184
        %1201 = vmatprep.subr.bf16.mxu0 0
        %1202 = vmatpush1.bf16.msra.mxu0 %v1183
        %1203 = vmatprep.subr.bf16.mxu0 0
        %1204 = vmatpush2.bf16.msra.mxu0 0
        %1205 = vmatprep.subr.bf16.mxu0 0
        %1206 = vmatpush2.bf16.msra.mxu0 0
        %1207 = vmatprep.subr.bf16.mxu0 0
        %1208 = vmatpush2.bf16.msra.mxu0 0
        %1209 = vmatprep.subr.bf16.mxu0 0
        %1210 = vmatpush2.bf16.msra.mxu0 0
        %1211 = vmatprep.subr.bf16.mxu0 0
        %1212 = vmatpush2.bf16.msra.mxu0 0
        %1213 = vmatprep.subr.bf16.mxu0 0
        %1214 = vmatpush2.bf16.msra.mxu0 0
        %1215 = vmatprep.subr.bf16.mxu0 0
        %1216 = vmatpush2.bf16.msra.mxu0 0
        %1217 = vmatprep.subr.bf16.mxu0 0
        %1218 = vmatpush2.bf16.msra.mxu0 0
        %1219 = vmatprep.mubr.bf16.mxu0 0
        %1220 = vmatmul.mubr.bf16.gmra.mxu0 %v645
        %v1221 = vpop.f32.mrf.mxu0
        %v1222 = vadd.f32 %v1173, %v1221
        %v1223 = vpop.f32.mrf.mxu0
        %v1224 = vpop.f32.mrf.mxu0
        %v1225 = vpop.f32.mrf.mxu0
        %1226 = vdwg.mxu0
        %v1227 = vmul.f32 %v1092, 0.35355338
        %v1228 = vpack.c.bf16 %v1227, %v1227
        %v1229 = vpack.c.bf16 %v1157, %v1157
        %s1230 = sadd.s32 %s816, 4
        %s1231 = smul.addr %s1230, 4
        %s1232 = scalar_lea.vmem [#allocation2], %s1231
        %1233 = vst.msk [vmem:[%s1232] sm:$0xf] %vm820, %v1229
        %v1234 = vpack.c.bf16 %v1222, %v1222
        %s1235 = smul.addr %s1230, 4
        %s1236 = scalar_lea.vmem [#allocation3], %s1235
        %1237 = vst.msk [vmem:[%s1236] sm:$0xf] %vm820, %v1234
        %s1238 = scalar_lea.vmem %s3, 48
        %v1239 = vld [vmem:[%s1238] sm:$0xf]
        %v1240 = vld [vmem:[%s1238 + $0x4] sm:$0xf]
        %v1241 = vld [vmem:[%s1238 + $0x8] sm:$0xf]
        %v1242 = vld [vmem:[%s1238 + $0xc] sm:$0xf]
        %s1243 = scalar_lea.vmem %s4, 3
        %v1244 = vld [vmem:[%s1243] sm:$0x1]
        %v1246 = vlaneseq
        %v1247 = vshrl.u32 %v1246, 7
        %v1248 = vsub.s32 0, %v1247
        %v1249 = vrot.slane %v1244, %v1248
        %v1255 = vunpack.c.l.b16 %v1239
        %v1256 = vunpack.c.l.b16 %v1240
        %v1257 = vunpack.c.l.b16 %v1241
        %v1258 = vunpack.c.l.b16 %v1242
        %v1259 = vpack.c.b16 %v1256, %v1255
        %v1260 = vpack.c.b16 %v1258, %v1257
        %1263 = vmatprep.subr.bf16.mxu0 0
        %1264 = vmatpush1.bf16.msra.mxu0 0
        %1265 = vmatprep.subr.bf16.mxu0 0
        %1266 = vmatpush1.bf16.msra.mxu0 0
        %1267 = vmatprep.subr.bf16.mxu0 0
        %1268 = vmatpush1.bf16.msra.mxu0 0
        %1269 = vmatprep.subr.bf16.mxu0 0
        %1270 = vmatpush1.bf16.msra.mxu0 0
        %1271 = vmatprep.subr.bf16.mxu0 0
        %1272 = vmatpush1.bf16.msra.mxu0 0
        %1273 = vmatprep.subr.bf16.mxu0 0
        %1274 = vmatpush1.bf16.msra.mxu0 0
        %1275 = vmatprep.subr.bf16.mxu0 0
        %1276 = vmatpush1.bf16.msra.mxu0 %v1260
        %1277 = vmatprep.subr.bf16.mxu0 0
        %1278 = vmatpush1.bf16.msra.mxu0 %v1259
        %1279 = vmatprep.subr.bf16.mxu0 0
        %1280 = vmatpush2.bf16.msra.mxu0 0
        %1281 = vmatprep.subr.bf16.mxu0 0
        %1282 = vmatpush2.bf16.msra.mxu0 0
        %1283 = vmatprep.subr.bf16.mxu0 0
        %1284 = vmatpush2.bf16.msra.mxu0 0
        %1285 = vmatprep.subr.bf16.mxu0 0
        %1286 = vmatpush2.bf16.msra.mxu0 0
        %1287 = vmatprep.subr.bf16.mxu0 0
        %1288 = vmatpush2.bf16.msra.mxu0 0
        %1289 = vmatprep.subr.bf16.mxu0 0
        %1290 = vmatpush2.bf16.msra.mxu0 0
        %1291 = vmatprep.subr.bf16.mxu0 0
        %1292 = vmatpush2.bf16.msra.mxu0 0
        %1293 = vmatprep.subr.bf16.mxu0 0
        %1294 = vmatpush2.bf16.msra.mxu0 0
        %1295 = vmatprep.mubr.bf16.mxu0 0
        %1296 = vmatmul.mubr.bf16.gmra.mxu0 %v645
        %v1297 = vpop.f32.mrf.mxu0
        %v1298 = vadd.f32 %v1249, %v1297
        %v1299 = vpop.f32.mrf.mxu0
        %v1300 = vpop.f32.mrf.mxu0
        %v1301 = vpop.f32.mrf.mxu0
        %1302 = vdwg.mxu0
        %s1303 = scalar_lea.vmem %s5, 48
        %v1304 = vld [vmem:[%s1303] sm:$0xf]
        %v1305 = vld [vmem:[%s1303 + $0x4] sm:$0xf]
        %v1306 = vld [vmem:[%s1303 + $0x8] sm:$0xf]
        %v1307 = vld [vmem:[%s1303 + $0xc] sm:$0xf]
        %s1308 = scalar_lea.vmem %s6, 3
        %v1309 = vld [vmem:[%s1308] sm:$0x1]
        %v1311 = vlaneseq
        %v1312 = vshrl.u32 %v1311, 7
        %v1313 = vsub.s32 0, %v1312
        %v1314 = vrot.slane %v1309, %v1313
        %v1320 = vunpack.c.l.b16 %v1304
        %v1321 = vunpack.c.l.b16 %v1305
        %v1322 = vunpack.c.l.b16 %v1306
        %v1323 = vunpack.c.l.b16 %v1307
        %v1324 = vpack.c.b16 %v1321, %v1320
        %v1325 = vpack.c.b16 %v1323, %v1322
        %1328 = vmatprep.subr.bf16.mxu0 0
        %1329 = vmatpush1.bf16.msra.mxu0 0
        %1330 = vmatprep.subr.bf16.mxu0 0
        %1331 = vmatpush1.bf16.msra.mxu0 0
        %1332 = vmatprep.subr.bf16.mxu0 0
        %1333 = vmatpush1.bf16.msra.mxu0 0
        %1334 = vmatprep.subr.bf16.mxu0 0
        %1335 = vmatpush1.bf16.msra.mxu0 0
        %1336 = vmatprep.subr.bf16.mxu0 0
        %1337 = vmatpush1.bf16.msra.mxu0 0
        %1338 = vmatprep.subr.bf16.mxu0 0
        %1339 = vmatpush1.bf16.msra.mxu0 0
        %1340 = vmatprep.subr.bf16.mxu0 0
        %1341 = vmatpush1.bf16.msra.mxu0 %v1325
        %1342 = vmatprep.subr.bf16.mxu0 0
        %1343 = vmatpush1.bf16.msra.mxu0 %v1324
        %1344 = vmatprep.subr.bf16.mxu0 0
        %1345 = vmatpush2.bf16.msra.mxu0 0
        %1346 = vmatprep.subr.bf16.mxu0 0
        %1347 = vmatpush2.bf16.msra.mxu0 0
        %1348 = vmatprep.subr.bf16.mxu0 0
        %1349 = vmatpush2.bf16.msra.mxu0 0
        %1350 = vmatprep.subr.bf16.mxu0 0
        %1351 = vmatpush2.bf16.msra.mxu0 0
        %1352 = vmatprep.subr.bf16.mxu0 0
        %1353 = vmatpush2.bf16.msra.mxu0 0
        %1354 = vmatprep.subr.bf16.mxu0 0
        %1355 = vmatpush2.bf16.msra.mxu0 0
        %1356 = vmatprep.subr.bf16.mxu0 0
        %1357 = vmatpush2.bf16.msra.mxu0 0
        %1358 = vmatprep.subr.bf16.mxu0 0
        %1359 = vmatpush2.bf16.msra.mxu0 0
        %1360 = vmatprep.mubr.bf16.mxu0 0
        %1361 = vmatmul.mubr.bf16.gmra.mxu0 %v645
        %v1362 = vpop.f32.mrf.mxu0
        %v1363 = vadd.f32 %v1314, %v1362
        %v1364 = vpop.f32.mrf.mxu0
        %v1365 = vpop.f32.mrf.mxu0
        %v1366 = vpop.f32.mrf.mxu0
        %1367 = vdwg.mxu0
        %s1368 = scalar_lea.vmem %s7, 48
        %v1369 = vld [vmem:[%s1368] sm:$0xf]
        %v1370 = vld [vmem:[%s1368 + $0x4] sm:$0xf]
        %v1371 = vld [vmem:[%s1368 + $0x8] sm:$0xf]
        %v1372 = vld [vmem:[%s1368 + $0xc] sm:$0xf]
        %s1373 = scalar_lea.vmem %s8, 3
        %v1374 = vld [vmem:[%s1373] sm:$0x1]
        %v1376 = vlaneseq
        %v1377 = vshrl.u32 %v1376, 7
        %v1378 = vsub.s32 0, %v1377
        %v1379 = vrot.slane %v1374, %v1378
        %v1385 = vunpack.c.l.b16 %v1369
        %v1386 = vunpack.c.l.b16 %v1370
        %v1387 = vunpack.c.l.b16 %v1371
        %v1388 = vunpack.c.l.b16 %v1372
        %v1389 = vpack.c.b16 %v1386, %v1385
        %v1390 = vpack.c.b16 %v1388, %v1387
        %1393 = vmatprep.subr.bf16.mxu0 0
        %1394 = vmatpush1.bf16.msra.mxu0 0
        %1395 = vmatprep.subr.bf16.mxu0 0
        %1396 = vmatpush1.bf16.msra.mxu0 0
        %1397 = vmatprep.subr.bf16.mxu0 0
        %1398 = vmatpush1.bf16.msra.mxu0 0
        %1399 = vmatprep.subr.bf16.mxu0 0
        %1400 = vmatpush1.bf16.msra.mxu0 0
        %1401 = vmatprep.subr.bf16.mxu0 0
        %1402 = vmatpush1.bf16.msra.mxu0 0
        %1403 = vmatprep.subr.bf16.mxu0 0
        %1404 = vmatpush1.bf16.msra.mxu0 0
        %1405 = vmatprep.subr.bf16.mxu0 0
        %1406 = vmatpush1.bf16.msra.mxu0 %v1390
        %1407 = vmatprep.subr.bf16.mxu0 0
        %1408 = vmatpush1.bf16.msra.mxu0 %v1389
        %1409 = vmatprep.subr.bf16.mxu0 0
        %1410 = vmatpush2.bf16.msra.mxu0 0
        %1411 = vmatprep.subr.bf16.mxu0 0
        %1412 = vmatpush2.bf16.msra.mxu0 0
        %1413 = vmatprep.subr.bf16.mxu0 0
        %1414 = vmatpush2.bf16.msra.mxu0 0
        %1415 = vmatprep.subr.bf16.mxu0 0
        %1416 = vmatpush2.bf16.msra.mxu0 0
        %1417 = vmatprep.subr.bf16.mxu0 0
        %1418 = vmatpush2.bf16.msra.mxu0 0
        %1419 = vmatprep.subr.bf16.mxu0 0
        %1420 = vmatpush2.bf16.msra.mxu0 0
        %1421 = vmatprep.subr.bf16.mxu0 0
        %1422 = vmatpush2.bf16.msra.mxu0 0
        %1423 = vmatprep.subr.bf16.mxu0 0
        %1424 = vmatpush2.bf16.msra.mxu0 0
        %1425 = vmatprep.mubr.bf16.mxu0 0
        %1426 = vmatmul.mubr.bf16.gmra.mxu0 %v645
        %v1427 = vpop.f32.mrf.mxu0
        %v1428 = vadd.f32 %v1379, %v1427
        %v1429 = vpop.f32.mrf.mxu0
        %v1430 = vpop.f32.mrf.mxu0
        %v1431 = vpop.f32.mrf.mxu0
        %1432 = vdwg.mxu0
        %v1433 = vmul.f32 %v1298, 0.35355338
        %v1434 = vpack.c.bf16 %v1433, %v1433
        %v1435 = vpack.c.bf16 %v1363, %v1363
        %s1436 = sadd.s32 %s816, 6
        %s1437 = smul.addr %s1436, 4
        %s1438 = scalar_lea.vmem [#allocation2], %s1437
        %1439 = vst.msk [vmem:[%s1438] sm:$0xf] %vm820, %v1435
        %v1440 = vpack.c.bf16 %v1428, %v1428
        %s1441 = smul.addr %s1436, 4
        %s1442 = scalar_lea.vmem [#allocation3], %s1441
        %1443 = vst.msk [vmem:[%s1442] sm:$0xf] %vm820, %v1440
        // While loop
        $region89: #{tpu_custom_call.1} parent=87 // loop_pre_header
          _
        $region90: #{tpu_custom_call.1} parent=87 // loop_header
          %s1445 = sphi 0, %s1447
          %p1446 = scmp.ge.s32.totalorder %s1445, %s36
        $region91: #{tpu_custom_call.1} parent=87 // loop_header_branch
          %1449 = sbr.rel (%p1446) target = $region95
        $region92: #{tpu_custom_call.1} parent=87 // loop_body
          %s1450 = smul.u32 %s1445, 8
          %s1451 = sshra.s32 %s1450, 3
          %s1452 = sand.u32 %s1450, 7
          %s1453 = smul.addr %s1451, 4
          %s1454 = scalar_lea.vmem [#allocation2], %s1453
          %v1455 = vld [vmem:[%s1454] sm:$0xf]
          %s1456 = smul.addr %s1451, 4
          %s1457 = scalar_lea.vmem [#allocation3], %s1456
          %v1458 = vld [vmem:[%s1457] sm:$0xf]
          %v1460 = vsel %vm583, %v814, 0
          %v1463 = vsel %vm583, %v1455, 0
          %1465 = vmatprep.subr.bf16.mxu0 0
          %1466 = vmatpush1.bf16.xpose.msra.mxu0 0
          %1467 = vmatprep.subr.bf16.mxu0 0
          %1468 = vmatpush1.bf16.xpose.msra.mxu0 0
          %1469 = vmatprep.subr.bf16.mxu0 0
          %1470 = vmatpush1.bf16.xpose.msra.mxu0 0
          %1471 = vmatprep.subr.bf16.mxu0 0
          %1472 = vmatpush1.bf16.xpose.msra.mxu0 0
          %1473 = vmatprep.subr.bf16.mxu0 0
          %1474 = vmatpush1.bf16.xpose.msra.mxu0 0
          %1475 = vmatprep.subr.bf16.mxu0 0
          %1476 = vmatpush1.bf16.xpose.msra.mxu0 0
          %1477 = vmatprep.subr.bf16.mxu0 0
          %1478 = vmatpush1.bf16.xpose.msra.mxu0 0
          %1479 = vmatprep.subr.bf16.mxu0 0
          %1480 = vmatpush1.bf16.xpose.msra.mxu0 %v1463
          %1481 = vmatprep.subr.bf16.mxu0 0
          %1482 = vmatpush2.bf16.xpose.msra.mxu0 0
          %1483 = vmatprep.subr.bf16.mxu0 0
          %1484 = vmatpush2.bf16.xpose.msra.mxu0 0
          %1485 = vmatprep.subr.bf16.mxu0 0
          %1486 = vmatpush2.bf16.xpose.msra.mxu0 0
          %1487 = vmatprep.subr.bf16.mxu0 0
          %1488 = vmatpush2.bf16.xpose.msra.mxu0 0
          %1489 = vmatprep.subr.bf16.mxu0 0
          %1490 = vmatpush2.bf16.xpose.msra.mxu0 0
          %1491 = vmatprep.subr.bf16.mxu0 0
          %1492 = vmatpush2.bf16.xpose.msra.mxu0 0
          %1493 = vmatprep.subr.bf16.mxu0 0
          %1494 = vmatpush2.bf16.xpose.msra.mxu0 0
          %1495 = vmatprep.subr.bf16.mxu0 0
          %1496 = vmatpush2.bf16.xpose.msra.mxu0 0
          %1497 = vmatprep.mubr.bf16.mxu0 0
          %1498 = vmatmul.mubr.bf16.gmra.mxu0 %v1460
          %v1499 = vpop.f32.mrf.mxu0
          %v1500 = vadd.f32 0.0, %v1499
          %v1501 = vpop.f32.mrf.mxu0
          %v1502 = vpop.f32.mrf.mxu0
          %v1503 = vpop.f32.mrf.mxu0
          %1504 = vdwg.mxu0
          %v1505 = vld [vmem:[#allocation4] sm:$0xff]
          %v1506 = vsel %vm583, %v1500, -inf
          %1507 = vmax.xlane.f32.xlu0 %v1506
          %v1508 = vpop.xlane.xlu0 %1507
          %v1509 = vmax.f32 %v1505, %v1508
          %v1510 = vsub.f32 %v1505, %v1509
          %v1511 = vmul.f32 %v1510, 1.442695
          %v1512 = vpow.pop %v1511
          %1514 = vset.pattern.permute.xlu0 0
          %1515 = vperm.xlu0 %1514, %v1509
          %v1516 = vpop.permute.xlu0 %1515
          %v1518 = vsub.f32 %v1500, %v1516
          %v1519 = vmul.f32 %v1518, 1.442695
          %v1520 = vpow.pop %v1519
          %v1521 = vld [vmem:[#allocation5] sm:$0xff]
          %v1522 = vmul.f32 %v1512, %v1521
          %v1523 = vsel %vm583, %v1520, 0.0
          %1524 = vadd.xlane.f32.xlu0 %v1523
          %v1525 = vpop.xlane.xlu0 %1524
          %v1526 = vadd.f32 %v1522, %v1525
          %1527 = vst.msk [vmem:[#allocation5] sm:$0xff] %vm574, %v1526
          %v1528 = vld [vmem:[#allocation6] sm:$0xff]
          %1530 = vset.pattern.permute.xlu0 0
          %1531 = vperm.xlu0 %1530, %v1512
          %v1532 = vpop.permute.xlu0 %1531
          %v1534 = vmul.f32 %v1532, %v1528
          %v1535 = vpack.c.bf16 %v1520, %v1520
          %v1537 = vsel %vm583, %v1535, 0
          %vm1539 = vcmask 1043456
          %v1541 = vsel %vm1539, %v1458, 0
          %1543 = vmatprep.subr.bf16.mxu0 0
          %1544 = vmatpush1.bf16.msra.mxu0 0
          %1545 = vmatprep.subr.bf16.mxu0 0
          %1546 = vmatpush1.bf16.msra.mxu0 0
          %1547 = vmatprep.subr.bf16.mxu0 0
          %1548 = vmatpush1.bf16.msra.mxu0 0
          %1549 = vmatprep.subr.bf16.mxu0 0
          %1550 = vmatpush1.bf16.msra.mxu0 0
          %1551 = vmatprep.subr.bf16.mxu0 0
          %1552 = vmatpush1.bf16.msra.mxu0 0
          %1553 = vmatprep.subr.bf16.mxu0 0
          %1554 = vmatpush1.bf16.msra.mxu0 0
          %1555 = vmatprep.subr.bf16.mxu0 0
          %1556 = vmatpush1.bf16.msra.mxu0 0
          %1557 = vmatprep.subr.bf16.mxu0 0
          %1558 = vmatpush1.bf16.msra.mxu0 %v1541
          %1559 = vmatprep.subr.bf16.mxu0 0
          %1560 = vmatpush2.bf16.msra.mxu0 0
          %1561 = vmatprep.subr.bf16.mxu0 0
          %1562 = vmatpush2.bf16.msra.mxu0 0
          %1563 = vmatprep.subr.bf16.mxu0 0
          %1564 = vmatpush2.bf16.msra.mxu0 0
          %1565 = vmatprep.subr.bf16.mxu0 0
          %1566 = vmatpush2.bf16.msra.mxu0 0
          %1567 = vmatprep.subr.bf16.mxu0 0
          %1568 = vmatpush2.bf16.msra.mxu0 0
          %1569 = vmatprep.subr.bf16.mxu0 0
          %1570 = vmatpush2.bf16.msra.mxu0 0
          %1571 = vmatprep.subr.bf16.mxu0 0
          %1572 = vmatpush2.bf16.msra.mxu0 0
          %1573 = vmatprep.subr.bf16.mxu0 0
          %1574 = vmatpush2.bf16.msra.mxu0 0
          %1575 = vmatprep.mubr.bf16.mxu0 0
          %1576 = vmatmul.mubr.bf16.gmra.mxu0 %v1537
          %v1577 = vpop.f32.mrf.mxu0
          %v1578 = vadd.f32 0.0, %v1577
          %v1579 = vpop.f32.mrf.mxu0
          %v1580 = vpop.f32.mrf.mxu0
          %v1581 = vpop.f32.mrf.mxu0
          %1582 = vdwg.mxu0
          %v1583 = vadd.f32 %v1534, %v1578
          %1584 = vst.msk [vmem:[#allocation6] sm:$0xff] %vm583, %v1583
          %1585 = vst.msk [vmem:[#allocation4] sm:$0xff] %vm574, %v1509
          %s1586 = sadd.s32 %s1451, 2
          %s1587 = smul.addr %s1586, 4
          %s1588 = scalar_lea.vmem [#allocation2], %s1587
          %v1589 = vld [vmem:[%s1588] sm:$0xf]
          %s1590 = smul.addr %s1586, 4
          %s1591 = scalar_lea.vmem [#allocation3], %s1590
          %v1592 = vld [vmem:[%s1591] sm:$0xf]
          %v1594 = vsel %vm583, %v1022, 0
          %v1597 = vsel %vm583, %v1589, 0
          %1599 = vmatprep.subr.bf16.mxu0 0
          %1600 = vmatpush1.bf16.xpose.msra.mxu0 0
          %1601 = vmatprep.subr.bf16.mxu0 0
          %1602 = vmatpush1.bf16.xpose.msra.mxu0 0
          %1603 = vmatprep.subr.bf16.mxu0 0
          %1604 = vmatpush1.bf16.xpose.msra.mxu0 0
          %1605 = vmatprep.subr.bf16.mxu0 0
          %1606 = vmatpush1.bf16.xpose.msra.mxu0 0
          %1607 = vmatprep.subr.bf16.mxu0 0
          %1608 = vmatpush1.bf16.xpose.msra.mxu0 0
          %1609 = vmatprep.subr.bf16.mxu0 0
          %1610 = vmatpush1.bf16.xpose.msra.mxu0 0
          %1611 = vmatprep.subr.bf16.mxu0 0
          %1612 = vmatpush1.bf16.xpose.msra.mxu0 0
          %1613 = vmatprep.subr.bf16.mxu0 0
          %1614 = vmatpush1.bf16.xpose.msra.mxu0 %v1597
          %1615 = vmatprep.subr.bf16.mxu0 0
          %1616 = vmatpush2.bf16.xpose.msra.mxu0 0
          %1617 = vmatprep.subr.bf16.mxu0 0
          %1618 = vmatpush2.bf16.xpose.msra.mxu0 0
          %1619 = vmatprep.subr.bf16.mxu0 0
          %1620 = vmatpush2.bf16.xpose.msra.mxu0 0
          %1621 = vmatprep.subr.bf16.mxu0 0
          %1622 = vmatpush2.bf16.xpose.msra.mxu0 0
          %1623 = vmatprep.subr.bf16.mxu0 0
          %1624 = vmatpush2.bf16.xpose.msra.mxu0 0
          %1625 = vmatprep.subr.bf16.mxu0 0
          %1626 = vmatpush2.bf16.xpose.msra.mxu0 0
          %1627 = vmatprep.subr.bf16.mxu0 0
          %1628 = vmatpush2.bf16.xpose.msra.mxu0 0
          %1629 = vmatprep.subr.bf16.mxu0 0
          %1630 = vmatpush2.bf16.xpose.msra.mxu0 0
          %1631 = vmatprep.mubr.bf16.mxu0 0
          %1632 = vmatmul.mubr.bf16.gmra.mxu0 %v1594
          %v1633 = vpop.f32.mrf.mxu0
          %v1634 = vadd.f32 0.0, %v1633
          %v1635 = vpop.f32.mrf.mxu0
          %v1636 = vpop.f32.mrf.mxu0
          %v1637 = vpop.f32.mrf.mxu0
          %1638 = vdwg.mxu0
          %s1639 = scalar_lea.vmem [#allocation4], 8
          %v1640 = vld [vmem:[%s1639] sm:$0xff]
          %v1641 = vsel %vm583, %v1634, -inf
          %1642 = vmax.xlane.f32.xlu0 %v1641
          %v1643 = vpop.xlane.xlu0 %1642
          %v1644 = vmax.f32 %v1640, %v1643
          %v1645 = vsub.f32 %v1640, %v1644
          %v1646 = vmul.f32 %v1645, 1.442695
          %v1647 = vpow.pop %v1646
          %1649 = vset.pattern.permute.xlu0 0
          %1650 = vperm.xlu0 %1649, %v1644
          %v1651 = vpop.permute.xlu0 %1650
          %v1653 = vsub.f32 %v1634, %v1651
          %v1654 = vmul.f32 %v1653, 1.442695
          %v1655 = vpow.pop %v1654
          %s1656 = scalar_lea.vmem [#allocation5], 8
          %v1657 = vld [vmem:[%s1656] sm:$0xff]
          %v1658 = vmul.f32 %v1647, %v1657
          %v1659 = vsel %vm583, %v1655, 0.0
          %1660 = vadd.xlane.f32.xlu0 %v1659
          %v1661 = vpop.xlane.xlu0 %1660
          %v1662 = vadd.f32 %v1658, %v1661
          %1663 = vst.msk [vmem:[%s1656] sm:$0xff] %vm574, %v1662
          %s1664 = scalar_lea.vmem [#allocation6], 8
          %v1665 = vld [vmem:[%s1664] sm:$0xff]
          %1667 = vset.pattern.permute.xlu0 0
          %1668 = vperm.xlu0 %1667, %v1647
          %v1669 = vpop.permute.xlu0 %1668
          %v1671 = vmul.f32 %v1669, %v1665
          %v1672 = vpack.c.bf16 %v1655, %v1655
          %v1674 = vsel %vm583, %v1672, 0
          %v1677 = vsel %vm1539, %v1592, 0
          %1679 = vmatprep.subr.bf16.mxu0 0
          %1680 = vmatpush1.bf16.msra.mxu0 0
          %1681 = vmatprep.subr.bf16.mxu0 0
          %1682 = vmatpush1.bf16.msra.mxu0 0
          %1683 = vmatprep.subr.bf16.mxu0 0
          %1684 = vmatpush1.bf16.msra.mxu0 0
          %1685 = vmatprep.subr.bf16.mxu0 0
          %1686 = vmatpush1.bf16.msra.mxu0 0
          %1687 = vmatprep.subr.bf16.mxu0 0
          %1688 = vmatpush1.bf16.msra.mxu0 0
          %1689 = vmatprep.subr.bf16.mxu0 0
          %1690 = vmatpush1.bf16.msra.mxu0 0
          %1691 = vmatprep.subr.bf16.mxu0 0
          %1692 = vmatpush1.bf16.msra.mxu0 0
          %1693 = vmatprep.subr.bf16.mxu0 0
          %1694 = vmatpush1.bf16.msra.mxu0 %v1677
          %1695 = vmatprep.subr.bf16.mxu0 0
          %1696 = vmatpush2.bf16.msra.mxu0 0
          %1697 = vmatprep.subr.bf16.mxu0 0
          %1698 = vmatpush2.bf16.msra.mxu0 0
          %1699 = vmatprep.subr.bf16.mxu0 0
          %1700 = vmatpush2.bf16.msra.mxu0 0
          %1701 = vmatprep.subr.bf16.mxu0 0
          %1702 = vmatpush2.bf16.msra.mxu0 0
          %1703 = vmatprep.subr.bf16.mxu0 0
          %1704 = vmatpush2.bf16.msra.mxu0 0
          %1705 = vmatprep.subr.bf16.mxu0 0
          %1706 = vmatpush2.bf16.msra.mxu0 0
          %1707 = vmatprep.subr.bf16.mxu0 0
          %1708 = vmatpush2.bf16.msra.mxu0 0
          %1709 = vmatprep.subr.bf16.mxu0 0
          %1710 = vmatpush2.bf16.msra.mxu0 0
          %1711 = vmatprep.mubr.bf16.mxu0 0
          %1712 = vmatmul.mubr.bf16.gmra.mxu0 %v1674
          %v1713 = vpop.f32.mrf.mxu0
          %v1714 = vadd.f32 0.0, %v1713
          %v1715 = vpop.f32.mrf.mxu0
          %v1716 = vpop.f32.mrf.mxu0
          %v1717 = vpop.f32.mrf.mxu0
          %1718 = vdwg.mxu0
          %v1719 = vadd.f32 %v1671, %v1714
          %1720 = vst.msk [vmem:[%s1664] sm:$0xff] %vm583, %v1719
          %1721 = vst.msk [vmem:[%s1639] sm:$0xff] %vm574, %v1644
          %s1722 = sadd.s32 %s1451, 4
          %s1723 = smul.addr %s1722, 4
          %s1724 = scalar_lea.vmem [#allocation2], %s1723
          %v1725 = vld [vmem:[%s1724] sm:$0xf]
          %s1726 = smul.addr %s1722, 4
          %s1727 = scalar_lea.vmem [#allocation3], %s1726
          %v1728 = vld [vmem:[%s1727] sm:$0xf]
          %v1730 = vsel %vm583, %v1228, 0
          %v1733 = vsel %vm583, %v1725, 0
          %1735 = vmatprep.subr.bf16.mxu0 0
          %1736 = vmatpush1.bf16.xpose.msra.mxu0 0
          %1737 = vmatprep.subr.bf16.mxu0 0
          %1738 = vmatpush1.bf16.xpose.msra.mxu0 0
          %1739 = vmatprep.subr.bf16.mxu0 0
          %1740 = vmatpush1.bf16.xpose.msra.mxu0 0
          %1741 = vmatprep.subr.bf16.mxu0 0
          %1742 = vmatpush1.bf16.xpose.msra.mxu0 0
          %1743 = vmatprep.subr.bf16.mxu0 0
          %1744 = vmatpush1.bf16.xpose.msra.mxu0 0
          %1745 = vmatprep.subr.bf16.mxu0 0
          %1746 = vmatpush1.bf16.xpose.msra.mxu0 0
          %1747 = vmatprep.subr.bf16.mxu0 0
          %1748 = vmatpush1.bf16.xpose.msra.mxu0 0
          %1749 = vmatprep.subr.bf16.mxu0 0
          %1750 = vmatpush1.bf16.xpose.msra.mxu0 %v1733
          %1751 = vmatprep.subr.bf16.mxu0 0
          %1752 = vmatpush2.bf16.xpose.msra.mxu0 0
          %1753 = vmatprep.subr.bf16.mxu0 0
          %1754 = vmatpush2.bf16.xpose.msra.mxu0 0
          %1755 = vmatprep.subr.bf16.mxu0 0
          %1756 = vmatpush2.bf16.xpose.msra.mxu0 0
          %1757 = vmatprep.subr.bf16.mxu0 0
          %1758 = vmatpush2.bf16.xpose.msra.mxu0 0
          %1759 = vmatprep.subr.bf16.mxu0 0
          %1760 = vmatpush2.bf16.xpose.msra.mxu0 0
          %1761 = vmatprep.subr.bf16.mxu0 0
          %1762 = vmatpush2.bf16.xpose.msra.mxu0 0
          %1763 = vmatprep.subr.bf16.mxu0 0
          %1764 = vmatpush2.bf16.xpose.msra.mxu0 0
          %1765 = vmatprep.subr.bf16.mxu0 0
          %1766 = vmatpush2.bf16.xpose.msra.mxu0 0
          %1767 = vmatprep.mubr.bf16.mxu0 0
          %1768 = vmatmul.mubr.bf16.gmra.mxu0 %v1730
          %v1769 = vpop.f32.mrf.mxu0
          %v1770 = vadd.f32 0.0, %v1769
          %v1771 = vpop.f32.mrf.mxu0
          %v1772 = vpop.f32.mrf.mxu0
          %v1773 = vpop.f32.mrf.mxu0
          %1774 = vdwg.mxu0
          %s1775 = scalar_lea.vmem [#allocation4], 16
          %v1776 = vld [vmem:[%s1775] sm:$0xff]
          %v1777 = vsel %vm583, %v1770, -inf
          %1778 = vmax.xlane.f32.xlu0 %v1777
          %v1779 = vpop.xlane.xlu0 %1778
          %v1780 = vmax.f32 %v1776, %v1779
          %v1781 = vsub.f32 %v1776, %v1780
          %v1782 = vmul.f32 %v1781, 1.442695
          %v1783 = vpow.pop %v1782
          %1785 = vset.pattern.permute.xlu0 0
          %1786 = vperm.xlu0 %1785, %v1780
          %v1787 = vpop.permute.xlu0 %1786
          %v1789 = vsub.f32 %v1770, %v1787
          %v1790 = vmul.f32 %v1789, 1.442695
          %v1791 = vpow.pop %v1790
          %s1792 = scalar_lea.vmem [#allocation5], 16
          %v1793 = vld [vmem:[%s1792] sm:$0xff]
          %v1794 = vmul.f32 %v1783, %v1793
          %v1795 = vsel %vm583, %v1791, 0.0
          %1796 = vadd.xlane.f32.xlu0 %v1795
          %v1797 = vpop.xlane.xlu0 %1796
          %v1798 = vadd.f32 %v1794, %v1797
          %1799 = vst.msk [vmem:[%s1792] sm:$0xff] %vm574, %v1798
          %s1800 = scalar_lea.vmem [#allocation6], 16
          %v1801 = vld [vmem:[%s1800] sm:$0xff]
          %1803 = vset.pattern.permute.xlu0 0
          %1804 = vperm.xlu0 %1803, %v1783
          %v1805 = vpop.permute.xlu0 %1804
          %v1807 = vmul.f32 %v1805, %v1801
          %v1808 = vpack.c.bf16 %v1791, %v1791
          %v1810 = vsel %vm583, %v1808, 0
          %v1813 = vsel %vm1539, %v1728, 0
          %1815 = vmatprep.subr.bf16.mxu0 0
          %1816 = vmatpush1.bf16.msra.mxu0 0
          %1817 = vmatprep.subr.bf16.mxu0 0
          %1818 = vmatpush1.bf16.msra.mxu0 0
          %1819 = vmatprep.subr.bf16.mxu0 0
          %1820 = vmatpush1.bf16.msra.mxu0 0
          %1821 = vmatprep.subr.bf16.mxu0 0
          %1822 = vmatpush1.bf16.msra.mxu0 0
          %1823 = vmatprep.subr.bf16.mxu0 0
          %1824 = vmatpush1.bf16.msra.mxu0 0
          %1825 = vmatprep.subr.bf16.mxu0 0
          %1826 = vmatpush1.bf16.msra.mxu0 0
          %1827 = vmatprep.subr.bf16.mxu0 0
          %1828 = vmatpush1.bf16.msra.mxu0 0
          %1829 = vmatprep.subr.bf16.mxu0 0
          %1830 = vmatpush1.bf16.msra.mxu0 %v1813
          %1831 = vmatprep.subr.bf16.mxu0 0
          %1832 = vmatpush2.bf16.msra.mxu0 0
          %1833 = vmatprep.subr.bf16.mxu0 0
          %1834 = vmatpush2.bf16.msra.mxu0 0
          %1835 = vmatprep.subr.bf16.mxu0 0
          %1836 = vmatpush2.bf16.msra.mxu0 0
          %1837 = vmatprep.subr.bf16.mxu0 0
          %1838 = vmatpush2.bf16.msra.mxu0 0
          %1839 = vmatprep.subr.bf16.mxu0 0
          %1840 = vmatpush2.bf16.msra.mxu0 0
          %1841 = vmatprep.subr.bf16.mxu0 0
          %1842 = vmatpush2.bf16.msra.mxu0 0
          %1843 = vmatprep.subr.bf16.mxu0 0
          %1844 = vmatpush2.bf16.msra.mxu0 0
          %1845 = vmatprep.subr.bf16.mxu0 0
          %1846 = vmatpush2.bf16.msra.mxu0 0
          %1847 = vmatprep.mubr.bf16.mxu0 0
          %1848 = vmatmul.mubr.bf16.gmra.mxu0 %v1810
          %v1849 = vpop.f32.mrf.mxu0
          %v1850 = vadd.f32 0.0, %v1849
          %v1851 = vpop.f32.mrf.mxu0
          %v1852 = vpop.f32.mrf.mxu0
          %v1853 = vpop.f32.mrf.mxu0
          %1854 = vdwg.mxu0
          %v1855 = vadd.f32 %v1807, %v1850
          %1856 = vst.msk [vmem:[%s1800] sm:$0xff] %vm583, %v1855
          %1857 = vst.msk [vmem:[%s1775] sm:$0xff] %vm574, %v1780
          %s1858 = sadd.s32 %s1451, 6
          %s1859 = smul.addr %s1858, 4
          %s1860 = scalar_lea.vmem [#allocation2], %s1859
          %v1861 = vld [vmem:[%s1860] sm:$0xf]
          %s1862 = smul.addr %s1858, 4
          %s1863 = scalar_lea.vmem [#allocation3], %s1862
          %v1864 = vld [vmem:[%s1863] sm:$0xf]
          %v1866 = vsel %vm583, %v1434, 0
          %v1869 = vsel %vm583, %v1861, 0
          %1871 = vmatprep.subr.bf16.mxu0 0
          %1872 = vmatpush1.bf16.xpose.msra.mxu0 0
          %1873 = vmatprep.subr.bf16.mxu0 0
          %1874 = vmatpush1.bf16.xpose.msra.mxu0 0
          %1875 = vmatprep.subr.bf16.mxu0 0
          %1876 = vmatpush1.bf16.xpose.msra.mxu0 0
          %1877 = vmatprep.subr.bf16.mxu0 0
          %1878 = vmatpush1.bf16.xpose.msra.mxu0 0
          %1879 = vmatprep.subr.bf16.mxu0 0
          %1880 = vmatpush1.bf16.xpose.msra.mxu0 0
          %1881 = vmatprep.subr.bf16.mxu0 0
          %1882 = vmatpush1.bf16.xpose.msra.mxu0 0
          %1883 = vmatprep.subr.bf16.mxu0 0
          %1884 = vmatpush1.bf16.xpose.msra.mxu0 0
          %1885 = vmatprep.subr.bf16.mxu0 0
          %1886 = vmatpush1.bf16.xpose.msra.mxu0 %v1869
          %1887 = vmatprep.subr.bf16.mxu0 0
          %1888 = vmatpush2.bf16.xpose.msra.mxu0 0
          %1889 = vmatprep.subr.bf16.mxu0 0
          %1890 = vmatpush2.bf16.xpose.msra.mxu0 0
          %1891 = vmatprep.subr.bf16.mxu0 0
          %1892 = vmatpush2.bf16.xpose.msra.mxu0 0
          %1893 = vmatprep.subr.bf16.mxu0 0
          %1894 = vmatpush2.bf16.xpose.msra.mxu0 0
          %1895 = vmatprep.subr.bf16.mxu0 0
          %1896 = vmatpush2.bf16.xpose.msra.mxu0 0
          %1897 = vmatprep.subr.bf16.mxu0 0
          %1898 = vmatpush2.bf16.xpose.msra.mxu0 0
          %1899 = vmatprep.subr.bf16.mxu0 0
          %1900 = vmatpush2.bf16.xpose.msra.mxu0 0
          %1901 = vmatprep.subr.bf16.mxu0 0
          %1902 = vmatpush2.bf16.xpose.msra.mxu0 0
          %1903 = vmatprep.mubr.bf16.mxu0 0
          %1904 = vmatmul.mubr.bf16.gmra.mxu0 %v1866
          %v1905 = vpop.f32.mrf.mxu0
          %v1906 = vadd.f32 0.0, %v1905
          %v1907 = vpop.f32.mrf.mxu0
          %v1908 = vpop.f32.mrf.mxu0
          %v1909 = vpop.f32.mrf.mxu0
          %1910 = vdwg.mxu0
          %s1911 = scalar_lea.vmem [#allocation4], 24
          %v1912 = vld [vmem:[%s1911] sm:$0xff]
          %v1913 = vsel %vm583, %v1906, -inf
          %1914 = vmax.xlane.f32.xlu0 %v1913
          %v1915 = vpop.xlane.xlu0 %1914
          %v1916 = vmax.f32 %v1912, %v1915
          %v1917 = vsub.f32 %v1912, %v1916
          %v1918 = vmul.f32 %v1917, 1.442695
          %v1919 = vpow.pop %v1918
          %1921 = vset.pattern.permute.xlu0 0
          %1922 = vperm.xlu0 %1921, %v1916
          %v1923 = vpop.permute.xlu0 %1922
          %v1925 = vsub.f32 %v1906, %v1923
          %v1926 = vmul.f32 %v1925, 1.442695
          %v1927 = vpow.pop %v1926
          %s1928 = scalar_lea.vmem [#allocation5], 24
          %v1929 = vld [vmem:[%s1928] sm:$0xff]
          %v1930 = vmul.f32 %v1919, %v1929
          %v1931 = vsel %vm583, %v1927, 0.0
          %1932 = vadd.xlane.f32.xlu0 %v1931
          %v1933 = vpop.xlane.xlu0 %1932
          %v1934 = vadd.f32 %v1930, %v1933
          %1935 = vst.msk [vmem:[%s1928] sm:$0xff] %vm574, %v1934
          %s1936 = scalar_lea.vmem [#allocation6], 24
          %v1937 = vld [vmem:[%s1936] sm:$0xff]
          %1939 = vset.pattern.permute.xlu0 0
          %1940 = vperm.xlu0 %1939, %v1919
          %v1941 = vpop.permute.xlu0 %1940
          %v1943 = vmul.f32 %v1941, %v1937
          %v1944 = vpack.c.bf16 %v1927, %v1927
          %v1946 = vsel %vm583, %v1944, 0
          %v1949 = vsel %vm1539, %v1864, 0
          %1951 = vmatprep.subr.bf16.mxu0 0
          %1952 = vmatpush1.bf16.msra.mxu0 0
          %1953 = vmatprep.subr.bf16.mxu0 0
          %1954 = vmatpush1.bf16.msra.mxu0 0
          %1955 = vmatprep.subr.bf16.mxu0 0
          %1956 = vmatpush1.bf16.msra.mxu0 0
          %1957 = vmatprep.subr.bf16.mxu0 0
          %1958 = vmatpush1.bf16.msra.mxu0 0
          %1959 = vmatprep.subr.bf16.mxu0 0
          %1960 = vmatpush1.bf16.msra.mxu0 0
          %1961 = vmatprep.subr.bf16.mxu0 0
          %1962 = vmatpush1.bf16.msra.mxu0 0
          %1963 = vmatprep.subr.bf16.mxu0 0
          %1964 = vmatpush1.bf16.msra.mxu0 0
          %1965 = vmatprep.subr.bf16.mxu0 0
          %1966 = vmatpush1.bf16.msra.mxu0 %v1949
          %1967 = vmatprep.subr.bf16.mxu0 0
          %1968 = vmatpush2.bf16.msra.mxu0 0
          %1969 = vmatprep.subr.bf16.mxu0 0
          %1970 = vmatpush2.bf16.msra.mxu0 0
          %1971 = vmatprep.subr.bf16.mxu0 0
          %1972 = vmatpush2.bf16.msra.mxu0 0
          %1973 = vmatprep.subr.bf16.mxu0 0
          %1974 = vmatpush2.bf16.msra.mxu0 0
          %1975 = vmatprep.subr.bf16.mxu0 0
          %1976 = vmatpush2.bf16.msra.mxu0 0
          %1977 = vmatprep.subr.bf16.mxu0 0
          %1978 = vmatpush2.bf16.msra.mxu0 0
          %1979 = vmatprep.subr.bf16.mxu0 0
          %1980 = vmatpush2.bf16.msra.mxu0 0
          %1981 = vmatprep.subr.bf16.mxu0 0
          %1982 = vmatpush2.bf16.msra.mxu0 0
          %1983 = vmatprep.mubr.bf16.mxu0 0
          %1984 = vmatmul.mubr.bf16.gmra.mxu0 %v1946
          %v1985 = vpop.f32.mrf.mxu0
          %v1986 = vadd.f32 0.0, %v1985
          %v1987 = vpop.f32.mrf.mxu0
          %v1988 = vpop.f32.mrf.mxu0
          %v1989 = vpop.f32.mrf.mxu0
          %1990 = vdwg.mxu0
          %v1991 = vadd.f32 %v1943, %v1986
          %1992 = vst.msk [vmem:[%s1936] sm:$0xff] %vm583, %v1991
          %1993 = vst.msk [vmem:[%s1911] sm:$0xff] %vm574, %v1916
        $region93: #{tpu_custom_call.1} parent=87 // loop_footer
          %s1447 = sadd.s32 %s1445, 1
        $region94: #{tpu_custom_call.1} parent=87 // loop_footer_branch
          %1444 = sbr.rel target = $region90
        $region95: #{tpu_custom_call.1} parent=87 // loop_exit
          _
        %v1994 = vlaneseq
        %v1995 = vshrl.u32 %v1994, 7
        %v1996 = vlaneseq
        %v1997 = vand.u32 %v1996, 127
        %vm1998 = vcmp.ge.s32.totalorder %v1995, %v1997
        %v1999 = vsel %vm1998, 0.0, -1e+30
        %v2000 = vld [vmem:[%s819] sm:$0xf]
        %v2001 = vld [vmem:[%s824] sm:$0xf]
        %v2003 = vsel %vm583, %v814, 0
        %v2006 = vsel %vm583, %v2000, 0
        %2008 = vmatprep.subr.bf16.mxu0 0
        %2009 = vmatpush1.bf16.xpose.msra.mxu0 0
        %2010 = vmatprep.subr.bf16.mxu0 0
        %2011 = vmatpush1.bf16.xpose.msra.mxu0 0
        %2012 = vmatprep.subr.bf16.mxu0 0
        %2013 = vmatpush1.bf16.xpose.msra.mxu0 0
        %2014 = vmatprep.subr.bf16.mxu0 0
        %2015 = vmatpush1.bf16.xpose.msra.mxu0 0
        %2016 = vmatprep.subr.bf16.mxu0 0
        %2017 = vmatpush1.bf16.xpose.msra.mxu0 0
        %2018 = vmatprep.subr.bf16.mxu0 0
        %2019 = vmatpush1.bf16.xpose.msra.mxu0 0
        %2020 = vmatprep.subr.bf16.mxu0 0
        %2021 = vmatpush1.bf16.xpose.msra.mxu0 0
        %2022 = vmatprep.subr.bf16.mxu0 0
        %2023 = vmatpush1.bf16.xpose.msra.mxu0 %v2006
        %2024 = vmatprep.subr.bf16.mxu0 0
        %2025 = vmatpush2.bf16.xpose.msra.mxu0 0
        %2026 = vmatprep.subr.bf16.mxu0 0
        %2027 = vmatpush2.bf16.xpose.msra.mxu0 0
        %2028 = vmatprep.subr.bf16.mxu0 0
        %2029 = vmatpush2.bf16.xpose.msra.mxu0 0
        %2030 = vmatprep.subr.bf16.mxu0 0
        %2031 = vmatpush2.bf16.xpose.msra.mxu0 0
        %2032 = vmatprep.subr.bf16.mxu0 0
        %2033 = vmatpush2.bf16.xpose.msra.mxu0 0
        %2034 = vmatprep.subr.bf16.mxu0 0
        %2035 = vmatpush2.bf16.xpose.msra.mxu0 0
        %2036 = vmatprep.subr.bf16.mxu0 0
        %2037 = vmatpush2.bf16.xpose.msra.mxu0 0
        %2038 = vmatprep.subr.bf16.mxu0 0
        %2039 = vmatpush2.bf16.xpose.msra.mxu0 0
        %2040 = vmatprep.mubr.bf16.mxu0 0
        %2041 = vmatmul.mubr.bf16.gmra.mxu0 %v2003
        %v2042 = vpop.f32.mrf.mxu0
        %v2043 = vadd.f32 %v1999, %v2042
        %v2044 = vpop.f32.mrf.mxu0
        %v2045 = vpop.f32.mrf.mxu0
        %v2046 = vpop.f32.mrf.mxu0
        %2047 = vdwg.mxu0
        %v2048 = vld [vmem:[#allocation4] sm:$0xff]
        %v2049 = vsel %vm583, %v2043, -inf
        %2050 = vmax.xlane.f32.xlu0 %v2049
        %v2051 = vpop.xlane.xlu0 %2050
        %v2052 = vmax.f32 %v2048, %v2051
        %v2053 = vsub.f32 %v2048, %v2052
        %v2054 = vmul.f32 %v2053, 1.442695
        %v2055 = vpow.pop %v2054
        %2057 = vset.pattern.permute.xlu0 0
        %2058 = vperm.xlu0 %2057, %v2052
        %v2059 = vpop.permute.xlu0 %2058
        %v2061 = vsub.f32 %v2043, %v2059
        %v2062 = vmul.f32 %v2061, 1.442695
        %v2063 = vpow.pop %v2062
        %v2064 = vld [vmem:[#allocation5] sm:$0xff]
        %v2065 = vmul.f32 %v2055, %v2064
        %v2066 = vsel %vm583, %v2063, 0.0
        %2067 = vadd.xlane.f32.xlu0 %v2066
        %v2068 = vpop.xlane.xlu0 %2067
        %v2069 = vadd.f32 %v2065, %v2068
        %2070 = vst.msk [vmem:[#allocation5] sm:$0xff] %vm574, %v2069
        %v2071 = vld [vmem:[#allocation6] sm:$0xff]
        %2073 = vset.pattern.permute.xlu0 0
        %2074 = vperm.xlu0 %2073, %v2055
        %v2075 = vpop.permute.xlu0 %2074
        %v2077 = vmul.f32 %v2075, %v2071
        %v2078 = vpack.c.bf16 %v2063, %v2063
        %v2080 = vsel %vm583, %v2078, 0
        %vm2082 = vcmask 1043456
        %v2084 = vsel %vm2082, %v2001, 0
        %2086 = vmatprep.subr.bf16.mxu0 0
        %2087 = vmatpush1.bf16.msra.mxu0 0
        %2088 = vmatprep.subr.bf16.mxu0 0
        %2089 = vmatpush1.bf16.msra.mxu0 0
        %2090 = vmatprep.subr.bf16.mxu0 0
        %2091 = vmatpush1.bf16.msra.mxu0 0
        %2092 = vmatprep.subr.bf16.mxu0 0
        %2093 = vmatpush1.bf16.msra.mxu0 0
        %2094 = vmatprep.subr.bf16.mxu0 0
        %2095 = vmatpush1.bf16.msra.mxu0 0
        %2096 = vmatprep.subr.bf16.mxu0 0
        %2097 = vmatpush1.bf16.msra.mxu0 0
        %2098 = vmatprep.subr.bf16.mxu0 0
        %2099 = vmatpush1.bf16.msra.mxu0 0
        %2100 = vmatprep.subr.bf16.mxu0 0
        %2101 = vmatpush1.bf16.msra.mxu0 %v2084
        %2102 = vmatprep.subr.bf16.mxu0 0
        %2103 = vmatpush2.bf16.msra.mxu0 0
        %2104 = vmatprep.subr.bf16.mxu0 0
        %2105 = vmatpush2.bf16.msra.mxu0 0
        %2106 = vmatprep.subr.bf16.mxu0 0
        %2107 = vmatpush2.bf16.msra.mxu0 0
        %2108 = vmatprep.subr.bf16.mxu0 0
        %2109 = vmatpush2.bf16.msra.mxu0 0
        %2110 = vmatprep.subr.bf16.mxu0 0
        %2111 = vmatpush2.bf16.msra.mxu0 0
        %2112 = vmatprep.subr.bf16.mxu0 0
        %2113 = vmatpush2.bf16.msra.mxu0 0
        %2114 = vmatprep.subr.bf16.mxu0 0
        %2115 = vmatpush2.bf16.msra.mxu0 0
        %2116 = vmatprep.subr.bf16.mxu0 0
        %2117 = vmatpush2.bf16.msra.mxu0 0
        %2118 = vmatprep.mubr.bf16.mxu0 0
        %2119 = vmatmul.mubr.bf16.gmra.mxu0 %v2080
        %v2120 = vpop.f32.mrf.mxu0
        %v2121 = vadd.f32 0.0, %v2120
        %v2122 = vpop.f32.mrf.mxu0
        %v2123 = vpop.f32.mrf.mxu0
        %v2124 = vpop.f32.mrf.mxu0
        %2125 = vdwg.mxu0
        %v2126 = vadd.f32 %v2077, %v2121
        %2127 = vst.msk [vmem:[#allocation6] sm:$0xff] %vm583, %v2126
        %2128 = vst.msk [vmem:[#allocation4] sm:$0xff] %vm574, %v2052
        %v2129 = vld [vmem:[%s1026] sm:$0xf]
        %v2130 = vld [vmem:[%s1030] sm:$0xf]
        %v2132 = vsel %vm583, %v1022, 0
        %v2135 = vsel %vm583, %v2129, 0
        %2137 = vmatprep.subr.bf16.mxu0 0
        %2138 = vmatpush1.bf16.xpose.msra.mxu0 0
        %2139 = vmatprep.subr.bf16.mxu0 0
        %2140 = vmatpush1.bf16.xpose.msra.mxu0 0
        %2141 = vmatprep.subr.bf16.mxu0 0
        %2142 = vmatpush1.bf16.xpose.msra.mxu0 0
        %2143 = vmatprep.subr.bf16.mxu0 0
        %2144 = vmatpush1.bf16.xpose.msra.mxu0 0
        %2145 = vmatprep.subr.bf16.mxu0 0
        %2146 = vmatpush1.bf16.xpose.msra.mxu0 0
        %2147 = vmatprep.subr.bf16.mxu0 0
        %2148 = vmatpush1.bf16.xpose.msra.mxu0 0
        %2149 = vmatprep.subr.bf16.mxu0 0
        %2150 = vmatpush1.bf16.xpose.msra.mxu0 0
        %2151 = vmatprep.subr.bf16.mxu0 0
        %2152 = vmatpush1.bf16.xpose.msra.mxu0 %v2135
        %2153 = vmatprep.subr.bf16.mxu0 0
        %2154 = vmatpush2.bf16.xpose.msra.mxu0 0
        %2155 = vmatprep.subr.bf16.mxu0 0
        %2156 = vmatpush2.bf16.xpose.msra.mxu0 0
        %2157 = vmatprep.subr.bf16.mxu0 0
        %2158 = vmatpush2.bf16.xpose.msra.mxu0 0
        %2159 = vmatprep.subr.bf16.mxu0 0
        %2160 = vmatpush2.bf16.xpose.msra.mxu0 0
        %2161 = vmatprep.subr.bf16.mxu0 0
        %2162 = vmatpush2.bf16.xpose.msra.mxu0 0
        %2163 = vmatprep.subr.bf16.mxu0 0
        %2164 = vmatpush2.bf16.xpose.msra.mxu0 0
        %2165 = vmatprep.subr.bf16.mxu0 0
        %2166 = vmatpush2.bf16.xpose.msra.mxu0 0
        %2167 = vmatprep.subr.bf16.mxu0 0
        %2168 = vmatpush2.bf16.xpose.msra.mxu0 0
        %2169 = vmatprep.mubr.bf16.mxu0 0
        %2170 = vmatmul.mubr.bf16.gmra.mxu0 %v2132
        %v2171 = vpop.f32.mrf.mxu0
        %v2172 = vadd.f32 %v1999, %v2171
        %v2173 = vpop.f32.mrf.mxu0
        %v2174 = vpop.f32.mrf.mxu0
        %v2175 = vpop.f32.mrf.mxu0
        %2176 = vdwg.mxu0
        %s2177 = scalar_lea.vmem [#allocation4], 8
        %v2178 = vld [vmem:[%s2177] sm:$0xff]
        %v2179 = vsel %vm583, %v2172, -inf
        %2180 = vmax.xlane.f32.xlu0 %v2179
        %v2181 = vpop.xlane.xlu0 %2180
        %v2182 = vmax.f32 %v2178, %v2181
        %v2183 = vsub.f32 %v2178, %v2182
        %v2184 = vmul.f32 %v2183, 1.442695
        %v2185 = vpow.pop %v2184
        %2187 = vset.pattern.permute.xlu0 0
        %2188 = vperm.xlu0 %2187, %v2182
        %v2189 = vpop.permute.xlu0 %2188
        %v2191 = vsub.f32 %v2172, %v2189
        %v2192 = vmul.f32 %v2191, 1.442695
        %v2193 = vpow.pop %v2192
        %s2194 = scalar_lea.vmem [#allocation5], 8
        %v2195 = vld [vmem:[%s2194] sm:$0xff]
        %v2196 = vmul.f32 %v2185, %v2195
        %v2197 = vsel %vm583, %v2193, 0.0
        %2198 = vadd.xlane.f32.xlu0 %v2197
        %v2199 = vpop.xlane.xlu0 %2198
        %v2200 = vadd.f32 %v2196, %v2199
        %2201 = vst.msk [vmem:[%s2194] sm:$0xff] %vm574, %v2200
        %s2202 = scalar_lea.vmem [#allocation6], 8
        %v2203 = vld [vmem:[%s2202] sm:$0xff]
        %2205 = vset.pattern.permute.xlu0 0
        %2206 = vperm.xlu0 %2205, %v2185
        %v2207 = vpop.permute.xlu0 %2206
        %v2209 = vmul.f32 %v2207, %v2203
        %v2210 = vpack.c.bf16 %v2193, %v2193
        %v2212 = vsel %vm583, %v2210, 0
        %v2215 = vsel %vm2082, %v2130, 0
        %2217 = vmatprep.subr.bf16.mxu0 0
        %2218 = vmatpush1.bf16.msra.mxu0 0
        %2219 = vmatprep.subr.bf16.mxu0 0
        %2220 = vmatpush1.bf16.msra.mxu0 0
        %2221 = vmatprep.subr.bf16.mxu0 0
        %2222 = vmatpush1.bf16.msra.mxu0 0
        %2223 = vmatprep.subr.bf16.mxu0 0
        %2224 = vmatpush1.bf16.msra.mxu0 0
        %2225 = vmatprep.subr.bf16.mxu0 0
        %2226 = vmatpush1.bf16.msra.mxu0 0
        %2227 = vmatprep.subr.bf16.mxu0 0
        %2228 = vmatpush1.bf16.msra.mxu0 0
        %2229 = vmatprep.subr.bf16.mxu0 0
        %2230 = vmatpush1.bf16.msra.mxu0 0
        %2231 = vmatprep.subr.bf16.mxu0 0
        %2232 = vmatpush1.bf16.msra.mxu0 %v2215
        %2233 = vmatprep.subr.bf16.mxu0 0
        %2234 = vmatpush2.bf16.msra.mxu0 0
        %2235 = vmatprep.subr.bf16.mxu0 0
        %2236 = vmatpush2.bf16.msra.mxu0 0
        %2237 = vmatprep.subr.bf16.mxu0 0
        %2238 = vmatpush2.bf16.msra.mxu0 0
        %2239 = vmatprep.subr.bf16.mxu0 0
        %2240 = vmatpush2.bf16.msra.mxu0 0
        %2241 = vmatprep.subr.bf16.mxu0 0
        %2242 = vmatpush2.bf16.msra.mxu0 0
        %2243 = vmatprep.subr.bf16.mxu0 0
        %2244 = vmatpush2.bf16.msra.mxu0 0
        %2245 = vmatprep.subr.bf16.mxu0 0
        %2246 = vmatpush2.bf16.msra.mxu0 0
        %2247 = vmatprep.subr.bf16.mxu0 0
        %2248 = vmatpush2.bf16.msra.mxu0 0
        %2249 = vmatprep.mubr.bf16.mxu0 0
        %2250 = vmatmul.mubr.bf16.gmra.mxu0 %v2212
        %v2251 = vpop.f32.mrf.mxu0
        %v2252 = vadd.f32 0.0, %v2251
        %v2253 = vpop.f32.mrf.mxu0
        %v2254 = vpop.f32.mrf.mxu0
        %v2255 = vpop.f32.mrf.mxu0
        %2256 = vdwg.mxu0
        %v2257 = vadd.f32 %v2209, %v2252
        %2258 = vst.msk [vmem:[%s2202] sm:$0xff] %vm583, %v2257
        %2259 = vst.msk [vmem:[%s2177] sm:$0xff] %vm574, %v2182
        %v2260 = vld [vmem:[%s1232] sm:$0xf]
        %v2261 = vld [vmem:[%s1236] sm:$0xf]
        %v2263 = vsel %vm583, %v1228, 0
        %v2266 = vsel %vm583, %v2260, 0
        %2268 = vmatprep.subr.bf16.mxu0 0
        %2269 = vmatpush1.bf16.xpose.msra.mxu0 0
        %2270 = vmatprep.subr.bf16.mxu0 0
        %2271 = vmatpush1.bf16.xpose.msra.mxu0 0
        %2272 = vmatprep.subr.bf16.mxu0 0
        %2273 = vmatpush1.bf16.xpose.msra.mxu0 0
        %2274 = vmatprep.subr.bf16.mxu0 0
        %2275 = vmatpush1.bf16.xpose.msra.mxu0 0
        %2276 = vmatprep.subr.bf16.mxu0 0
        %2277 = vmatpush1.bf16.xpose.msra.mxu0 0
        %2278 = vmatprep.subr.bf16.mxu0 0
        %2279 = vmatpush1.bf16.xpose.msra.mxu0 0
        %2280 = vmatprep.subr.bf16.mxu0 0
        %2281 = vmatpush1.bf16.xpose.msra.mxu0 0
        %2282 = vmatprep.subr.bf16.mxu0 0
        %2283 = vmatpush1.bf16.xpose.msra.mxu0 %v2266
        %2284 = vmatprep.subr.bf16.mxu0 0
        %2285 = vmatpush2.bf16.xpose.msra.mxu0 0
        %2286 = vmatprep.subr.bf16.mxu0 0
        %2287 = vmatpush2.bf16.xpose.msra.mxu0 0
        %2288 = vmatprep.subr.bf16.mxu0 0
        %2289 = vmatpush2.bf16.xpose.msra.mxu0 0
        %2290 = vmatprep.subr.bf16.mxu0 0
        %2291 = vmatpush2.bf16.xpose.msra.mxu0 0
        %2292 = vmatprep.subr.bf16.mxu0 0
        %2293 = vmatpush2.bf16.xpose.msra.mxu0 0
        %2294 = vmatprep.subr.bf16.mxu0 0
        %2295 = vmatpush2.bf16.xpose.msra.mxu0 0
        %2296 = vmatprep.subr.bf16.mxu0 0
        %2297 = vmatpush2.bf16.xpose.msra.mxu0 0
        %2298 = vmatprep.subr.bf16.mxu0 0
        %2299 = vmatpush2.bf16.xpose.msra.mxu0 0
        %2300 = vmatprep.mubr.bf16.mxu0 0
        %2301 = vmatmul.mubr.bf16.gmra.mxu0 %v2263
        %v2302 = vpop.f32.mrf.mxu0
        %v2303 = vadd.f32 %v1999, %v2302
        %v2304 = vpop.f32.mrf.mxu0
        %v2305 = vpop.f32.mrf.mxu0
        %v2306 = vpop.f32.mrf.mxu0
        %2307 = vdwg.mxu0
        %s2308 = scalar_lea.vmem [#allocation4], 16
        %v2309 = vld [vmem:[%s2308] sm:$0xff]
        %v2310 = vsel %vm583, %v2303, -inf
        %2311 = vmax.xlane.f32.xlu0 %v2310
        %v2312 = vpop.xlane.xlu0 %2311
        %v2313 = vmax.f32 %v2309, %v2312
        %v2314 = vsub.f32 %v2309, %v2313
        %v2315 = vmul.f32 %v2314, 1.442695
        %v2316 = vpow.pop %v2315
        %2318 = vset.pattern.permute.xlu0 0
        %2319 = vperm.xlu0 %2318, %v2313
        %v2320 = vpop.permute.xlu0 %2319
        %v2322 = vsub.f32 %v2303, %v2320
        %v2323 = vmul.f32 %v2322, 1.442695
        %v2324 = vpow.pop %v2323
        %s2325 = scalar_lea.vmem [#allocation5], 16
        %v2326 = vld [vmem:[%s2325] sm:$0xff]
        %v2327 = vmul.f32 %v2316, %v2326
        %v2328 = vsel %vm583, %v2324, 0.0
        %2329 = vadd.xlane.f32.xlu0 %v2328
        %v2330 = vpop.xlane.xlu0 %2329
        %v2331 = vadd.f32 %v2327, %v2330
        %2332 = vst.msk [vmem:[%s2325] sm:$0xff] %vm574, %v2331
        %s2333 = scalar_lea.vmem [#allocation6], 16
        %v2334 = vld [vmem:[%s2333] sm:$0xff]
        %2336 = vset.pattern.permute.xlu0 0
        %2337 = vperm.xlu0 %2336, %v2316
        %v2338 = vpop.permute.xlu0 %2337
        %v2340 = vmul.f32 %v2338, %v2334
        %v2341 = vpack.c.bf16 %v2324, %v2324
        %v2343 = vsel %vm583, %v2341, 0
        %v2346 = vsel %vm2082, %v2261, 0
        %2348 = vmatprep.subr.bf16.mxu0 0
        %2349 = vmatpush1.bf16.msra.mxu0 0
        %2350 = vmatprep.subr.bf16.mxu0 0
        %2351 = vmatpush1.bf16.msra.mxu0 0
        %2352 = vmatprep.subr.bf16.mxu0 0
        %2353 = vmatpush1.bf16.msra.mxu0 0
        %2354 = vmatprep.subr.bf16.mxu0 0
        %2355 = vmatpush1.bf16.msra.mxu0 0
        %2356 = vmatprep.subr.bf16.mxu0 0
        %2357 = vmatpush1.bf16.msra.mxu0 0
        %2358 = vmatprep.subr.bf16.mxu0 0
        %2359 = vmatpush1.bf16.msra.mxu0 0
        %2360 = vmatprep.subr.bf16.mxu0 0
        %2361 = vmatpush1.bf16.msra.mxu0 0
        %2362 = vmatprep.subr.bf16.mxu0 0
        %2363 = vmatpush1.bf16.msra.mxu0 %v2346
        %2364 = vmatprep.subr.bf16.mxu0 0
        %2365 = vmatpush2.bf16.msra.mxu0 0
        %2366 = vmatprep.subr.bf16.mxu0 0
        %2367 = vmatpush2.bf16.msra.mxu0 0
        %2368 = vmatprep.subr.bf16.mxu0 0
        %2369 = vmatpush2.bf16.msra.mxu0 0
        %2370 = vmatprep.subr.bf16.mxu0 0
        %2371 = vmatpush2.bf16.msra.mxu0 0
        %2372 = vmatprep.subr.bf16.mxu0 0
        %2373 = vmatpush2.bf16.msra.mxu0 0
        %2374 = vmatprep.subr.bf16.mxu0 0
        %2375 = vmatpush2.bf16.msra.mxu0 0
        %2376 = vmatprep.subr.bf16.mxu0 0
        %2377 = vmatpush2.bf16.msra.mxu0 0
        %2378 = vmatprep.subr.bf16.mxu0 0
        %2379 = vmatpush2.bf16.msra.mxu0 0
        %2380 = vmatprep.mubr.bf16.mxu0 0
        %2381 = vmatmul.mubr.bf16.gmra.mxu0 %v2343
        %v2382 = vpop.f32.mrf.mxu0
        %v2383 = vadd.f32 0.0, %v2382
        %v2384 = vpop.f32.mrf.mxu0
        %v2385 = vpop.f32.mrf.mxu0
        %v2386 = vpop.f32.mrf.mxu0
        %2387 = vdwg.mxu0
        %v2388 = vadd.f32 %v2340, %v2383
        %2389 = vst.msk [vmem:[%s2333] sm:$0xff] %vm583, %v2388
        %2390 = vst.msk [vmem:[%s2308] sm:$0xff] %vm574, %v2313
        %v2391 = vld [vmem:[%s1438] sm:$0xf]
        %v2392 = vld [vmem:[%s1442] sm:$0xf]
        %v2394 = vsel %vm583, %v1434, 0
        %v2397 = vsel %vm583, %v2391, 0
        %2399 = vmatprep.subr.bf16.mxu0 0
        %2400 = vmatpush1.bf16.xpose.msra.mxu0 0
        %2401 = vmatprep.subr.bf16.mxu0 0
        %2402 = vmatpush1.bf16.xpose.msra.mxu0 0
        %2403 = vmatprep.subr.bf16.mxu0 0
        %2404 = vmatpush1.bf16.xpose.msra.mxu0 0
        %2405 = vmatprep.subr.bf16.mxu0 0
        %2406 = vmatpush1.bf16.xpose.msra.mxu0 0
        %2407 = vmatprep.subr.bf16.mxu0 0
        %2408 = vmatpush1.bf16.xpose.msra.mxu0 0
        %2409 = vmatprep.subr.bf16.mxu0 0
        %2410 = vmatpush1.bf16.xpose.msra.mxu0 0
        %2411 = vmatprep.subr.bf16.mxu0 0
        %2412 = vmatpush1.bf16.xpose.msra.mxu0 0
        %2413 = vmatprep.subr.bf16.mxu0 0
        %2414 = vmatpush1.bf16.xpose.msra.mxu0 %v2397
        %2415 = vmatprep.subr.bf16.mxu0 0
        %2416 = vmatpush2.bf16.xpose.msra.mxu0 0
        %2417 = vmatprep.subr.bf16.mxu0 0
        %2418 = vmatpush2.bf16.xpose.msra.mxu0 0
        %2419 = vmatprep.subr.bf16.mxu0 0
        %2420 = vmatpush2.bf16.xpose.msra.mxu0 0
        %2421 = vmatprep.subr.bf16.mxu0 0
        %2422 = vmatpush2.bf16.xpose.msra.mxu0 0
        %2423 = vmatprep.subr.bf16.mxu0 0
        %2424 = vmatpush2.bf16.xpose.msra.mxu0 0
        %2425 = vmatprep.subr.bf16.mxu0 0
        %2426 = vmatpush2.bf16.xpose.msra.mxu0 0
        %2427 = vmatprep.subr.bf16.mxu0 0
        %2428 = vmatpush2.bf16.xpose.msra.mxu0 0
        %2429 = vmatprep.subr.bf16.mxu0 0
        %2430 = vmatpush2.bf16.xpose.msra.mxu0 0
        %2431 = vmatprep.mubr.bf16.mxu0 0
        %2432 = vmatmul.mubr.bf16.gmra.mxu0 %v2394
        %v2433 = vpop.f32.mrf.mxu0
        %v2434 = vadd.f32 %v1999, %v2433
        %v2435 = vpop.f32.mrf.mxu0
        %v2436 = vpop.f32.mrf.mxu0
        %v2437 = vpop.f32.mrf.mxu0
        %2438 = vdwg.mxu0
        %s2439 = scalar_lea.vmem [#allocation4], 24
        %v2440 = vld [vmem:[%s2439] sm:$0xff]
        %v2441 = vsel %vm583, %v2434, -inf
        %2442 = vmax.xlane.f32.xlu0 %v2441
        %v2443 = vpop.xlane.xlu0 %2442
        %v2444 = vmax.f32 %v2440, %v2443
        %v2445 = vsub.f32 %v2440, %v2444
        %v2446 = vmul.f32 %v2445, 1.442695
        %v2447 = vpow.pop %v2446
        %2449 = vset.pattern.permute.xlu0 0
        %2450 = vperm.xlu0 %2449, %v2444
        %v2451 = vpop.permute.xlu0 %2450
        %v2453 = vsub.f32 %v2434, %v2451
        %v2454 = vmul.f32 %v2453, 1.442695
        %v2455 = vpow.pop %v2454
        %s2456 = scalar_lea.vmem [#allocation5], 24
        %v2457 = vld [vmem:[%s2456] sm:$0xff]
        %v2458 = vmul.f32 %v2447, %v2457
        %v2459 = vsel %vm583, %v2455, 0.0
        %2460 = vadd.xlane.f32.xlu0 %v2459
        %v2461 = vpop.xlane.xlu0 %2460
        %v2462 = vadd.f32 %v2458, %v2461
        %2463 = vst.msk [vmem:[%s2456] sm:$0xff] %vm574, %v2462
        %s2464 = scalar_lea.vmem [#allocation6], 24
        %v2465 = vld [vmem:[%s2464] sm:$0xff]
        %2467 = vset.pattern.permute.xlu0 0
        %2468 = vperm.xlu0 %2467, %v2447
        %v2469 = vpop.permute.xlu0 %2468
        %v2471 = vmul.f32 %v2469, %v2465
        %v2472 = vpack.c.bf16 %v2455, %v2455
        %v2474 = vsel %vm583, %v2472, 0
        %v2477 = vsel %vm2082, %v2392, 0
        %2479 = vmatprep.subr.bf16.mxu0 0
        %2480 = vmatpush1.bf16.msra.mxu0 0
        %2481 = vmatprep.subr.bf16.mxu0 0
        %2482 = vmatpush1.bf16.msra.mxu0 0
        %2483 = vmatprep.subr.bf16.mxu0 0
        %2484 = vmatpush1.bf16.msra.mxu0 0
        %2485 = vmatprep.subr.bf16.mxu0 0
        %2486 = vmatpush1.bf16.msra.mxu0 0
        %2487 = vmatprep.subr.bf16.mxu0 0
        %2488 = vmatpush1.bf16.msra.mxu0 0
        %2489 = vmatprep.subr.bf16.mxu0 0
        %2490 = vmatpush1.bf16.msra.mxu0 0
        %2491 = vmatprep.subr.bf16.mxu0 0
        %2492 = vmatpush1.bf16.msra.mxu0 0
        %2493 = vmatprep.subr.bf16.mxu0 0
        %2494 = vmatpush1.bf16.msra.mxu0 %v2477
        %2495 = vmatprep.subr.bf16.mxu0 0
        %2496 = vmatpush2.bf16.msra.mxu0 0
        %2497 = vmatprep.subr.bf16.mxu0 0
        %2498 = vmatpush2.bf16.msra.mxu0 0
        %2499 = vmatprep.subr.bf16.mxu0 0
        %2500 = vmatpush2.bf16.msra.mxu0 0
        %2501 = vmatprep.subr.bf16.mxu0 0
        %2502 = vmatpush2.bf16.msra.mxu0 0
        %2503 = vmatprep.subr.bf16.mxu0 0
        %2504 = vmatpush2.bf16.msra.mxu0 0
        %2505 = vmatprep.subr.bf16.mxu0 0
        %2506 = vmatpush2.bf16.msra.mxu0 0
        %2507 = vmatprep.subr.bf16.mxu0 0
        %2508 = vmatpush2.bf16.msra.mxu0 0
        %2509 = vmatprep.subr.bf16.mxu0 0
        %2510 = vmatpush2.bf16.msra.mxu0 0
        %2511 = vmatprep.mubr.bf16.mxu0 0
        %2512 = vmatmul.mubr.bf16.gmra.mxu0 %v2474
        %v2513 = vpop.f32.mrf.mxu0
        %v2514 = vadd.f32 0.0, %v2513
        %v2515 = vpop.f32.mrf.mxu0
        %v2516 = vpop.f32.mrf.mxu0
        %v2517 = vpop.f32.mrf.mxu0
        %2518 = vdwg.mxu0
        %v2519 = vadd.f32 %v2471, %v2514
        %2520 = vst.msk [vmem:[%s2464] sm:$0xff] %vm583, %v2519
        %2521 = vst.msk [vmem:[%s2439] sm:$0xff] %vm574, %v2444
        %v2522 = vld [vmem:[#allocation6] sm:$0xff]
        %v2523 = vld [vmem:[#allocation5] sm:$0xff]
        %v2524 = vrcp.pop %v2523
        %2526 = vset.pattern.permute.xlu0 0
        %2527 = vperm.xlu0 %2526, %v2524
        %v2528 = vpop.permute.xlu0 %2527
        %v2530 = vmul.f32 %v2522, %v2528
        %v2531 = vpack.c.bf16 %v2530, %v2530
        %v2532 = vld [vmem:[%s9] sm:$0xf]
        %v2533 = vld [vmem:[%s2202] sm:$0xff]
        %v2534 = vld [vmem:[%s2194] sm:$0xff]
        %v2535 = vrcp.pop %v2534
        %2537 = vset.pattern.permute.xlu0 0
        %2538 = vperm.xlu0 %2537, %v2535
        %v2539 = vpop.permute.xlu0 %2538
        %v2541 = vmul.f32 %v2533, %v2539
        %v2542 = vpack.c.bf16 %v2541, %v2541
        %s2543 = scalar_lea.vmem %s9, 4
        %v2544 = vld [vmem:[%s2543] sm:$0xf]
        %v2546 = vsel %vm583, %v2542, 0
        %v2549 = vsel %vm2082, %v2544, 0
        %2551 = vmatprep.subr.bf16.mxu0 0
        %2552 = vmatpush1.bf16.msra.mxu0 0
        %2553 = vmatprep.subr.bf16.mxu0 0
        %2554 = vmatpush1.bf16.msra.mxu0 0
        %2555 = vmatprep.subr.bf16.mxu0 0
        %2556 = vmatpush1.bf16.msra.mxu0 0
        %2557 = vmatprep.subr.bf16.mxu0 0
        %2558 = vmatpush1.bf16.msra.mxu0 0
        %2559 = vmatprep.subr.bf16.mxu0 0
        %2560 = vmatpush1.bf16.msra.mxu0 0
        %2561 = vmatprep.subr.bf16.mxu0 0
        %2562 = vmatpush1.bf16.msra.mxu0 0
        %2563 = vmatprep.subr.bf16.mxu0 0
        %2564 = vmatpush1.bf16.msra.mxu0 0
        %2565 = vmatprep.subr.bf16.mxu0 0
        %2566 = vmatpush1.bf16.msra.mxu0 %v2549
        %2567 = vmatprep.subr.bf16.mxu0 0
        %2568 = vmatpush2.bf16.msra.mxu0 0
        %2569 = vmatprep.subr.bf16.mxu0 0
        %2570 = vmatpush2.bf16.msra.mxu0 0
        %2571 = vmatprep.subr.bf16.mxu0 0
        %2572 = vmatpush2.bf16.msra.mxu0 0
        %2573 = vmatprep.subr.bf16.mxu0 0
        %2574 = vmatpush2.bf16.msra.mxu0 0
        %2575 = vmatprep.subr.bf16.mxu0 0
        %2576 = vmatpush2.bf16.msra.mxu0 0
        %2577 = vmatprep.subr.bf16.mxu0 0
        %2578 = vmatpush2.bf16.msra.mxu0 0
        %2579 = vmatprep.subr.bf16.mxu0 0
        %2580 = vmatpush2.bf16.msra.mxu0 0
        %2581 = vmatprep.subr.bf16.mxu0 0
        %2582 = vmatpush2.bf16.msra.mxu0 0
        %2583 = vmatprep.mubr.bf16.mxu0 0
        %2584 = vmatmul.mubr.bf16.gmra.mxu0 %v2546
        %v2585 = vpop.f32.mrf.mxu0
        %v2586 = vadd.f32 0.0, %v2585
        %v2587 = vpop.f32.mrf.mxu0
        %v2588 = vpop.f32.mrf.mxu0
        %v2589 = vpop.f32.mrf.mxu0
        %2590 = vdwg.mxu0
        %v2592 = vsel %vm583, %v2531, 0
        %v2595 = vsel %vm2082, %v2532, 0
        %2597 = vmatprep.subr.bf16.mxu0 0
        %2598 = vmatpush1.bf16.msra.mxu0 0
        %2599 = vmatprep.subr.bf16.mxu0 0
        %2600 = vmatpush1.bf16.msra.mxu0 0
        %2601 = vmatprep.subr.bf16.mxu0 0
        %2602 = vmatpush1.bf16.msra.mxu0 0
        %2603 = vmatprep.subr.bf16.mxu0 0
        %2604 = vmatpush1.bf16.msra.mxu0 0
        %2605 = vmatprep.subr.bf16.mxu0 0
        %2606 = vmatpush1.bf16.msra.mxu0 0
        %2607 = vmatprep.subr.bf16.mxu0 0
        %2608 = vmatpush1.bf16.msra.mxu0 0
        %2609 = vmatprep.subr.bf16.mxu0 0
        %2610 = vmatpush1.bf16.msra.mxu0 0
        %2611 = vmatprep.subr.bf16.mxu0 0
        %2612 = vmatpush1.bf16.msra.mxu0 %v2595
        %2613 = vmatprep.subr.bf16.mxu0 0
        %2614 = vmatpush2.bf16.msra.mxu0 0
        %2615 = vmatprep.subr.bf16.mxu0 0
        %2616 = vmatpush2.bf16.msra.mxu0 0
        %2617 = vmatprep.subr.bf16.mxu0 0
        %2618 = vmatpush2.bf16.msra.mxu0 0
        %2619 = vmatprep.subr.bf16.mxu0 0
        %2620 = vmatpush2.bf16.msra.mxu0 0
        %2621 = vmatprep.subr.bf16.mxu0 0
        %2622 = vmatpush2.bf16.msra.mxu0 0
        %2623 = vmatprep.subr.bf16.mxu0 0
        %2624 = vmatpush2.bf16.msra.mxu0 0
        %2625 = vmatprep.subr.bf16.mxu0 0
        %2626 = vmatpush2.bf16.msra.mxu0 0
        %2627 = vmatprep.subr.bf16.mxu0 0
        %2628 = vmatpush2.bf16.msra.mxu0 0
        %2629 = vmatprep.mubr.bf16.mxu0 0
        %2630 = vmatmul.mubr.bf16.gmra.mxu0 %v2592
        %v2631 = vpop.f32.mrf.mxu0
        %v2632 = vadd.f32 %v2586, %v2631
        %v2633 = vpop.f32.mrf.mxu0
        %v2634 = vpop.f32.mrf.mxu0
        %v2635 = vpop.f32.mrf.mxu0
        %2636 = vdwg.mxu0
        %v2637 = vld [vmem:[%s2333] sm:$0xff]
        %v2638 = vld [vmem:[%s2325] sm:$0xff]
        %v2639 = vrcp.pop %v2638
        %2641 = vset.pattern.permute.xlu0 0
        %2642 = vperm.xlu0 %2641, %v2639
        %v2643 = vpop.permute.xlu0 %2642
        %v2645 = vmul.f32 %v2637, %v2643
        %v2646 = vpack.c.bf16 %v2645, %v2645
        %s2647 = scalar_lea.vmem %s9, 8
        %v2648 = vld [vmem:[%s2647] sm:$0xf]
        %v2650 = vsel %vm583, %v2646, 0
        %v2653 = vsel %vm2082, %v2648, 0
        %2655 = vmatprep.subr.bf16.mxu0 0
        %2656 = vmatpush1.bf16.msra.mxu0 0
        %2657 = vmatprep.subr.bf16.mxu0 0
        %2658 = vmatpush1.bf16.msra.mxu0 0
        %2659 = vmatprep.subr.bf16.mxu0 0
        %2660 = vmatpush1.bf16.msra.mxu0 0
        %2661 = vmatprep.subr.bf16.mxu0 0
        %2662 = vmatpush1.bf16.msra.mxu0 0
        %2663 = vmatprep.subr.bf16.mxu0 0
        %2664 = vmatpush1.bf16.msra.mxu0 0
        %2665 = vmatprep.subr.bf16.mxu0 0
        %2666 = vmatpush1.bf16.msra.mxu0 0
        %2667 = vmatprep.subr.bf16.mxu0 0
        %2668 = vmatpush1.bf16.msra.mxu0 0
        %2669 = vmatprep.subr.bf16.mxu0 0
        %2670 = vmatpush1.bf16.msra.mxu0 %v2653
        %2671 = vmatprep.subr.bf16.mxu0 0
        %2672 = vmatpush2.bf16.msra.mxu0 0
        %2673 = vmatprep.subr.bf16.mxu0 0
        %2674 = vmatpush2.bf16.msra.mxu0 0
        %2675 = vmatprep.subr.bf16.mxu0 0
        %2676 = vmatpush2.bf16.msra.mxu0 0
        %2677 = vmatprep.subr.bf16.mxu0 0
        %2678 = vmatpush2.bf16.msra.mxu0 0
        %2679 = vmatprep.subr.bf16.mxu0 0
        %2680 = vmatpush2.bf16.msra.mxu0 0
        %2681 = vmatprep.subr.bf16.mxu0 0
        %2682 = vmatpush2.bf16.msra.mxu0 0
        %2683 = vmatprep.subr.bf16.mxu0 0
        %2684 = vmatpush2.bf16.msra.mxu0 0
        %2685 = vmatprep.subr.bf16.mxu0 0
        %2686 = vmatpush2.bf16.msra.mxu0 0
        %2687 = vmatprep.mubr.bf16.mxu0 0
        %2688 = vmatmul.mubr.bf16.gmra.mxu0 %v2650
        %v2689 = vpop.f32.mrf.mxu0
        %v2690 = vadd.f32 0.0, %v2689
        %v2691 = vpop.f32.mrf.mxu0
        %v2692 = vpop.f32.mrf.mxu0
        %v2693 = vpop.f32.mrf.mxu0
        %2694 = vdwg.mxu0
        %v2695 = vadd.f32 %v2632, %v2690
        %v2696 = vld [vmem:[%s2464] sm:$0xff]
        %v2697 = vld [vmem:[%s2456] sm:$0xff]
        %v2698 = vrcp.pop %v2697
        %2700 = vset.pattern.permute.xlu0 0
        %2701 = vperm.xlu0 %2700, %v2698
        %v2702 = vpop.permute.xlu0 %2701
        %v2704 = vmul.f32 %v2696, %v2702
        %v2705 = vpack.c.bf16 %v2704, %v2704
        %s2706 = scalar_lea.vmem %s9, 12
        %v2707 = vld [vmem:[%s2706] sm:$0xf]
        %v2709 = vsel %vm583, %v2705, 0
        %v2712 = vsel %vm2082, %v2707, 0
        %2714 = vmatprep.subr.bf16.mxu0 0
        %2715 = vmatpush1.bf16.msra.mxu0 0
        %2716 = vmatprep.subr.bf16.mxu0 0
        %2717 = vmatpush1.bf16.msra.mxu0 0
        %2718 = vmatprep.subr.bf16.mxu0 0
        %2719 = vmatpush1.bf16.msra.mxu0 0
        %2720 = vmatprep.subr.bf16.mxu0 0
        %2721 = vmatpush1.bf16.msra.mxu0 0
        %2722 = vmatprep.subr.bf16.mxu0 0
        %2723 = vmatpush1.bf16.msra.mxu0 0
        %2724 = vmatprep.subr.bf16.mxu0 0
        %2725 = vmatpush1.bf16.msra.mxu0 0
        %2726 = vmatprep.subr.bf16.mxu0 0
        %2727 = vmatpush1.bf16.msra.mxu0 0
        %2728 = vmatprep.subr.bf16.mxu0 0
        %2729 = vmatpush1.bf16.msra.mxu0 %v2712
        %2730 = vmatprep.subr.bf16.mxu0 0
        %2731 = vmatpush2.bf16.msra.mxu0 0
        %2732 = vmatprep.subr.bf16.mxu0 0
        %2733 = vmatpush2.bf16.msra.mxu0 0
        %2734 = vmatprep.subr.bf16.mxu0 0
        %2735 = vmatpush2.bf16.msra.mxu0 0
        %2736 = vmatprep.subr.bf16.mxu0 0
        %2737 = vmatpush2.bf16.msra.mxu0 0
        %2738 = vmatprep.subr.bf16.mxu0 0
        %2739 = vmatpush2.bf16.msra.mxu0 0
        %2740 = vmatprep.subr.bf16.mxu0 0
        %2741 = vmatpush2.bf16.msra.mxu0 0
        %2742 = vmatprep.subr.bf16.mxu0 0
        %2743 = vmatpush2.bf16.msra.mxu0 0
        %2744 = vmatprep.subr.bf16.mxu0 0
        %2745 = vmatpush2.bf16.msra.mxu0 0
        %2746 = vmatprep.mubr.bf16.mxu0 0
        %2747 = vmatmul.mubr.bf16.gmra.mxu0 %v2709
        %v2748 = vpop.f32.mrf.mxu0
        %v2749 = vadd.f32 0.0, %v2748
        %v2750 = vpop.f32.mrf.mxu0
        %v2751 = vpop.f32.mrf.mxu0
        %v2752 = vpop.f32.mrf.mxu0
        %2753 = vdwg.mxu0
        %v2754 = vadd.f32 %v2695, %v2749
        %v2755 = vld [vmem:[%s10] sm:$0x1]
        %v2757 = vlaneseq
        %v2758 = vshrl.u32 %v2757, 7
        %v2759 = vsub.s32 0, %v2758
        %v2760 = vrot.slane %v2755, %v2759
        %v2762 = vadd.f32 %v2754, %v2760
        %v2763 = vadd.f32 %v573, %v2762
        %v2764 = vld [vmem:[%s11] sm:$0x1]
        %v2765 = vld [vmem:[%s12] sm:$0x1]
        %v2766 = vsel %vm590, %v2763, 0.0
        %2767 = vadd.xlane.f32.xlu0 %v2766
        %v2768 = vpop.xlane.xlu0 %2767
        %v2769 = vmul.f32 %v2768, %v594
        %v2770 = vsub.f32 %v2763, %v2769
        %v2771 = vmul.f32 %v2770, %v2770
        %v2772 = vsel %vm590, %v2771, 0.0
        %2773 = vadd.xlane.f32.xlu0 %v2772
        %v2774 = vpop.xlane.xlu0 %2773
        %v2775 = vmul.f32 %v2774, %v594
        %v2776 = vadd.f32 %v2775, 1e-05
        %v2777 = vrsqrt.pop %v2776
        %v2778 = vmul.f32 %v2770, %v2777
        %v2780 = vlaneseq
        %v2781 = vshrl.u32 %v2780, 7
        %v2782 = vsub.s32 0, %v2781
        %v2783 = vrot.slane %v2764, %v2782
        %v2785 = vmul.f32 %v2778, %v2783
        %v2787 = vlaneseq
        %v2788 = vshrl.u32 %v2787, 7
        %v2789 = vsub.s32 0, %v2788
        %v2790 = vrot.slane %v2765, %v2789
        %v2792 = vadd.f32 %v2785, %v2790
        %v2793 = vpack.c.bf16 %v2792, %v2792
        %v2794 = vld [vmem:[%s13] sm:$0xf]
        %v2795 = vld [vmem:[%s13 + $0x4] sm:$0xf]
        %v2796 = vld [vmem:[%s13 + $0x8] sm:$0xf]
        %v2797 = vld [vmem:[%s13 + $0xc] sm:$0xf]
        %v2798 = vld [vmem:[%s14] sm:$0x1]
        %v2800 = vlaneseq
        %v2801 = vshrl.u32 %v2800, 7
        %v2802 = vsub.s32 0, %v2801
        %v2803 = vrot.slane %v2798, %v2802
        %v2809 = vunpack.c.l.b16 %v2794
        %v2810 = vunpack.c.l.b16 %v2795
        %v2811 = vunpack.c.l.b16 %v2796
        %v2812 = vunpack.c.l.b16 %v2797
        %v2813 = vpack.c.b16 %v2810, %v2809
        %v2814 = vpack.c.b16 %v2812, %v2811
        %v2818 = vsel %vm590, %v2793, 0
        %2820 = vmatprep.subr.bf16.mxu0 0
        %2821 = vmatpush1.bf16.msra.mxu0 0
        %2822 = vmatprep.subr.bf16.mxu0 0
        %2823 = vmatpush1.bf16.msra.mxu0 0
        %2824 = vmatprep.subr.bf16.mxu0 0
        %2825 = vmatpush1.bf16.msra.mxu0 0
        %2826 = vmatprep.subr.bf16.mxu0 0
        %2827 = vmatpush1.bf16.msra.mxu0 0
        %2828 = vmatprep.subr.bf16.mxu0 0
        %2829 = vmatpush1.bf16.msra.mxu0 0
        %2830 = vmatprep.subr.bf16.mxu0 0
        %2831 = vmatpush1.bf16.msra.mxu0 0
        %2832 = vmatprep.subr.bf16.mxu0 0
        %2833 = vmatpush1.bf16.msra.mxu0 %v2814
        %2834 = vmatprep.subr.bf16.mxu0 0
        %2835 = vmatpush1.bf16.msra.mxu0 %v2813
        %2836 = vmatprep.subr.bf16.mxu0 0
        %2837 = vmatpush2.bf16.msra.mxu0 0
        %2838 = vmatprep.subr.bf16.mxu0 0
        %2839 = vmatpush2.bf16.msra.mxu0 0
        %2840 = vmatprep.subr.bf16.mxu0 0
        %2841 = vmatpush2.bf16.msra.mxu0 0
        %2842 = vmatprep.subr.bf16.mxu0 0
        %2843 = vmatpush2.bf16.msra.mxu0 0
        %2844 = vmatprep.subr.bf16.mxu0 0
        %2845 = vmatpush2.bf16.msra.mxu0 0
        %2846 = vmatprep.subr.bf16.mxu0 0
        %2847 = vmatpush2.bf16.msra.mxu0 0
        %2848 = vmatprep.subr.bf16.mxu0 0
        %2849 = vmatpush2.bf16.msra.mxu0 0
        %2850 = vmatprep.subr.bf16.mxu0 0
        %2851 = vmatpush2.bf16.msra.mxu0 0
        %2852 = vmatprep.mubr.bf16.mxu0 0
        %2853 = vmatmul.mubr.bf16.gmra.mxu0 %v2818
        %v2854 = vpop.f32.mrf.mxu0
        %v2855 = vadd.f32 %v2803, %v2854
        %v2856 = vpop.f32.mrf.mxu0
        %v2857 = vpop.f32.mrf.mxu0
        %v2858 = vpop.f32.mrf.mxu0
        %2859 = vdwg.mxu0
        %v2860 = vmul.f32 %v2855, 0.5
        %v2861 = vmul.f32 %v2855, 0.70710677
        %v2862 = verf.f32.pop %v2861
        %v2863 = vadd.f32 %v2862, 1.0
        %v2864 = vmul.f32 %v2860, %v2863
        %v2865 = vpack.c.bf16 %v2864, %v2864
        %v2866 = vld [vmem:[%s15] sm:$0xf]
        %v2867 = vld [vmem:[%s15 + $0x4] sm:$0xf]
        %v2868 = vld [vmem:[%s15 + $0x8] sm:$0xf]
        %v2869 = vld [vmem:[%s15 + $0xc] sm:$0xf]
        %v2870 = vld [vmem:[%s15 + $0x10] sm:$0xf]
        %v2871 = vld [vmem:[%s15 + $0x14] sm:$0xf]
        %v2872 = vld [vmem:[%s15 + $0x18] sm:$0xf]
        %v2873 = vld [vmem:[%s15 + $0x1c] sm:$0xf]
        %v2874 = vld [vmem:[%s15 + $0x20] sm:$0xf]
        %v2875 = vld [vmem:[%s15 + $0x24] sm:$0xf]
        %v2876 = vld [vmem:[%s15 + $0x28] sm:$0xf]
        %v2877 = vld [vmem:[%s15 + $0x2c] sm:$0xf]
        %v2878 = vld [vmem:[%s15 + $0x30] sm:$0xf]
        %v2879 = vld [vmem:[%s15 + $0x34] sm:$0xf]
        %v2880 = vld [vmem:[%s15 + $0x38] sm:$0xf]
        %v2881 = vld [vmem:[%s15 + $0x3c] sm:$0xf]
        %v2882 = vld [vmem:[%s16] sm:$0x1]
        %v2884 = vlaneseq
        %v2885 = vshrl.u32 %v2884, 7
        %v2886 = vsub.s32 0, %v2885
        %v2887 = vrot.slane %v2882, %v2886
        %v2905 = vunpack.c.l.b16 %v2866
        %v2906 = vunpack.c.l.b16 %v2867
        %v2907 = vunpack.c.l.b16 %v2868
        %v2908 = vunpack.c.l.b16 %v2869
        %v2909 = vunpack.c.l.b16 %v2870
        %v2910 = vunpack.c.l.b16 %v2871
        %v2911 = vunpack.c.l.b16 %v2872
        %v2912 = vunpack.c.l.b16 %v2873
        %v2913 = vunpack.c.l.b16 %v2874
        %v2914 = vunpack.c.l.b16 %v2875
        %v2915 = vunpack.c.l.b16 %v2876
        %v2916 = vunpack.c.l.b16 %v2877
        %v2917 = vunpack.c.l.b16 %v2878
        %v2918 = vunpack.c.l.b16 %v2879
        %v2919 = vunpack.c.l.b16 %v2880
        %v2920 = vunpack.c.l.b16 %v2881
        %v2921 = vpack.c.b16 %v2906, %v2905
        %v2922 = vpack.c.b16 %v2908, %v2907
        %v2923 = vpack.c.b16 %v2910, %v2909
        %v2924 = vpack.c.b16 %v2912, %v2911
        %v2925 = vpack.c.b16 %v2914, %v2913
        %v2926 = vpack.c.b16 %v2916, %v2915
        %v2927 = vpack.c.b16 %v2918, %v2917
        %v2928 = vpack.c.b16 %v2920, %v2919
        %2937 = vmatprep.subr.bf16.mxu0 0
        %2938 = vmatpush1.bf16.msra.mxu0 %v2928
        %2939 = vmatprep.subr.bf16.mxu0 0
        %2940 = vmatpush1.bf16.msra.mxu0 %v2927
        %2941 = vmatprep.subr.bf16.mxu0 0
        %2942 = vmatpush1.bf16.msra.mxu0 %v2926
        %2943 = vmatprep.subr.bf16.mxu0 0
        %2944 = vmatpush1.bf16.msra.mxu0 %v2925
        %2945 = vmatprep.subr.bf16.mxu0 0
        %2946 = vmatpush1.bf16.msra.mxu0 %v2924
        %2947 = vmatprep.subr.bf16.mxu0 0
        %2948 = vmatpush1.bf16.msra.mxu0 %v2923
        %2949 = vmatprep.subr.bf16.mxu0 0
        %2950 = vmatpush1.bf16.msra.mxu0 %v2922
        %2951 = vmatprep.subr.bf16.mxu0 0
        %2952 = vmatpush1.bf16.msra.mxu0 %v2921
        %2953 = vmatprep.subr.bf16.mxu0 0
        %2954 = vmatpush2.bf16.msra.mxu0 0
        %2955 = vmatprep.subr.bf16.mxu0 0
        %2956 = vmatpush2.bf16.msra.mxu0 0
        %2957 = vmatprep.subr.bf16.mxu0 0
        %2958 = vmatpush2.bf16.msra.mxu0 0
        %2959 = vmatprep.subr.bf16.mxu0 0
        %2960 = vmatpush2.bf16.msra.mxu0 0
        %2961 = vmatprep.subr.bf16.mxu0 0
        %2962 = vmatpush2.bf16.msra.mxu0 0
        %2963 = vmatprep.subr.bf16.mxu0 0
        %2964 = vmatpush2.bf16.msra.mxu0 0
        %2965 = vmatprep.subr.bf16.mxu0 0
        %2966 = vmatpush2.bf16.msra.mxu0 0
        %2967 = vmatprep.subr.bf16.mxu0 0
        %2968 = vmatpush2.bf16.msra.mxu0 0
        %2969 = vmatprep.mubr.bf16.mxu0 0
        %2970 = vmatmul.mubr.bf16.gmra.mxu0 %v2865
        %v2971 = vpop.f32.mrf.mxu0
        %v2972 = vadd.f32 %v2887, %v2971
        %v2973 = vpop.f32.mrf.mxu0
        %v2974 = vpop.f32.mrf.mxu0
        %v2975 = vpop.f32.mrf.mxu0
        %2976 = vdwg.mxu0
        %v2977 = vadd.f32 %v2763, %v2972
        %2978 = vst.msk [vmem:[%s563] sm:$0xff] %vm590, %v2977
        %s2979 = sand.u32 %s417, 1
        %s2980 = scalar_lea.sflag [#allocation8], %s2979
        %s2981 = sand.u32 %s417, 1
        %s2982 = smul.addr %s2981, 8
        %s2983 = scalar_lea.vmem [#allocation7], %s2982
        // Predicated region
        $region96: #{tpu_custom_call.1} parent=87 // pred_check
          %p2984 = pneg %p427
        $region97: #{tpu_custom_call.1} parent=87 // pred_check_branch
          %2986 = sbr.rel (%p2984) target = $region99
        $region98: #{tpu_custom_call.1} parent=87 // pred_region
          %s2988 = ssub.s32 128, 128
          %2989 = vsyncadd %s2980, %s2988
          %s2990 = smul.addr %s35, 2
          %s2991 = sadd.s32 %s36, %s2990
          %s2992 = smul.addr %s2991, 128
          %s2993 = scalar_lea.hbm %s17, %s2992
          %s2995 = sshll.u32 %s2983, 4
          %s2996 = int_to_ptr.vmem [resolvable:$true] %s2995
          %2998 = dma.vmem_to_hbm [thread:$0]  %s2996, 128, %s2993, %s2980
        $region99: #{tpu_custom_call.1} parent=87 // pred_fallthru
          _
      $region88: #{tpu_custom_call.1} parent=5 // pred_fallthru
        _
      %p2999 = scmp.le.s32.totalorder 2, %s26
      // Predicated region
      $region100: #{tpu_custom_call.1} parent=5 // pred_check
        %p3000 = pneg %p2999
      $region101: #{tpu_custom_call.1} parent=5 // pred_check_branch
        %3002 = sbr.rel (%p3000) target = $region103
      $region102: #{tpu_custom_call.1} parent=5 // pred_region
        %s3003 = ssub.s32 %s26, 2
        // Predicated region
        $region104: #{tpu_custom_call.1} parent=102 // pred_check
          %p3004 = pneg %p433
        $region105: #{tpu_custom_call.1} parent=102 // pred_check_branch
          %3006 = sbr.rel (%p3004) target = $region107
        $region106: #{tpu_custom_call.1} parent=102 // pred_region
          %s3007 = sand.u32 %s418, 1
          %s3008 = scalar_lea.sflag [#allocation8], %s3007
          %s3009 = sand.u32 %s418, 1
          %s3010 = smul.addr %s3009, 8
          %s3011 = scalar_lea.vmem [#allocation7], %s3010
          %3012 = dma.done %s3008, 128
        $region107: #{tpu_custom_call.1} parent=102 // pred_fallthru
          _
      $region103: #{tpu_custom_call.1} parent=5 // pred_fallthru
        _
    $region6: #{tpu_custom_call.1} parent=1 // loop_footer
      %s30 = sadd.s32 1, %s26
    $region7: #{tpu_custom_call.1} parent=1 // loop_footer_branch
      %25 = sbr.rel target = $region3
    $region8: #{tpu_custom_call.1} parent=1 // loop_exit
      _
    %3013 = vsyncpa [#allocation8], 1
    %s3014 = scalar_lea.sflag [#allocation8], 1
    %3015 = vsyncpa %s3014, 1

</llo_original>
